<compile_context>
chip_gen: v7x
topology: tpu7x:2x2x1
jax: 0.10.0
libtpu: 0.0.40
codegen_flags: <defaults>
</compile_context>

<pallas_src>
import numpy as np

import jax
import jax.numpy as jnp
from jax.experimental import pallas as pl
from jax.experimental.pallas import tpu as pltpu

NUM_CLASSES = 2      # cloud / not-cloud style toy class count
NUM_MASK_COEF = 8    # segmentation mask coefficients (proto channels)
N_DET = 4 + NUM_CLASSES + NUM_MASK_COEF   # 14
HEAD_NP = 128        # lane-dense padded width of the fused detect+proto head


# --------------------------- init-time construction ---------------------------

def _conv_out(n, k, s, p):
    return (n + 2 * p - k) // s + 1


def _make_tap_selection(h, w, kh, kw, stride, pad):
    """0/1 matrices sel[t] of shape (Ho*Wo, H*W): sel[t] @ X gathers conv tap t."""
    ho = _conv_out(h, kh, stride, pad)
    wo = _conv_out(w, kw, stride, pad)
    sel = np.zeros((kh * kw, ho * wo, h * w), np.float32)
    for dy in range(kh):
        for dx in range(kw):
            t = dy * kw + dx
            for i in range(ho):
                yy = i * stride + dy - pad
                if yy < 0 or yy >= h:
                    continue
                for j in range(wo):
                    xx = j * stride + dx - pad
                    if 0 <= xx < w:
                        sel[t, i * wo + j, yy * w + xx] = 1.0
    return jnp.asarray(sel, jnp.bfloat16), ho, wo


def _conv_params(key, kh, kw, cin, cout):
    kw_, kb_ = jax.random.split(key)
    scale = 1.0 / np.sqrt(kh * kw * cin)
    w = jax.random.normal(kw_, (kh * kw, cin, cout), jnp.float32) * scale
    b = jax.random.normal(kb_, (1, cout), jnp.float32) * 0.01   # folded BN/conv bias
    return w.astype(jnp.bfloat16), b


def _head_params(key, cin, n_det, n_proto):
    # det (linear) + proto (SiLU) 1x1 heads fused along N, padded lane-dense to
    # HEAD_NP columns, with a per-column SiLU gate (1.0 -> SiLU, 0.0 -> linear).
    kd, kp, kbd, kbp = jax.random.split(key, 4)
    scale = 1.0 / np.sqrt(cin)
    wd = jax.random.normal(kd, (cin, n_det), jnp.float32) * scale
    wp = jax.random.normal(kp, (cin, n_proto), jnp.float32) * scale
    bd = jax.random.normal(kbd, (n_det,), jnp.float32) * 0.01
    bp = jax.random.normal(kbp, (n_proto,), jnp.float32) * 0.01
    cout = n_det + n_proto
    w = jnp.zeros((cin, HEAD_NP), jnp.bfloat16).at[:, :cout].set(
        jnp.concatenate([wd, wp], axis=1).astype(jnp.bfloat16))
    b = jnp.zeros((1, HEAD_NP), jnp.float32).at[:, :cout].set(
        jnp.concatenate([bd, bp])[None, :])
    gate = jnp.zeros((1, HEAD_NP), jnp.float32).at[:, n_det:cout].set(1.0)
    return w, b, gate


def init_params(key, img_hw=(16, 16)):
    """Params hold arrays only; all structural (static) config is baked in here."""
    h0, w0 = img_hw
    assert h0 % 4 == 0 and w0 % 4 == 0
    ks = jax.random.split(key, 5)
    sel0, h1, w1 = _make_tap_selection(h0, w0, 3, 3, 2, 1)   # stem       HxW   -> H/2
    sel1, h2, w2 = _make_tap_selection(h1, w1, 3, 3, 2, 1)   # down       H/2   -> H/4
    sel2, _, _ = _make_tap_selection(h2, w2, 3, 3, 1, 1)     # bottleneck H/4   -> H/4
    w_stem, b_stem = _conv_params(ks[0], 3, 3, 3, 16)
    w_down, b_down = _conv_params(ks[1], 3, 3, 16, 32)
    w_btl, b_btl = _conv_params(ks[2], 3, 3, 32, 32)
    w_cv2, b_cv2 = _conv_params(ks[3], 1, 1, 32, 32)
    w_head, b_head, gate = _head_params(ks[4], 32, N_DET, NUM_MASK_COEF)
    return {
        "sel0": sel0, "w0": w_stem, "b0": b_stem,
        "sel1": sel1, "w1": w_down, "b1": b_down,
        "sel2": sel2, "w2": w_btl, "b2": b_btl,
        "w_cv2": w_cv2[0], "b_cv2": b_cv2,
        "w_head": w_head, "b_head": b_head, "gate": gate,
    }


# ------------------------------- fused kernel --------------------------------

def _silu_f32(v):
    return v / (1.0 + jnp.exp(-v))          # v * sigmoid(v); plain VPU/EUP ops


def _cloud_yolo_kernel(x_ref,
                       sel0_ref, w0_ref, b0_ref,
                       sel1_ref, w1_ref, b1_ref,
                       sel2_ref, w2_ref, b2_ref,
                       wc_ref, bc_ref,
                       wh_ref, bh_ref, gate_ref,
                       out_ref):
    f32, bf16 = jnp.float32, jnp.bfloat16

    def conv3x3(x_bf16, sel_ref, w_ref, b_ref):
        # out = sum_t (sel[t] @ x) @ w[t] + b, accumulated in f32 on the MXU.
        so = sel_ref.shape[1]
        cout = w_ref.shape[2]
        acc = jnp.zeros((so, cout), f32)
        for t in range(sel_ref.shape[0]):            # 9 taps, unrolled at trace time
            g = jnp.dot(sel_ref[t], x_bf16,
                        preferred_element_type=f32)  # exact 0/1 spatial gather
            acc = acc + jnp.dot(g.astype(bf16), w_ref[t],
                                preferred_element_type=f32)
        return acc + b_ref[...]                      # f32 bias epilogue (v5e-safe)

    x0 = x_ref[0]                                                    # (H*W, 3) bf16
    # stem: Conv3x3/s2 + SiLU
    h = _silu_f32(conv3x3(x0, sel0_ref, w0_ref, b0_ref)).astype(bf16)
    # down: Conv3x3/s2 + SiLU
    d = _silu_f32(conv3x3(h, sel1_ref, w1_ref, b1_ref)).astype(bf16)
    # C2f-style shortcut bottleneck: silu(conv3x3(d)) + d   (residual stays in VMEM)
    btl = (_silu_f32(conv3x3(d, sel2_ref, w2_ref, b2_ref))
           + d.astype(f32)).astype(bf16)
    # cv2: 1x1 Conv + SiLU
    cv = _silu_f32(jnp.dot(btl, wc_ref[...], preferred_element_type=f32)
                   + bc_ref[...]).astype(bf16)
    # fused detect (linear) + proto (SiLU) head, lane-dense 128-wide output
    y = jnp.dot(cv, wh_ref[...], preferred_element_type=f32) + bh_ref[...]
    y = y + gate_ref[...] * (_silu_f32(y) - y)       # per-column SiLU gate blend
    out_ref[0] = y.astype(out_ref.dtype)


def _const_imap(ndim):
    def imap(i):
        return (0,) * ndim
    return imap


def _batch_imap(ndim_rest):
    def imap(i):
        return (i,) + (0,) * ndim_rest
    return imap


_PARAM_ORDER = ("sel0", "w0", "b0", "sel1", "w1", "b1", "sel2", "w2", "b2",
                "w_cv2", "b_cv2", "w_head", "b_head", "gate")


def cloud_yolo_forward(params, x_nchw):
    b, c, h, w = x_nchw.shape
    # NCHW f32 -> (B, H*W, C) bf16: rows = flattened spatial, lanes = channels.
    x = jnp.transpose(x_nchw, (0, 2, 3, 1)).reshape(b, h * w, c).astype(jnp.bfloat16)

    consts = [params[k] for k in _PARAM_ORDER]
    s_out = params["sel2"].shape[1]               # (H/4) * (W/4)
    ho, wo = h // 4, w // 4

    out = pl.pallas_call(
        _cloud_yolo_kernel,
        out_shape=jax.ShapeDtypeStruct((b, s_out, HEAD_NP), jnp.float32),
        grid=(b,),
        in_specs=[pl.BlockSpec((1, h * w, c), _batch_imap(2))]
                 + [pl.BlockSpec(v.shape, _const_imap(v.ndim)) for v in consts],
        out_specs=pl.BlockSpec((1, s_out, HEAD_NP), _batch_imap(2)),
        compiler_params=pltpu.CompilerParams(
            dimension_semantics=("parallel",),    # batch across v7x's 2 TensorCores
        ),
    )(x, *consts)

    y = out.reshape(b, ho, wo, HEAD_NP)
    det = jnp.transpose(y[..., :N_DET], (0, 3, 1, 2))                 # NCHW f32
    proto = jnp.transpose(y[..., N_DET:N_DET + NUM_MASK_COEF], (0, 3, 1, 2))
    return det, proto


# ----------------------- independent pure-JAX reference -----------------------

def _reference_forward(params, x_nchw):
    # lax.conv spatial path (independent of the selection matrices), with the same
    # bf16 quantization points as the kernel.
    f32, bf16 = jnp.float32, jnp.bfloat16
    silu = _silu_f32

    def conv3x3(x, w_taps, bias, stride):
        cin, cout = w_taps.shape[1], w_taps.shape[2]
        wk = w_taps.reshape(3, 3, cin, cout).astype(f32)
        y = jax.lax.conv_general_dilated(
            x.astype(f32), wk, (stride, stride), ((1, 1), (1, 1)),
            dimension_numbers=("NHWC", "HWIO", "NHWC"))
        return y + bias.reshape(1, 1, 1, -1)

    x = jnp.transpose(x_nchw, (0, 2, 3, 1)).astype(bf16)
    h = silu(conv3x3(x, params["w0"], params["b0"], 2)).astype(bf16)
    d = silu(conv3x3(h, params["w1"], params["b1"], 2)).astype(bf16)
    btl = (silu(conv3x3(d, params["w2"], params["b2"], 1)) + d.astype(f32)).astype(bf16)
    cv = silu(btl.astype(f32) @ params["w_cv2"].astype(f32) + params["b_cv2"]).astype(bf16)
    y = cv.astype(f32) @ params["w_head"].astype(f32) + params["b_head"]
    y = y + params["gate"] * (silu(y) - y)
    det = jnp.transpose(y[..., :N_DET], (0, 3, 1, 2))
    proto = jnp.transpose(y[..., N_DET:N_DET + NUM_MASK_COEF], (0, 3, 1, 2))
    return det, proto


if __name__ == "__main__":
    key = jax.random.PRNGKey(0)
    kp, kx = jax.random.split(key)
    params = init_params(kp, img_hw=(16, 16))
    x = jax.random.normal(kx, (2, 3, 16, 16), jnp.float32)        # (B, 3, H, W)

    det, proto = jax.jit(cloud_yolo_forward)(params, x)
    jax.block_until_ready((det, proto))

    assert det.shape == (2, N_DET, 4, 4), det.shape
    assert proto.shape == (2, NUM_MASK_COEF, 4, 4), proto.shape

    # Correctness check against an independent (lax.conv) reference path.
    ref_det, ref_proto = jax.jit(_reference_forward)(params, x)
    np.testing.assert_allclose(np.asarray(det), np.asarray(ref_det),
                               atol=5e-2, rtol=5e-2)
    np.testing.assert_allclose(np.asarray(proto), np.asarray(ref_proto),
                               atol=5e-2, rtol=5e-2)

    print("KERNEL_OK")
</pallas_src>

<mosaic_0001>
module attributes {stable_mosaic.version = 11 : i64} {
  func.func @_cloud_yolo_kernel(%arg0: i32, %arg1: memref<1x256x3xbf16, #tpu.memory_space<vmem>>, %arg2: memref<9x64x256xbf16, #tpu.memory_space<vmem>>, %arg3: memref<9x3x16xbf16, #tpu.memory_space<vmem>>, %arg4: memref<1x16xf32, #tpu.memory_space<vmem>>, %arg5: memref<9x16x64xbf16, #tpu.memory_space<vmem>>, %arg6: memref<9x16x32xbf16, #tpu.memory_space<vmem>>, %arg7: memref<1x32xf32, #tpu.memory_space<vmem>>, %arg8: memref<9x16x16xbf16, #tpu.memory_space<vmem>>, %arg9: memref<9x32x32xbf16, #tpu.memory_space<vmem>>, %arg10: memref<1x32xf32, #tpu.memory_space<vmem>>, %arg11: memref<32x32xbf16, #tpu.memory_space<vmem>>, %arg12: memref<1x32xf32, #tpu.memory_space<vmem>>, %arg13: memref<32x128xbf16, #tpu.memory_space<vmem>>, %arg14: memref<1x128xf32, #tpu.memory_space<vmem>>, %arg15: memref<1x128xf32, #tpu.memory_space<vmem>>, %arg16: memref<1x16x128xf32, #tpu.memory_space<vmem>>) attributes {dimension_semantics = [#tpu.dimension_semantics<parallel>], iteration_bounds = array<i64: 2>, scalar_prefetch = 0 : i64, scratch_operands = 0 : i64, tpu.core_type = #tpu.core_type<tc>, window_params = [{transform_indices = @transform_0, window_bounds = array<i64: 1, 256, 3>}, {pipeline_mode = #tpu.pipeline_mode<synchronous>, transform_indices = @transform_1, window_bounds = array<i64: 9, 64, 256>}, {pipeline_mode = #tpu.pipeline_mode<synchronous>, transform_indices = @transform_2, window_bounds = array<i64: 9, 3, 16>}, {pipeline_mode = #tpu.pipeline_mode<synchronous>, transform_indices = @transform_3, window_bounds = array<i64: 1, 16>}, {pipeline_mode = #tpu.pipeline_mode<synchronous>, transform_indices = @transform_4, window_bounds = array<i64: 9, 16, 64>}, {pipeline_mode = #tpu.pipeline_mode<synchronous>, transform_indices = @transform_5, window_bounds = array<i64: 9, 16, 32>}, {pipeline_mode = #tpu.pipeline_mode<synchronous>, transform_indices = @transform_6, window_bounds = array<i64: 1, 32>}, {pipeline_mode = #tpu.pipeline_mode<synchronous>, transform_indices = @transform_7, window_bounds = array<i64: 9, 16, 16>}, {pipeline_mode = #tpu.pipeline_mode<synchronous>, transform_indices = @transform_8, window_bounds = array<i64: 9, 32, 32>}, {pipeline_mode = #tpu.pipeline_mode<synchronous>, transform_indices = @transform_9, window_bounds = array<i64: 1, 32>}, {pipeline_mode = #tpu.pipeline_mode<synchronous>, transform_indices = @transform_10, window_bounds = array<i64: 32, 32>}, {pipeline_mode = #tpu.pipeline_mode<synchronous>, transform_indices = @transform_11, window_bounds = array<i64: 1, 32>}, {pipeline_mode = #tpu.pipeline_mode<synchronous>, transform_indices = @transform_12, window_bounds = array<i64: 32, 128>}, {pipeline_mode = #tpu.pipeline_mode<synchronous>, transform_indices = @transform_13, window_bounds = array<i64: 1, 128>}, {pipeline_mode = #tpu.pipeline_mode<synchronous>, transform_indices = @transform_14, window_bounds = array<i64: 1, 128>}, {transform_indices = @transform_15, window_bounds = array<i64: 1, 16, 128>}]} {
    %c0 = arith.constant 0 : index
    %c0_0 = arith.constant 0 : index
    %c0_1 = arith.constant 0 : index
    %0 = vector.load %arg1[%c0, %c0_0, %c0_1] : memref<1x256x3xbf16, #tpu.memory_space<vmem>>, vector<1x256x3xbf16>
    %1 = vector.shape_cast %0 : vector<1x256x3xbf16> to vector<256x3xbf16>
    %cst = arith.constant 0.000000e+00 : f32
    %2 = vector.broadcast %cst : f32 to vector<64x16xf32>
    %c0_2 = arith.constant 0 : index
    %c0_3 = arith.constant 0 : index
    %c0_4 = arith.constant 0 : index
    %3 = vector.load %arg2[%c0_2, %c0_3, %c0_4] : memref<9x64x256xbf16, #tpu.memory_space<vmem>>, vector<1x64x256xbf16>
    %4 = vector.shape_cast %3 : vector<1x64x256xbf16> to vector<64x256xbf16>
    %cst_5 = arith.constant dense<0.000000e+00> : vector<64x3xf32>
    %5 = tpu.matmul %4, %1, %cst_5 {dimension_numbers = #tpu.dot_dimension_numbers<[1], [0], [0], [1], [0, 0, 1, 1], [], []>} : vector<64x256xbf16>, vector<256x3xbf16>, vector<64x3xf32> -> vector<64x3xf32>
    %6 = arith.truncf %5 : vector<64x3xf32> to vector<64x3xbf16>
    %c0_6 = arith.constant 0 : index
    %c0_7 = arith.constant 0 : index
    %c0_8 = arith.constant 0 : index
    %7 = vector.load %arg3[%c0_6, %c0_7, %c0_8] : memref<9x3x16xbf16, #tpu.memory_space<vmem>>, vector<1x3x16xbf16>
    %8 = vector.shape_cast %7 : vector<1x3x16xbf16> to vector<3x16xbf16>
    %cst_9 = arith.constant dense<0.000000e+00> : vector<64x16xf32>
    %9 = tpu.matmul %6, %8, %cst_9 {dimension_numbers = #tpu.dot_dimension_numbers<[1], [0], [0], [1], [0, 0, 1, 1], [], []>} : vector<64x3xbf16>, vector<3x16xbf16>, vector<64x16xf32> -> vector<64x16xf32>
    %10 = arith.addf %2, %9 : vector<64x16xf32>
    %c1 = arith.constant 1 : index
    %c0_10 = arith.constant 0 : index
    %c0_11 = arith.constant 0 : index
    %11 = vector.load %arg2[%c1, %c0_10, %c0_11] : memref<9x64x256xbf16, #tpu.memory_space<vmem>>, vector<1x64x256xbf16>
    %12 = vector.shape_cast %11 : vector<1x64x256xbf16> to vector<64x256xbf16>
    %cst_12 = arith.constant dense<0.000000e+00> : vector<64x3xf32>
    %13 = tpu.matmul %12, %1, %cst_12 {dimension_numbers = #tpu.dot_dimension_numbers<[1], [0], [0], [1], [0, 0, 1, 1], [], []>} : vector<64x256xbf16>, vector<256x3xbf16>, vector<64x3xf32> -> vector<64x3xf32>
    %14 = arith.truncf %13 : vector<64x3xf32> to vector<64x3xbf16>
    %c1_13 = arith.constant 1 : index
    %c0_14 = arith.constant 0 : index
    %c0_15 = arith.constant 0 : index
    %15 = vector.load %arg3[%c1_13, %c0_14, %c0_15] : memref<9x3x16xbf16, #tpu.memory_space<vmem>>, vector<1x3x16xbf16>
    %16 = vector.shape_cast %15 : vector<1x3x16xbf16> to vector<3x16xbf16>
    %cst_16 = arith.constant dense<0.000000e+00> : vector<64x16xf32>
    %17 = tpu.matmul %14, %16, %cst_16 {dimension_numbers = #tpu.dot_dimension_numbers<[1], [0], [0], [1], [0, 0, 1, 1], [], []>} : vector<64x3xbf16>, vector<3x16xbf16>, vector<64x16xf32> -> vector<64x16xf32>
    %18 = arith.addf %10, %17 : vector<64x16xf32>
    %c2 = arith.constant 2 : index
    %c0_17 = arith.constant 0 : index
    %c0_18 = arith.constant 0 : index
    %19 = vector.load %arg2[%c2, %c0_17, %c0_18] : memref<9x64x256xbf16, #tpu.memory_space<vmem>>, vector<1x64x256xbf16>
    %20 = vector.shape_cast %19 : vector<1x64x256xbf16> to vector<64x256xbf16>
    %cst_19 = arith.constant dense<0.000000e+00> : vector<64x3xf32>
    %21 = tpu.matmul %20, %1, %cst_19 {dimension_numbers = #tpu.dot_dimension_numbers<[1], [0], [0], [1], [0, 0, 1, 1], [], []>} : vector<64x256xbf16>, vector<256x3xbf16>, vector<64x3xf32> -> vector<64x3xf32>
    %22 = arith.truncf %21 : vector<64x3xf32> to vector<64x3xbf16>
    %c2_20 = arith.constant 2 : index
    %c0_21 = arith.constant 0 : index
    %c0_22 = arith.constant 0 : index
    %23 = vector.load %arg3[%c2_20, %c0_21, %c0_22] : memref<9x3x16xbf16, #tpu.memory_space<vmem>>, vector<1x3x16xbf16>
    %24 = vector.shape_cast %23 : vector<1x3x16xbf16> to vector<3x16xbf16>
    %cst_23 = arith.constant dense<0.000000e+00> : vector<64x16xf32>
    %25 = tpu.matmul %22, %24, %cst_23 {dimension_numbers = #tpu.dot_dimension_numbers<[1], [0], [0], [1], [0, 0, 1, 1], [], []>} : vector<64x3xbf16>, vector<3x16xbf16>, vector<64x16xf32> -> vector<64x16xf32>
    %26 = arith.addf %18, %25 : vector<64x16xf32>
    %c3 = arith.constant 3 : index
    %c0_24 = arith.constant 0 : index
    %c0_25 = arith.constant 0 : index
    %27 = vector.load %arg2[%c3, %c0_24, %c0_25] : memref<9x64x256xbf16, #tpu.memory_space<vmem>>, vector<1x64x256xbf16>
    %28 = vector.shape_cast %27 : vector<1x64x256xbf16> to vector<64x256xbf16>
    %cst_26 = arith.constant dense<0.000000e+00> : vector<64x3xf32>
    %29 = tpu.matmul %28, %1, %cst_26 {dimension_numbers = #tpu.dot_dimension_numbers<[1], [0], [0], [1], [0, 0, 1, 1], [], []>} : vector<64x256xbf16>, vector<256x3xbf16>, vector<64x3xf32> -> vector<64x3xf32>
    %30 = arith.truncf %29 : vector<64x3xf32> to vector<64x3xbf16>
    %c3_27 = arith.constant 3 : index
    %c0_28 = arith.constant 0 : index
    %c0_29 = arith.constant 0 : index
    %31 = vector.load %arg3[%c3_27, %c0_28, %c0_29] : memref<9x3x16xbf16, #tpu.memory_space<vmem>>, vector<1x3x16xbf16>
    %32 = vector.shape_cast %31 : vector<1x3x16xbf16> to vector<3x16xbf16>
    %cst_30 = arith.constant dense<0.000000e+00> : vector<64x16xf32>
    %33 = tpu.matmul %30, %32, %cst_30 {dimension_numbers = #tpu.dot_dimension_numbers<[1], [0], [0], [1], [0, 0, 1, 1], [], []>} : vector<64x3xbf16>, vector<3x16xbf16>, vector<64x16xf32> -> vector<64x16xf32>
    %34 = arith.addf %26, %33 : vector<64x16xf32>
    %c4 = arith.constant 4 : index
    %c0_31 = arith.constant 0 : index
    %c0_32 = arith.constant 0 : index
    %35 = vector.load %arg2[%c4, %c0_31, %c0_32] : memref<9x64x256xbf16, #tpu.memory_space<vmem>>, vector<1x64x256xbf16>
    %36 = vector.shape_cast %35 : vector<1x64x256xbf16> to vector<64x256xbf16>
    %cst_33 = arith.constant dense<0.000000e+00> : vector<64x3xf32>
    %37 = tpu.matmul %36, %1, %cst_33 {dimension_numbers = #tpu.dot_dimension_numbers<[1], [0], [0], [1], [0, 0, 1, 1], [], []>} : vector<64x256xbf16>, vector<256x3xbf16>, vector<64x3xf32> -> vector<64x3xf32>
    %38 = arith.truncf %37 : vector<64x3xf32> to vector<64x3xbf16>
    %c4_34 = arith.constant 4 : index
    %c0_35 = arith.constant 0 : index
    %c0_36 = arith.constant 0 : index
    %39 = vector.load %arg3[%c4_34, %c0_35, %c0_36] : memref<9x3x16xbf16, #tpu.memory_space<vmem>>, vector<1x3x16xbf16>
    %40 = vector.shape_cast %39 : vector<1x3x16xbf16> to vector<3x16xbf16>
    %cst_37 = arith.constant dense<0.000000e+00> : vector<64x16xf32>
    %41 = tpu.matmul %38, %40, %cst_37 {dimension_numbers = #tpu.dot_dimension_numbers<[1], [0], [0], [1], [0, 0, 1, 1], [], []>} : vector<64x3xbf16>, vector<3x16xbf16>, vector<64x16xf32> -> vector<64x16xf32>
    %42 = arith.addf %34, %41 : vector<64x16xf32>
    %c5 = arith.constant 5 : index
    %c0_38 = arith.constant 0 : index
    %c0_39 = arith.constant 0 : index
    %43 = vector.load %arg2[%c5, %c0_38, %c0_39] : memref<9x64x256xbf16, #tpu.memory_space<vmem>>, vector<1x64x256xbf16>
    %44 = vector.shape_cast %43 : vector<1x64x256xbf16> to vector<64x256xbf16>
    %cst_40 = arith.constant dense<0.000000e+00> : vector<64x3xf32>
    %45 = tpu.matmul %44, %1, %cst_40 {dimension_numbers = #tpu.dot_dimension_numbers<[1], [0], [0], [1], [0, 0, 1, 1], [], []>} : vector<64x256xbf16>, vector<256x3xbf16>, vector<64x3xf32> -> vector<64x3xf32>
    %46 = arith.truncf %45 : vector<64x3xf32> to vector<64x3xbf16>
    %c5_41 = arith.constant 5 : index
    %c0_42 = arith.constant 0 : index
    %c0_43 = arith.constant 0 : index
    %47 = vector.load %arg3[%c5_41, %c0_42, %c0_43] : memref<9x3x16xbf16, #tpu.memory_space<vmem>>, vector<1x3x16xbf16>
    %48 = vector.shape_cast %47 : vector<1x3x16xbf16> to vector<3x16xbf16>
    %cst_44 = arith.constant dense<0.000000e+00> : vector<64x16xf32>
    %49 = tpu.matmul %46, %48, %cst_44 {dimension_numbers = #tpu.dot_dimension_numbers<[1], [0], [0], [1], [0, 0, 1, 1], [], []>} : vector<64x3xbf16>, vector<3x16xbf16>, vector<64x16xf32> -> vector<64x16xf32>
    %50 = arith.addf %42, %49 : vector<64x16xf32>
    %c6 = arith.constant 6 : index
    %c0_45 = arith.constant 0 : index
    %c0_46 = arith.constant 0 : index
    %51 = vector.load %arg2[%c6, %c0_45, %c0_46] : memref<9x64x256xbf16, #tpu.memory_space<vmem>>, vector<1x64x256xbf16>
    %52 = vector.shape_cast %51 : vector<1x64x256xbf16> to vector<64x256xbf16>
    %cst_47 = arith.constant dense<0.000000e+00> : vector<64x3xf32>
    %53 = tpu.matmul %52, %1, %cst_47 {dimension_numbers = #tpu.dot_dimension_numbers<[1], [0], [0], [1], [0, 0, 1, 1], [], []>} : vector<64x256xbf16>, vector<256x3xbf16>, vector<64x3xf32> -> vector<64x3xf32>
    %54 = arith.truncf %53 : vector<64x3xf32> to vector<64x3xbf16>
    %c6_48 = arith.constant 6 : index
    %c0_49 = arith.constant 0 : index
    %c0_50 = arith.constant 0 : index
    %55 = vector.load %arg3[%c6_48, %c0_49, %c0_50] : memref<9x3x16xbf16, #tpu.memory_space<vmem>>, vector<1x3x16xbf16>
    %56 = vector.shape_cast %55 : vector<1x3x16xbf16> to vector<3x16xbf16>
    %cst_51 = arith.constant dense<0.000000e+00> : vector<64x16xf32>
    %57 = tpu.matmul %54, %56, %cst_51 {dimension_numbers = #tpu.dot_dimension_numbers<[1], [0], [0], [1], [0, 0, 1, 1], [], []>} : vector<64x3xbf16>, vector<3x16xbf16>, vector<64x16xf32> -> vector<64x16xf32>
    %58 = arith.addf %50, %57 : vector<64x16xf32>
    %c7 = arith.constant 7 : index
    %c0_52 = arith.constant 0 : index
    %c0_53 = arith.constant 0 : index
    %59 = vector.load %arg2[%c7, %c0_52, %c0_53] : memref<9x64x256xbf16, #tpu.memory_space<vmem>>, vector<1x64x256xbf16>
    %60 = vector.shape_cast %59 : vector<1x64x256xbf16> to vector<64x256xbf16>
    %cst_54 = arith.constant dense<0.000000e+00> : vector<64x3xf32>
    %61 = tpu.matmul %60, %1, %cst_54 {dimension_numbers = #tpu.dot_dimension_numbers<[1], [0], [0], [1], [0, 0, 1, 1], [], []>} : vector<64x256xbf16>, vector<256x3xbf16>, vector<64x3xf32> -> vector<64x3xf32>
    %62 = arith.truncf %61 : vector<64x3xf32> to vector<64x3xbf16>
    %c7_55 = arith.constant 7 : index
    %c0_56 = arith.constant 0 : index
    %c0_57 = arith.constant 0 : index
    %63 = vector.load %arg3[%c7_55, %c0_56, %c0_57] : memref<9x3x16xbf16, #tpu.memory_space<vmem>>, vector<1x3x16xbf16>
    %64 = vector.shape_cast %63 : vector<1x3x16xbf16> to vector<3x16xbf16>
    %cst_58 = arith.constant dense<0.000000e+00> : vector<64x16xf32>
    %65 = tpu.matmul %62, %64, %cst_58 {dimension_numbers = #tpu.dot_dimension_numbers<[1], [0], [0], [1], [0, 0, 1, 1], [], []>} : vector<64x3xbf16>, vector<3x16xbf16>, vector<64x16xf32> -> vector<64x16xf32>
    %66 = arith.addf %58, %65 : vector<64x16xf32>
    %c8 = arith.constant 8 : index
    %c0_59 = arith.constant 0 : index
    %c0_60 = arith.constant 0 : index
    %67 = vector.load %arg2[%c8, %c0_59, %c0_60] : memref<9x64x256xbf16, #tpu.memory_space<vmem>>, vector<1x64x256xbf16>
    %68 = vector.shape_cast %67 : vector<1x64x256xbf16> to vector<64x256xbf16>
    %cst_61 = arith.constant dense<0.000000e+00> : vector<64x3xf32>
    %69 = tpu.matmul %68, %1, %cst_61 {dimension_numbers = #tpu.dot_dimension_numbers<[1], [0], [0], [1], [0, 0, 1, 1], [], []>} : vector<64x256xbf16>, vector<256x3xbf16>, vector<64x3xf32> -> vector<64x3xf32>
    %70 = arith.truncf %69 : vector<64x3xf32> to vector<64x3xbf16>
    %c8_62 = arith.constant 8 : index
    %c0_63 = arith.constant 0 : index
    %c0_64 = arith.constant 0 : index
    %71 = vector.load %arg3[%c8_62, %c0_63, %c0_64] : memref<9x3x16xbf16, #tpu.memory_space<vmem>>, vector<1x3x16xbf16>
    %72 = vector.shape_cast %71 : vector<1x3x16xbf16> to vector<3x16xbf16>
    %cst_65 = arith.constant dense<0.000000e+00> : vector<64x16xf32>
    %73 = tpu.matmul %70, %72, %cst_65 {dimension_numbers = #tpu.dot_dimension_numbers<[1], [0], [0], [1], [0, 0, 1, 1], [], []>} : vector<64x3xbf16>, vector<3x16xbf16>, vector<64x16xf32> -> vector<64x16xf32>
    %74 = arith.addf %66, %73 : vector<64x16xf32>
    %c0_66 = arith.constant 0 : index
    %c0_67 = arith.constant 0 : index
    %75 = vector.load %arg4[%c0_66, %c0_67] : memref<1x16xf32, #tpu.memory_space<vmem>>, vector<1x16xf32>
    %76 = vector.broadcast %75 : vector<1x16xf32> to vector<64x16xf32>
    %77 = arith.addf %74, %76 : vector<64x16xf32>
    %cst_68 = arith.constant 0.000000e+00 : f32
    %78 = vector.broadcast %cst_68 : f32 to vector<64x16xf32>
    %79 = arith.subf %78, %77 : vector<64x16xf32>
    %80 = math.exp %79 : vector<64x16xf32>
    %cst_69 = arith.constant 1.000000e+00 : f32
    %81 = vector.broadcast %cst_69 : f32 to vector<64x16xf32>
    %82 = arith.addf %81, %80 : vector<64x16xf32>
    %83 = arith.divf %77, %82 : vector<64x16xf32>
    %84 = arith.truncf %83 : vector<64x16xf32> to vector<64x16xbf16>
    %cst_70 = arith.constant 0.000000e+00 : f32
    %85 = vector.broadcast %cst_70 : f32 to vector<16x32xf32>
    %c0_71 = arith.constant 0 : index
    %c0_72 = arith.constant 0 : index
    %c0_73 = arith.constant 0 : index
    %86 = vector.load %arg5[%c0_71, %c0_72, %c0_73] : memref<9x16x64xbf16, #tpu.memory_space<vmem>>, vector<1x16x64xbf16>
    %87 = vector.shape_cast %86 : vector<1x16x64xbf16> to vector<16x64xbf16>
    %cst_74 = arith.constant dense<0.000000e+00> : vector<16x16xf32>
    %88 = tpu.matmul %87, %84, %cst_74 {dimension_numbers = #tpu.dot_dimension_numbers<[1], [0], [0], [1], [0, 0, 1, 1], [], []>} : vector<16x64xbf16>, vector<64x16xbf16>, vector<16x16xf32> -> vector<16x16xf32>
    %89 = arith.truncf %88 : vector<16x16xf32> to vector<16x16xbf16>
    %c0_75 = arith.constant 0 : index
    %c0_76 = arith.constant 0 : index
    %c0_77 = arith.constant 0 : index
    %90 = vector.load %arg6[%c0_75, %c0_76, %c0_77] : memref<9x16x32xbf16, #tpu.memory_space<vmem>>, vector<1x16x32xbf16>
    %91 = vector.shape_cast %90 : vector<1x16x32xbf16> to vector<16x32xbf16>
    %cst_78 = arith.constant dense<0.000000e+00> : vector<16x32xf32>
    %92 = tpu.matmul %89, %91, %cst_78 {dimension_numbers = #tpu.dot_dimension_numbers<[1], [0], [0], [1], [0, 0, 1, 1], [], []>} : vector<16x16xbf16>, vector<16x32xbf16>, vector<16x32xf32> -> vector<16x32xf32>
    %93 = arith.addf %85, %92 : vector<16x32xf32>
    %c1_79 = arith.constant 1 : index
    %c0_80 = arith.constant 0 : index
    %c0_81 = arith.constant 0 : index
    %94 = vector.load %arg5[%c1_79, %c0_80, %c0_81] : memref<9x16x64xbf16, #tpu.memory_space<vmem>>, vector<1x16x64xbf16>
    %95 = vector.shape_cast %94 : vector<1x16x64xbf16> to vector<16x64xbf16>
    %cst_82 = arith.constant dense<0.000000e+00> : vector<16x16xf32>
    %96 = tpu.matmul %95, %84, %cst_82 {dimension_numbers = #tpu.dot_dimension_numbers<[1], [0], [0], [1], [0, 0, 1, 1], [], []>} : vector<16x64xbf16>, vector<64x16xbf16>, vector<16x16xf32> -> vector<16x16xf32>
    %97 = arith.truncf %96 : vector<16x16xf32> to vector<16x16xbf16>
    %c1_83 = arith.constant 1 : index
    %c0_84 = arith.constant 0 : index
    %c0_85 = arith.constant 0 : index
    %98 = vector.load %arg6[%c1_83, %c0_84, %c0_85] : memref<9x16x32xbf16, #tpu.memory_space<vmem>>, vector<1x16x32xbf16>
    %99 = vector.shape_cast %98 : vector<1x16x32xbf16> to vector<16x32xbf16>
    %cst_86 = arith.constant dense<0.000000e+00> : vector<16x32xf32>
    %100 = tpu.matmul %97, %99, %cst_86 {dimension_numbers = #tpu.dot_dimension_numbers<[1], [0], [0], [1], [0, 0, 1, 1], [], []>} : vector<16x16xbf16>, vector<16x32xbf16>, vector<16x32xf32> -> vector<16x32xf32>
    %101 = arith.addf %93, %100 : vector<16x32xf32>
    %c2_87 = arith.constant 2 : index
    %c0_88 = arith.constant 0 : index
    %c0_89 = arith.constant 0 : index
    %102 = vector.load %arg5[%c2_87, %c0_88, %c0_89] : memref<9x16x64xbf16, #tpu.memory_space<vmem>>, vector<1x16x64xbf16>
    %103 = vector.shape_cast %102 : vector<1x16x64xbf16> to vector<16x64xbf16>
    %cst_90 = arith.constant dense<0.000000e+00> : vector<16x16xf32>
    %104 = tpu.matmul %103, %84, %cst_90 {dimension_numbers = #tpu.dot_dimension_numbers<[1], [0], [0], [1], [0, 0, 1, 1], [], []>} : vector<16x64xbf16>, vector<64x16xbf16>, vector<16x16xf32> -> vector<16x16xf32>
    %105 = arith.truncf %104 : vector<16x16xf32> to vector<16x16xbf16>
    %c2_91 = arith.constant 2 : index
    %c0_92 = arith.constant 0 : index
    %c0_93 = arith.constant 0 : index
    %106 = vector.load %arg6[%c2_91, %c0_92, %c0_93] : memref<9x16x32xbf16, #tpu.memory_space<vmem>>, vector<1x16x32xbf16>
    %107 = vector.shape_cast %106 : vector<1x16x32xbf16> to vector<16x32xbf16>
    %cst_94 = arith.constant dense<0.000000e+00> : vector<16x32xf32>
    %108 = tpu.matmul %105, %107, %cst_94 {dimension_numbers = #tpu.dot_dimension_numbers<[1], [0], [0], [1], [0, 0, 1, 1], [], []>} : vector<16x16xbf16>, vector<16x32xbf16>, vector<16x32xf32> -> vector<16x32xf32>
    %109 = arith.addf %101, %108 : vector<16x32xf32>
    %c3_95 = arith.constant 3 : index
    %c0_96 = arith.constant 0 : index
    %c0_97 = arith.constant 0 : index
    %110 = vector.load %arg5[%c3_95, %c0_96, %c0_97] : memref<9x16x64xbf16, #tpu.memory_space<vmem>>, vector<1x16x64xbf16>
    %111 = vector.shape_cast %110 : vector<1x16x64xbf16> to vector<16x64xbf16>
    %cst_98 = arith.constant dense<0.000000e+00> : vector<16x16xf32>
    %112 = tpu.matmul %111, %84, %cst_98 {dimension_numbers = #tpu.dot_dimension_numbers<[1], [0], [0], [1], [0, 0, 1, 1], [], []>} : vector<16x64xbf16>, vector<64x16xbf16>, vector<16x16xf32> -> vector<16x16xf32>
    %113 = arith.truncf %112 : vector<16x16xf32> to vector<16x16xbf16>
    %c3_99 = arith.constant 3 : index
    %c0_100 = arith.constant 0 : index
    %c0_101 = arith.constant 0 : index
    %114 = vector.load %arg6[%c3_99, %c0_100, %c0_101] : memref<9x16x32xbf16, #tpu.memory_space<vmem>>, vector<1x16x32xbf16>
    %115 = vector.shape_cast %114 : vector<1x16x32xbf16> to vector<16x32xbf16>
    %cst_102 = arith.constant dense<0.000000e+00> : vector<16x32xf32>
    %116 = tpu.matmul %113, %115, %cst_102 {dimension_numbers = #tpu.dot_dimension_numbers<[1], [0], [0], [1], [0, 0, 1, 1], [], []>} : vector<16x16xbf16>, vector<16x32xbf16>, vector<16x32xf32> -> vector<16x32xf32>
    %117 = arith.addf %109, %116 : vector<16x32xf32>
    %c4_103 = arith.constant 4 : index
    %c0_104 = arith.constant 0 : index
    %c0_105 = arith.constant 0 : index
    %118 = vector.load %arg5[%c4_103, %c0_104, %c0_105] : memref<9x16x64xbf16, #tpu.memory_space<vmem>>, vector<1x16x64xbf16>
    %119 = vector.shape_cast %118 : vector<1x16x64xbf16> to vector<16x64xbf16>
    %cst_106 = arith.constant dense<0.000000e+00> : vector<16x16xf32>
    %120 = tpu.matmul %119, %84, %cst_106 {dimension_numbers = #tpu.dot_dimension_numbers<[1], [0], [0], [1], [0, 0, 1, 1], [], []>} : vector<16x64xbf16>, vector<64x16xbf16>, vector<16x16xf32> -> vector<16x16xf32>
    %121 = arith.truncf %120 : vector<16x16xf32> to vector<16x16xbf16>
    %c4_107 = arith.constant 4 : index
    %c0_108 = arith.constant 0 : index
    %c0_109 = arith.constant 0 : index
    %122 = vector.load %arg6[%c4_107, %c0_108, %c0_109] : memref<9x16x32xbf16, #tpu.memory_space<vmem>>, vector<1x16x32xbf16>
    %123 = vector.shape_cast %122 : vector<1x16x32xbf16> to vector<16x32xbf16>
    %cst_110 = arith.constant dense<0.000000e+00> : vector<16x32xf32>
    %124 = tpu.matmul %121, %123, %cst_110 {dimension_numbers = #tpu.dot_dimension_numbers<[1], [0], [0], [1], [0, 0, 1, 1], [], []>} : vector<16x16xbf16>, vector<16x32xbf16>, vector<16x32xf32> -> vector<16x32xf32>
    %125 = arith.addf %117, %124 : vector<16x32xf32>
    %c5_111 = arith.constant 5 : index
    %c0_112 = arith.constant 0 : index
    %c0_113 = arith.constant 0 : index
    %126 = vector.load %arg5[%c5_111, %c0_112, %c0_113] : memref<9x16x64xbf16, #tpu.memory_space<vmem>>, vector<1x16x64xbf16>
    %127 = vector.shape_cast %126 : vector<1x16x64xbf16> to vector<16x64xbf16>
    %cst_114 = arith.constant dense<0.000000e+00> : vector<16x16xf32>
    %128 = tpu.matmul %127, %84, %cst_114 {dimension_numbers = #tpu.dot_dimension_numbers<[1], [0], [0], [1], [0, 0, 1, 1], [], []>} : vector<16x64xbf16>, vector<64x16xbf16>, vector<16x16xf32> -> vector<16x16xf32>
    %129 = arith.truncf %128 : vector<16x16xf32> to vector<16x16xbf16>
    %c5_115 = arith.constant 5 : index
    %c0_116 = arith.constant 0 : index
    %c0_117 = arith.constant 0 : index
    %130 = vector.load %arg6[%c5_115, %c0_116, %c0_117] : memref<9x16x32xbf16, #tpu.memory_space<vmem>>, vector<1x16x32xbf16>
    %131 = vector.shape_cast %130 : vector<1x16x32xbf16> to vector<16x32xbf16>
    %cst_118 = arith.constant dense<0.000000e+00> : vector<16x32xf32>
    %132 = tpu.matmul %129, %131, %cst_118 {dimension_numbers = #tpu.dot_dimension_numbers<[1], [0], [0], [1], [0, 0, 1, 1], [], []>} : vector<16x16xbf16>, vector<16x32xbf16>, vector<16x32xf32> -> vector<16x32xf32>
    %133 = arith.addf %125, %132 : vector<16x32xf32>
    %c6_119 = arith.constant 6 : index
    %c0_120 = arith.constant 0 : index
    %c0_121 = arith.constant 0 : index
    %134 = vector.load %arg5[%c6_119, %c0_120, %c0_121] : memref<9x16x64xbf16, #tpu.memory_space<vmem>>, vector<1x16x64xbf16>
    %135 = vector.shape_cast %134 : vector<1x16x64xbf16> to vector<16x64xbf16>
    %cst_122 = arith.constant dense<0.000000e+00> : vector<16x16xf32>
    %136 = tpu.matmul %135, %84, %cst_122 {dimension_numbers = #tpu.dot_dimension_numbers<[1], [0], [0], [1], [0, 0, 1, 1], [], []>} : vector<16x64xbf16>, vector<64x16xbf16>, vector<16x16xf32> -> vector<16x16xf32>
    %137 = arith.truncf %136 : vector<16x16xf32> to vector<16x16xbf16>
    %c6_123 = arith.constant 6 : index
    %c0_124 = arith.constant 0 : index
    %c0_125 = arith.constant 0 : index
    %138 = vector.load %arg6[%c6_123, %c0_124, %c0_125] : memref<9x16x32xbf16, #tpu.memory_space<vmem>>, vector<1x16x32xbf16>
    %139 = vector.shape_cast %138 : vector<1x16x32xbf16> to vector<16x32xbf16>
    %cst_126 = arith.constant dense<0.000000e+00> : vector<16x32xf32>
    %140 = tpu.matmul %137, %139, %cst_126 {dimension_numbers = #tpu.dot_dimension_numbers<[1], [0], [0], [1], [0, 0, 1, 1], [], []>} : vector<16x16xbf16>, vector<16x32xbf16>, vector<16x32xf32> -> vector<16x32xf32>
    %141 = arith.addf %133, %140 : vector<16x32xf32>
    %c7_127 = arith.constant 7 : index
    %c0_128 = arith.constant 0 : index
    %c0_129 = arith.constant 0 : index
    %142 = vector.load %arg5[%c7_127, %c0_128, %c0_129] : memref<9x16x64xbf16, #tpu.memory_space<vmem>>, vector<1x16x64xbf16>
    %143 = vector.shape_cast %142 : vector<1x16x64xbf16> to vector<16x64xbf16>
    %cst_130 = arith.constant dense<0.000000e+00> : vector<16x16xf32>
    %144 = tpu.matmul %143, %84, %cst_130 {dimension_numbers = #tpu.dot_dimension_numbers<[1], [0], [0], [1], [0, 0, 1, 1], [], []>} : vector<16x64xbf16>, vector<64x16xbf16>, vector<16x16xf32> -> vector<16x16xf32>
    %145 = arith.truncf %144 : vector<16x16xf32> to vector<16x16xbf16>
    %c7_131 = arith.constant 7 : index
    %c0_132 = arith.constant 0 : index
    %c0_133 = arith.constant 0 : index
    %146 = vector.load %arg6[%c7_131, %c0_132, %c0_133] : memref<9x16x32xbf16, #tpu.memory_space<vmem>>, vector<1x16x32xbf16>
    %147 = vector.shape_cast %146 : vector<1x16x32xbf16> to vector<16x32xbf16>
    %cst_134 = arith.constant dense<0.000000e+00> : vector<16x32xf32>
    %148 = tpu.matmul %145, %147, %cst_134 {dimension_numbers = #tpu.dot_dimension_numbers<[1], [0], [0], [1], [0, 0, 1, 1], [], []>} : vector<16x16xbf16>, vector<16x32xbf16>, vector<16x32xf32> -> vector<16x32xf32>
    %149 = arith.addf %141, %148 : vector<16x32xf32>
    %c8_135 = arith.constant 8 : index
    %c0_136 = arith.constant 0 : index
    %c0_137 = arith.constant 0 : index
    %150 = vector.load %arg5[%c8_135, %c0_136, %c0_137] : memref<9x16x64xbf16, #tpu.memory_space<vmem>>, vector<1x16x64xbf16>
    %151 = vector.shape_cast %150 : vector<1x16x64xbf16> to vector<16x64xbf16>
    %cst_138 = arith.constant dense<0.000000e+00> : vector<16x16xf32>
    %152 = tpu.matmul %151, %84, %cst_138 {dimension_numbers = #tpu.dot_dimension_numbers<[1], [0], [0], [1], [0, 0, 1, 1], [], []>} : vector<16x64xbf16>, vector<64x16xbf16>, vector<16x16xf32> -> vector<16x16xf32>
    %153 = arith.truncf %152 : vector<16x16xf32> to vector<16x16xbf16>
    %c8_139 = arith.constant 8 : index
    %c0_140 = arith.constant 0 : index
    %c0_141 = arith.constant 0 : index
    %154 = vector.load %arg6[%c8_139, %c0_140, %c0_141] : memref<9x16x32xbf16, #tpu.memory_space<vmem>>, vector<1x16x32xbf16>
    %155 = vector.shape_cast %154 : vector<1x16x32xbf16> to vector<16x32xbf16>
    %cst_142 = arith.constant dense<0.000000e+00> : vector<16x32xf32>
    %156 = tpu.matmul %153, %155, %cst_142 {dimension_numbers = #tpu.dot_dimension_numbers<[1], [0], [0], [1], [0, 0, 1, 1], [], []>} : vector<16x16xbf16>, vector<16x32xbf16>, vector<16x32xf32> -> vector<16x32xf32>
    %157 = arith.addf %149, %156 : vector<16x32xf32>
    %c0_143 = arith.constant 0 : index
    %c0_144 = arith.constant 0 : index
    %158 = vector.load %arg7[%c0_143, %c0_144] : memref<1x32xf32, #tpu.memory_space<vmem>>, vector<1x32xf32>
    %159 = vector.broadcast %158 : vector<1x32xf32> to vector<16x32xf32>
    %160 = arith.addf %157, %159 : vector<16x32xf32>
    %cst_145 = arith.constant 0.000000e+00 : f32
    %161 = vector.broadcast %cst_145 : f32 to vector<16x32xf32>
    %162 = arith.subf %161, %160 : vector<16x32xf32>
    %163 = math.exp %162 : vector<16x32xf32>
    %cst_146 = arith.constant 1.000000e+00 : f32
    %164 = vector.broadcast %cst_146 : f32 to vector<16x32xf32>
    %165 = arith.addf %164, %163 : vector<16x32xf32>
    %166 = arith.divf %160, %165 : vector<16x32xf32>
    %167 = arith.truncf %166 : vector<16x32xf32> to vector<16x32xbf16>
    %cst_147 = arith.constant 0.000000e+00 : f32
    %168 = vector.broadcast %cst_147 : f32 to vector<16x32xf32>
    %c0_148 = arith.constant 0 : index
    %c0_149 = arith.constant 0 : index
    %c0_150 = arith.constant 0 : index
    %169 = vector.load %arg8[%c0_148, %c0_149, %c0_150] : memref<9x16x16xbf16, #tpu.memory_space<vmem>>, vector<1x16x16xbf16>
    %170 = vector.shape_cast %169 : vector<1x16x16xbf16> to vector<16x16xbf16>
    %cst_151 = arith.constant dense<0.000000e+00> : vector<16x32xf32>
    %171 = tpu.matmul %170, %167, %cst_151 {dimension_numbers = #tpu.dot_dimension_numbers<[1], [0], [0], [1], [0, 0, 1, 1], [], []>} : vector<16x16xbf16>, vector<16x32xbf16>, vector<16x32xf32> -> vector<16x32xf32>
    %172 = arith.truncf %171 : vector<16x32xf32> to vector<16x32xbf16>
    %c0_152 = arith.constant 0 : index
    %c0_153 = arith.constant 0 : index
    %c0_154 = arith.constant 0 : index
    %173 = vector.load %arg9[%c0_152, %c0_153, %c0_154] : memref<9x32x32xbf16, #tpu.memory_space<vmem>>, vector<1x32x32xbf16>
    %174 = vector.shape_cast %173 : vector<1x32x32xbf16> to vector<32x32xbf16>
    %cst_155 = arith.constant dense<0.000000e+00> : vector<16x32xf32>
    %175 = tpu.matmul %172, %174, %cst_155 {dimension_numbers = #tpu.dot_dimension_numbers<[1], [0], [0], [1], [0, 0, 1, 1], [], []>} : vector<16x32xbf16>, vector<32x32xbf16>, vector<16x32xf32> -> vector<16x32xf32>
    %176 = arith.addf %168, %175 : vector<16x32xf32>
    %c1_156 = arith.constant 1 : index
    %c0_157 = arith.constant 0 : index
    %c0_158 = arith.constant 0 : index
    %177 = vector.load %arg8[%c1_156, %c0_157, %c0_158] : memref<9x16x16xbf16, #tpu.memory_space<vmem>>, vector<1x16x16xbf16>
    %178 = vector.shape_cast %177 : vector<1x16x16xbf16> to vector<16x16xbf16>
    %cst_159 = arith.constant dense<0.000000e+00> : vector<16x32xf32>
    %179 = tpu.matmul %178, %167, %cst_159 {dimension_numbers = #tpu.dot_dimension_numbers<[1], [0], [0], [1], [0, 0, 1, 1], [], []>} : vector<16x16xbf16>, vector<16x32xbf16>, vector<16x32xf32> -> vector<16x32xf32>
    %180 = arith.truncf %179 : vector<16x32xf32> to vector<16x32xbf16>
    %c1_160 = arith.constant 1 : index
    %c0_161 = arith.constant 0 : index
    %c0_162 = arith.constant 0 : index
    %181 = vector.load %arg9[%c1_160, %c0_161, %c0_162] : memref<9x32x32xbf16, #tpu.memory_space<vmem>>, vector<1x32x32xbf16>
    %182 = vector.shape_cast %181 : vector<1x32x32xbf16> to vector<32x32xbf16>
    %cst_163 = arith.constant dense<0.000000e+00> : vector<16x32xf32>
    %183 = tpu.matmul %180, %182, %cst_163 {dimension_numbers = #tpu.dot_dimension_numbers<[1], [0], [0], [1], [0, 0, 1, 1], [], []>} : vector<16x32xbf16>, vector<32x32xbf16>, vector<16x32xf32> -> vector<16x32xf32>
    %184 = arith.addf %176, %183 : vector<16x32xf32>
    %c2_164 = arith.constant 2 : index
    %c0_165 = arith.constant 0 : index
    %c0_166 = arith.constant 0 : index
    %185 = vector.load %arg8[%c2_164, %c0_165, %c0_166] : memref<9x16x16xbf16, #tpu.memory_space<vmem>>, vector<1x16x16xbf16>
    %186 = vector.shape_cast %185 : vector<1x16x16xbf16> to vector<16x16xbf16>
    %cst_167 = arith.constant dense<0.000000e+00> : vector<16x32xf32>
    %187 = tpu.matmul %186, %167, %cst_167 {dimension_numbers = #tpu.dot_dimension_numbers<[1], [0], [0], [1], [0, 0, 1, 1], [], []>} : vector<16x16xbf16>, vector<16x32xbf16>, vector<16x32xf32> -> vector<16x32xf32>
    %188 = arith.truncf %187 : vector<16x32xf32> to vector<16x32xbf16>
    %c2_168 = arith.constant 2 : index
    %c0_169 = arith.constant 0 : index
    %c0_170 = arith.constant 0 : index
    %189 = vector.load %arg9[%c2_168, %c0_169, %c0_170] : memref<9x32x32xbf16, #tpu.memory_space<vmem>>, vector<1x32x32xbf16>
    %190 = vector.shape_cast %189 : vector<1x32x32xbf16> to vector<32x32xbf16>
    %cst_171 = arith.constant dense<0.000000e+00> : vector<16x32xf32>
    %191 = tpu.matmul %188, %190, %cst_171 {dimension_numbers = #tpu.dot_dimension_numbers<[1], [0], [0], [1], [0, 0, 1, 1], [], []>} : vector<16x32xbf16>, vector<32x32xbf16>, vector<16x32xf32> -> vector<16x32xf32>
    %192 = arith.addf %184, %191 : vector<16x32xf32>
    %c3_172 = arith.constant 3 : index
    %c0_173 = arith.constant 0 : index
    %c0_174 = arith.constant 0 : index
    %193 = vector.load %arg8[%c3_172, %c0_173, %c0_174] : memref<9x16x16xbf16, #tpu.memory_space<vmem>>, vector<1x16x16xbf16>
    %194 = vector.shape_cast %193 : vector<1x16x16xbf16> to vector<16x16xbf16>
    %cst_175 = arith.constant dense<0.000000e+00> : vector<16x32xf32>
    %195 = tpu.matmul %194, %167, %cst_175 {dimension_numbers = #tpu.dot_dimension_numbers<[1], [0], [0], [1], [0, 0, 1, 1], [], []>} : vector<16x16xbf16>, vector<16x32xbf16>, vector<16x32xf32> -> vector<16x32xf32>
    %196 = arith.truncf %195 : vector<16x32xf32> to vector<16x32xbf16>
    %c3_176 = arith.constant 3 : index
    %c0_177 = arith.constant 0 : index
    %c0_178 = arith.constant 0 : index
    %197 = vector.load %arg9[%c3_176, %c0_177, %c0_178] : memref<9x32x32xbf16, #tpu.memory_space<vmem>>, vector<1x32x32xbf16>
    %198 = vector.shape_cast %197 : vector<1x32x32xbf16> to vector<32x32xbf16>
    %cst_179 = arith.constant dense<0.000000e+00> : vector<16x32xf32>
    %199 = tpu.matmul %196, %198, %cst_179 {dimension_numbers = #tpu.dot_dimension_numbers<[1], [0], [0], [1], [0, 0, 1, 1], [], []>} : vector<16x32xbf16>, vector<32x32xbf16>, vector<16x32xf32> -> vector<16x32xf32>
    %200 = arith.addf %192, %199 : vector<16x32xf32>
    %c4_180 = arith.constant 4 : index
    %c0_181 = arith.constant 0 : index
    %c0_182 = arith.constant 0 : index
    %201 = vector.load %arg8[%c4_180, %c0_181, %c0_182] : memref<9x16x16xbf16, #tpu.memory_space<vmem>>, vector<1x16x16xbf16>
    %202 = vector.shape_cast %201 : vector<1x16x16xbf16> to vector<16x16xbf16>
    %cst_183 = arith.constant dense<0.000000e+00> : vector<16x32xf32>
    %203 = tpu.matmul %202, %167, %cst_183 {dimension_numbers = #tpu.dot_dimension_numbers<[1], [0], [0], [1], [0, 0, 1, 1], [], []>} : vector<16x16xbf16>, vector<16x32xbf16>, vector<16x32xf32> -> vector<16x32xf32>
    %204 = arith.truncf %203 : vector<16x32xf32> to vector<16x32xbf16>
    %c4_184 = arith.constant 4 : index
    %c0_185 = arith.constant 0 : index
    %c0_186 = arith.constant 0 : index
    %205 = vector.load %arg9[%c4_184, %c0_185, %c0_186] : memref<9x32x32xbf16, #tpu.memory_space<vmem>>, vector<1x32x32xbf16>
    %206 = vector.shape_cast %205 : vector<1x32x32xbf16> to vector<32x32xbf16>
    %cst_187 = arith.constant dense<0.000000e+00> : vector<16x32xf32>
    %207 = tpu.matmul %204, %206, %cst_187 {dimension_numbers = #tpu.dot_dimension_numbers<[1], [0], [0], [1], [0, 0, 1, 1], [], []>} : vector<16x32xbf16>, vector<32x32xbf16>, vector<16x32xf32> -> vector<16x32xf32>
    %208 = arith.addf %200, %207 : vector<16x32xf32>
    %c5_188 = arith.constant 5 : index
    %c0_189 = arith.constant 0 : index
    %c0_190 = arith.constant 0 : index
    %209 = vector.load %arg8[%c5_188, %c0_189, %c0_190] : memref<9x16x16xbf16, #tpu.memory_space<vmem>>, vector<1x16x16xbf16>
    %210 = vector.shape_cast %209 : vector<1x16x16xbf16> to vector<16x16xbf16>
    %cst_191 = arith.constant dense<0.000000e+00> : vector<16x32xf32>
    %211 = tpu.matmul %210, %167, %cst_191 {dimension_numbers = #tpu.dot_dimension_numbers<[1], [0], [0], [1], [0, 0, 1, 1], [], []>} : vector<16x16xbf16>, vector<16x32xbf16>, vector<16x32xf32> -> vector<16x32xf32>
    %212 = arith.truncf %211 : vector<16x32xf32> to vector<16x32xbf16>
    %c5_192 = arith.constant 5 : index
    %c0_193 = arith.constant 0 : index
    %c0_194 = arith.constant 0 : index
    %213 = vector.load %arg9[%c5_192, %c0_193, %c0_194] : memref<9x32x32xbf16, #tpu.memory_space<vmem>>, vector<1x32x32xbf16>
    %214 = vector.shape_cast %213 : vector<1x32x32xbf16> to vector<32x32xbf16>
    %cst_195 = arith.constant dense<0.000000e+00> : vector<16x32xf32>
    %215 = tpu.matmul %212, %214, %cst_195 {dimension_numbers = #tpu.dot_dimension_numbers<[1], [0], [0], [1], [0, 0, 1, 1], [], []>} : vector<16x32xbf16>, vector<32x32xbf16>, vector<16x32xf32> -> vector<16x32xf32>
    %216 = arith.addf %208, %215 : vector<16x32xf32>
    %c6_196 = arith.constant 6 : index
    %c0_197 = arith.constant 0 : index
    %c0_198 = arith.constant 0 : index
    %217 = vector.load %arg8[%c6_196, %c0_197, %c0_198] : memref<9x16x16xbf16, #tpu.memory_space<vmem>>, vector<1x16x16xbf16>
    %218 = vector.shape_cast %217 : vector<1x16x16xbf16> to vector<16x16xbf16>
    %cst_199 = arith.constant dense<0.000000e+00> : vector<16x32xf32>
    %219 = tpu.matmul %218, %167, %cst_199 {dimension_numbers = #tpu.dot_dimension_numbers<[1], [0], [0], [1], [0, 0, 1, 1], [], []>} : vector<16x16xbf16>, vector<16x32xbf16>, vector<16x32xf32> -> vector<16x32xf32>
    %220 = arith.truncf %219 : vector<16x32xf32> to vector<16x32xbf16>
    %c6_200 = arith.constant 6 : index
    %c0_201 = arith.constant 0 : index
    %c0_202 = arith.constant 0 : index
    %221 = vector.load %arg9[%c6_200, %c0_201, %c0_202] : memref<9x32x32xbf16, #tpu.memory_space<vmem>>, vector<1x32x32xbf16>
    %222 = vector.shape_cast %221 : vector<1x32x32xbf16> to vector<32x32xbf16>
    %cst_203 = arith.constant dense<0.000000e+00> : vector<16x32xf32>
    %223 = tpu.matmul %220, %222, %cst_203 {dimension_numbers = #tpu.dot_dimension_numbers<[1], [0], [0], [1], [0, 0, 1, 1], [], []>} : vector<16x32xbf16>, vector<32x32xbf16>, vector<16x32xf32> -> vector<16x32xf32>
    %224 = arith.addf %216, %223 : vector<16x32xf32>
    %c7_204 = arith.constant 7 : index
    %c0_205 = arith.constant 0 : index
    %c0_206 = arith.constant 0 : index
    %225 = vector.load %arg8[%c7_204, %c0_205, %c0_206] : memref<9x16x16xbf16, #tpu.memory_space<vmem>>, vector<1x16x16xbf16>
    %226 = vector.shape_cast %225 : vector<1x16x16xbf16> to vector<16x16xbf16>
    %cst_207 = arith.constant dense<0.000000e+00> : vector<16x32xf32>
    %227 = tpu.matmul %226, %167, %cst_207 {dimension_numbers = #tpu.dot_dimension_numbers<[1], [0], [0], [1], [0, 0, 1, 1], [], []>} : vector<16x16xbf16>, vector<16x32xbf16>, vector<16x32xf32> -> vector<16x32xf32>
    %228 = arith.truncf %227 : vector<16x32xf32> to vector<16x32xbf16>
    %c7_208 = arith.constant 7 : index
    %c0_209 = arith.constant 0 : index
    %c0_210 = arith.constant 0 : index
    %229 = vector.load %arg9[%c7_208, %c0_209, %c0_210] : memref<9x32x32xbf16, #tpu.memory_space<vmem>>, vector<1x32x32xbf16>
    %230 = vector.shape_cast %229 : vector<1x32x32xbf16> to vector<32x32xbf16>
    %cst_211 = arith.constant dense<0.000000e+00> : vector<16x32xf32>
    %231 = tpu.matmul %228, %230, %cst_211 {dimension_numbers = #tpu.dot_dimension_numbers<[1], [0], [0], [1], [0, 0, 1, 1], [], []>} : vector<16x32xbf16>, vector<32x32xbf16>, vector<16x32xf32> -> vector<16x32xf32>
    %232 = arith.addf %224, %231 : vector<16x32xf32>
    %c8_212 = arith.constant 8 : index
    %c0_213 = arith.constant 0 : index
    %c0_214 = arith.constant 0 : index
    %233 = vector.load %arg8[%c8_212, %c0_213, %c0_214] : memref<9x16x16xbf16, #tpu.memory_space<vmem>>, vector<1x16x16xbf16>
    %234 = vector.shape_cast %233 : vector<1x16x16xbf16> to vector<16x16xbf16>
    %cst_215 = arith.constant dense<0.000000e+00> : vector<16x32xf32>
    %235 = tpu.matmul %234, %167, %cst_215 {dimension_numbers = #tpu.dot_dimension_numbers<[1], [0], [0], [1], [0, 0, 1, 1], [], []>} : vector<16x16xbf16>, vector<16x32xbf16>, vector<16x32xf32> -> vector<16x32xf32>
    %236 = arith.truncf %235 : vector<16x32xf32> to vector<16x32xbf16>
    %c8_216 = arith.constant 8 : index
    %c0_217 = arith.constant 0 : index
    %c0_218 = arith.constant 0 : index
    %237 = vector.load %arg9[%c8_216, %c0_217, %c0_218] : memref<9x32x32xbf16, #tpu.memory_space<vmem>>, vector<1x32x32xbf16>
    %238 = vector.shape_cast %237 : vector<1x32x32xbf16> to vector<32x32xbf16>
    %cst_219 = arith.constant dense<0.000000e+00> : vector<16x32xf32>
    %239 = tpu.matmul %236, %238, %cst_219 {dimension_numbers = #tpu.dot_dimension_numbers<[1], [0], [0], [1], [0, 0, 1, 1], [], []>} : vector<16x32xbf16>, vector<32x32xbf16>, vector<16x32xf32> -> vector<16x32xf32>
    %240 = arith.addf %232, %239 : vector<16x32xf32>
    %c0_220 = arith.constant 0 : index
    %c0_221 = arith.constant 0 : index
    %241 = vector.load %arg10[%c0_220, %c0_221] : memref<1x32xf32, #tpu.memory_space<vmem>>, vector<1x32xf32>
    %242 = vector.broadcast %241 : vector<1x32xf32> to vector<16x32xf32>
    %243 = arith.addf %240, %242 : vector<16x32xf32>
    %cst_222 = arith.constant 0.000000e+00 : f32
    %244 = vector.broadcast %cst_222 : f32 to vector<16x32xf32>
    %245 = arith.subf %244, %243 : vector<16x32xf32>
    %246 = math.exp %245 : vector<16x32xf32>
    %cst_223 = arith.constant 1.000000e+00 : f32
    %247 = vector.broadcast %cst_223 : f32 to vector<16x32xf32>
    %248 = arith.addf %247, %246 : vector<16x32xf32>
    %249 = arith.divf %243, %248 : vector<16x32xf32>
    %250 = arith.extf %167 : vector<16x32xbf16> to vector<16x32xf32>
    %251 = arith.addf %249, %250 : vector<16x32xf32>
    %252 = arith.truncf %251 : vector<16x32xf32> to vector<16x32xbf16>
    %c0_224 = arith.constant 0 : index
    %c0_225 = arith.constant 0 : index
    %253 = vector.load %arg11[%c0_224, %c0_225] : memref<32x32xbf16, #tpu.memory_space<vmem>>, vector<32x32xbf16>
    %cst_226 = arith.constant dense<0.000000e+00> : vector<16x32xf32>
    %254 = tpu.matmul %252, %253, %cst_226 {dimension_numbers = #tpu.dot_dimension_numbers<[1], [0], [0], [1], [0, 0, 1, 1], [], []>} : vector<16x32xbf16>, vector<32x32xbf16>, vector<16x32xf32> -> vector<16x32xf32>
    %c0_227 = arith.constant 0 : index
    %c0_228 = arith.constant 0 : index
    %255 = vector.load %arg12[%c0_227, %c0_228] : memref<1x32xf32, #tpu.memory_space<vmem>>, vector<1x32xf32>
    %256 = vector.broadcast %255 : vector<1x32xf32> to vector<16x32xf32>
    %257 = arith.addf %254, %256 : vector<16x32xf32>
    %cst_229 = arith.constant 0.000000e+00 : f32
    %258 = vector.broadcast %cst_229 : f32 to vector<16x32xf32>
    %259 = arith.subf %258, %257 : vector<16x32xf32>
    %260 = math.exp %259 : vector<16x32xf32>
    %cst_230 = arith.constant 1.000000e+00 : f32
    %261 = vector.broadcast %cst_230 : f32 to vector<16x32xf32>
    %262 = arith.addf %261, %260 : vector<16x32xf32>
    %263 = arith.divf %257, %262 : vector<16x32xf32>
    %264 = arith.truncf %263 : vector<16x32xf32> to vector<16x32xbf16>
    %c0_231 = arith.constant 0 : index
    %c0_232 = arith.constant 0 : index
    %265 = vector.load %arg13[%c0_231, %c0_232] : memref<32x128xbf16, #tpu.memory_space<vmem>>, vector<32x128xbf16>
    %cst_233 = arith.constant dense<0.000000e+00> : vector<16x128xf32>
    %266 = tpu.matmul %264, %265, %cst_233 {dimension_numbers = #tpu.dot_dimension_numbers<[1], [0], [0], [1], [0, 0, 1, 1], [], []>} : vector<16x32xbf16>, vector<32x128xbf16>, vector<16x128xf32> -> vector<16x128xf32>
    %c0_234 = arith.constant 0 : index
    %c0_235 = arith.constant 0 : index
    %267 = vector.load %arg14[%c0_234, %c0_235] : memref<1x128xf32, #tpu.memory_space<vmem>>, vector<1x128xf32>
    %268 = vector.broadcast %267 : vector<1x128xf32> to vector<16x128xf32>
    %269 = arith.addf %266, %268 : vector<16x128xf32>
    %c0_236 = arith.constant 0 : index
    %c0_237 = arith.constant 0 : index
    %270 = vector.load %arg15[%c0_236, %c0_237] : memref<1x128xf32, #tpu.memory_space<vmem>>, vector<1x128xf32>
    %cst_238 = arith.constant 0.000000e+00 : f32
    %271 = vector.broadcast %cst_238 : f32 to vector<16x128xf32>
    %272 = arith.subf %271, %269 : vector<16x128xf32>
    %273 = math.exp %272 : vector<16x128xf32>
    %cst_239 = arith.constant 1.000000e+00 : f32
    %274 = vector.broadcast %cst_239 : f32 to vector<16x128xf32>
    %275 = arith.addf %274, %273 : vector<16x128xf32>
    %276 = arith.divf %269, %275 : vector<16x128xf32>
    %277 = arith.subf %276, %269 : vector<16x128xf32>
    %278 = vector.broadcast %270 : vector<1x128xf32> to vector<16x128xf32>
    %279 = arith.mulf %278, %277 : vector<16x128xf32>
    %280 = arith.addf %269, %279 : vector<16x128xf32>
    %c0_240 = arith.constant 0 : index
    %c0_241 = arith.constant 0 : index
    %c0_242 = arith.constant 0 : index
    %281 = vector.load %arg16[%c0_240, %c0_241, %c0_242] : memref<1x16x128xf32, #tpu.memory_space<vmem>>, vector<1x16x128xf32>
    %282 = vector.shape_cast %281 : vector<1x16x128xf32> to vector<16x128xf32>
    %283 = vector.shape_cast %280 : vector<16x128xf32> to vector<1x16x128xf32>
    tpu.vector_store %arg16[%c0_240, %c0_241, %c0_242], %283 {strides = array<i32>} : memref<1x16x128xf32, #tpu.memory_space<vmem>>, vector<1x16x128xf32>,
    return
  }
  func.func @transform_0(%arg0: i32) -> (i32, i32, i32) {
    %c0_i32 = arith.constant 0 : i32
    %c0_i32_0 = arith.constant 0 : i32
    %c0_i32_1 = arith.constant 0 : i32
    return %arg0, %c0_i32, %c0_i32_0 : i32, i32, i32
  }
  func.func @transform_1(%arg0: i32) -> (i32, i32, i32) {
    %c0_i32 = arith.constant 0 : i32
    %c0_i32_0 = arith.constant 0 : i32
    %c0_i32_1 = arith.constant 0 : i32
    %c0_i32_2 = arith.constant 0 : i32
    return %c0_i32, %c0_i32_0, %c0_i32_1 : i32, i32, i32
  }
  func.func @transform_2(%arg0: i32) -> (i32, i32, i32) {
    %c0_i32 = arith.constant 0 : i32
    %c0_i32_0 = arith.constant 0 : i32
    %c0_i32_1 = arith.constant 0 : i32
    %c0_i32_2 = arith.constant 0 : i32
    return %c0_i32, %c0_i32_0, %c0_i32_1 : i32, i32, i32
  }
  func.func @transform_3(%arg0: i32) -> (i32, i32) {
    %c0_i32 = arith.constant 0 : i32
    %c0_i32_0 = arith.constant 0 : i32
    %c0_i32_1 = arith.constant 0 : i32
    return %c0_i32, %c0_i32_0 : i32, i32
  }
  func.func @transform_4(%arg0: i32) -> (i32, i32, i32) {
    %c0_i32 = arith.constant 0 : i32
    %c0_i32_0 = arith.constant 0 : i32
    %c0_i32_1 = arith.constant 0 : i32
    %c0_i32_2 = arith.constant 0 : i32
    return %c0_i32, %c0_i32_0, %c0_i32_1 : i32, i32, i32
  }
  func.func @transform_5(%arg0: i32) -> (i32, i32, i32) {
    %c0_i32 = arith.constant 0 : i32
    %c0_i32_0 = arith.constant 0 : i32
    %c0_i32_1 = arith.constant 0 : i32
    %c0_i32_2 = arith.constant 0 : i32
    return %c0_i32, %c0_i32_0, %c0_i32_1 : i32, i32, i32
  }
  func.func @transform_6(%arg0: i32) -> (i32, i32) {
    %c0_i32 = arith.constant 0 : i32
    %c0_i32_0 = arith.constant 0 : i32
    %c0_i32_1 = arith.constant 0 : i32
    return %c0_i32, %c0_i32_0 : i32, i32
  }
  func.func @transform_7(%arg0: i32) -> (i32, i32, i32) {
    %c0_i32 = arith.constant 0 : i32
    %c0_i32_0 = arith.constant 0 : i32
    %c0_i32_1 = arith.constant 0 : i32
    %c0_i32_2 = arith.constant 0 : i32
    return %c0_i32, %c0_i32_0, %c0_i32_1 : i32, i32, i32
  }
  func.func @transform_8(%arg0: i32) -> (i32, i32, i32) {
    %c0_i32 = arith.constant 0 : i32
    %c0_i32_0 = arith.constant 0 : i32
    %c0_i32_1 = arith.constant 0 : i32
    %c0_i32_2 = arith.constant 0 : i32
    return %c0_i32, %c0_i32_0, %c0_i32_1 : i32, i32, i32
  }
  func.func @transform_9(%arg0: i32) -> (i32, i32) {
    %c0_i32 = arith.constant 0 : i32
    %c0_i32_0 = arith.constant 0 : i32
    %c0_i32_1 = arith.constant 0 : i32
    return %c0_i32, %c0_i32_0 : i32, i32
  }
  func.func @transform_10(%arg0: i32) -> (i32, i32) {
    %c0_i32 = arith.constant 0 : i32
    %c0_i32_0 = arith.constant 0 : i32
    %c0_i32_1 = arith.constant 0 : i32
    return %c0_i32, %c0_i32_0 : i32, i32
  }
  func.func @transform_11(%arg0: i32) -> (i32, i32) {
    %c0_i32 = arith.constant 0 : i32
    %c0_i32_0 = arith.constant 0 : i32
    %c0_i32_1 = arith.constant 0 : i32
    return %c0_i32, %c0_i32_0 : i32, i32
  }
  func.func @transform_12(%arg0: i32) -> (i32, i32) {
    %c0_i32 = arith.constant 0 : i32
    %c0_i32_0 = arith.constant 0 : i32
    %c0_i32_1 = arith.constant 0 : i32
    return %c0_i32, %c0_i32_0 : i32, i32
  }
  func.func @transform_13(%arg0: i32) -> (i32, i32) {
    %c0_i32 = arith.constant 0 : i32
    %c0_i32_0 = arith.constant 0 : i32
    %c0_i32_1 = arith.constant 0 : i32
    return %c0_i32, %c0_i32_0 : i32, i32
  }
  func.func @transform_14(%arg0: i32) -> (i32, i32) {
    %c0_i32 = arith.constant 0 : i32
    %c0_i32_0 = arith.constant 0 : i32
    %c0_i32_1 = arith.constant 0 : i32
    return %c0_i32, %c0_i32_0 : i32, i32
  }
  func.func @transform_15(%arg0: i32) -> (i32, i32, i32) {
    %c0_i32 = arith.constant 0 : i32
    %c0_i32_0 = arith.constant 0 : i32
    %c0_i32_1 = arith.constant 0 : i32
    return %arg0, %c0_i32, %c0_i32_0 : i32, i32, i32
  }
}

</mosaic_0001>

<llo_original>
// kernel: cloud_yolo_forward.1
$region0: #{cloud_yolo_forward.1}
  #allocation0 [shape = 'u32[]', space=smem, size = 0x4, offset = 0x4, fixed_abs, tag = 'smem constant byte address 0x4 - core index']
  #allocation1 [shape = 'u32[144,128]{1,0:T(1,128)}', space=vmem, size = 0x12000, scoped, tag = 'internal scratch']
  %s0 = inlined_call_operand.vmem [shape: bf16[2,256,3], index: 0, kind: input, shape index: {}]
  %s1 = inlined_call_operand.hbm [shape: bf16[9,64,256], index: 1, kind: input, shape index: {}]
  %s2 = inlined_call_operand.vmem [shape: bf16[9,3,16], index: 2, kind: input, shape index: {}]
  %s3 = inlined_call_operand.vmem [shape: f32[1,16], index: 3, kind: input, shape index: {}]
  %s4 = inlined_call_operand.vmem [shape: bf16[9,16,64], index: 4, kind: input, shape index: {}]
  %s5 = inlined_call_operand.vmem [shape: bf16[9,16,32], index: 5, kind: input, shape index: {}]
  %s6 = inlined_call_operand.vmem [shape: f32[1,32], index: 6, kind: input, shape index: {}]
  %s7 = inlined_call_operand.vmem [shape: bf16[9,16,16], index: 7, kind: input, shape index: {}]
  %s8 = inlined_call_operand.vmem [shape: bf16[9,32,32], index: 8, kind: input, shape index: {}]
  %s9 = inlined_call_operand.vmem [shape: f32[1,32], index: 9, kind: input, shape index: {}]
  %s10 = inlined_call_operand.vmem [shape: bf16[32,32], index: 10, kind: input, shape index: {}]
  %s11 = inlined_call_operand.vmem [shape: f32[1,32], index: 11, kind: input, shape index: {}]
  %s12 = inlined_call_operand.vmem [shape: bf16[32,128], index: 12, kind: input, shape index: {}]
  %s13 = inlined_call_operand.vmem [shape: f32[1,128], index: 13, kind: input, shape index: {}]
  %s14 = inlined_call_operand.vmem [shape: f32[1,128], index: 14, kind: input, shape index: {}]
  %s15 = inlined_call_operand.vmem [shape: f32[2,16,128], index: 15, kind: output, shape index: {}]
  %s16 = sld [smem:[#allocation0]]
  $region97: #{cloud_yolo_forward.1} parent=0
    _
  %s18 = ssub.s32 1, %s16
  %s19 = scalar_select 0, %s18, %s16
  $region1: #{cloud_yolo_forward.1} parent=0
    #allocation2 [shape = 'u8[294912]{0}', space=vmem, size = 0x48000, scoped, tag = 'input window, operand 1, single buffered']
    #allocation3 [shape = 's32[2]{0}', space=sflag, size = 0x8, scoped, tag = 'scoped memory for cloud_yolo_forward.1']
    %20 = vsyncpa [#allocation3], 0
    loop: start=0, step=1, limit=4
    $region2: #{cloud_yolo_forward.1} parent=1 // loop_pre_header
      _
    $region3: #{cloud_yolo_forward.1} parent=1 // loop_header
      %s22 = sphi 0, %s26
      %p23 = scmp.ge.s32.totalorder %s22, 4
      %s32 = sphi 0, %s34
      %s35 = sphi 0, %s32
      %s36 = sphi 0, %s35
      %s52 = sphi 0, %s36
      %s56 = sphi 0, %s56
      %s58 = sphi 0, %s56
      %s59 = sphi 0, %s58
      %s73 = sphi 0, %s59
      %s77 = sphi 0, %s77
      %s79 = sphi 0, %s77
      %s80 = sphi 0, %s79
      %s94 = sphi 0, %s80
      %s98 = sphi 0, %s98
      %s100 = sphi 0, %s98
      %s101 = sphi 0, %s100
      %s115 = sphi 0, %s101
      %s119 = sphi 0, %s119
      %s121 = sphi 0, %s119
      %s122 = sphi 0, %s121
      %s136 = sphi 0, %s122
      %s140 = sphi 0, %s140
      %s142 = sphi 0, %s140
      %s143 = sphi 0, %s142
      %s157 = sphi 0, %s143
      %s161 = sphi 0, %s161
      %s163 = sphi 0, %s161
      %s164 = sphi 0, %s163
      %s178 = sphi 0, %s164
      %s182 = sphi 0, %s182
      %s184 = sphi 0, %s182
      %s185 = sphi 0, %s184
      %s199 = sphi 0, %s185
      %s203 = sphi 0, %s203
      %s205 = sphi 0, %s203
      %s206 = sphi 0, %s205
      %s220 = sphi 0, %s206
      %s224 = sphi 0, %s224
      %s226 = sphi 0, %s224
      %s227 = sphi 0, %s226
      %s241 = sphi 0, %s227
      %s245 = sphi 0, %s245
      %s247 = sphi 0, %s245
      %s248 = sphi 0, %s247
      %s262 = sphi 0, %s248
      %s266 = sphi 0, %s266
      %s268 = sphi 0, %s266
      %s269 = sphi 0, %s268
      %s283 = sphi 0, %s269
      %s287 = sphi 0, %s287
      %s289 = sphi 0, %s287
      %s290 = sphi 0, %s289
      %s304 = sphi 0, %s290
      %s308 = sphi 0, %s308
      %s310 = sphi 0, %s308
      %s311 = sphi 0, %s310
      %s325 = sphi 0, %s311
      %s329 = sphi 0, %s329
      %s331 = sphi 0, %s329
      %s332 = sphi 0, %s331
      %s346 = sphi 0, %s332
      %s352 = sphi 0, %s354
      %s355 = sphi 0, %s352
      %s356 = sphi 0, %s355
      %s372 = sphi 0, %s356
    $region4: #{cloud_yolo_forward.1} parent=1 // loop_header_branch
      %25 = sbr.rel (%p23) target = $region8
    $region5: #{cloud_yolo_forward.1} parent=1 // loop_body
      %s27 = ssub.s32 %s22, 1
      %s28 = ssub.s32 %s22, 2
      %s29 = sadd.s32 %s22, 1
      %s30 = ssub.s32 %s22, %s29
      %p31 = scmp.eq.s32.totalorder %s30, 0
      %s33 = sadd.s32 %s32, 1
      %s34 = scalar_select %p31, %s32, %s33
      %p37 = pneg %p31
      %p38 = scmp.eq.s32.totalorder %s22, 1
      %p39 = por %p37, %p38
      %p40 = scmp.ne.s32.totalorder %s32, %s35
      %p41 = scmp.eq.s32.totalorder %s22, 0
      %p42 = por %p40, %p41
      %p43 = scmp.ne.s32.totalorder %s32, %s35
      %p44 = scmp.eq.s32.totalorder %s27, 1
      %p45 = por %p43, %p44
      %p46 = scmp.ne.s32.totalorder %s35, %s36
      %p47 = scmp.eq.s32.totalorder %s27, 0
      %p48 = por %p46, %p47
      %p49 = scmp.ne.s32.totalorder %s35, %s36
      %p50 = scmp.eq.s32.totalorder %s28, 1
      %p51 = por %p49, %p50
      %p53 = scmp.ne.s32.totalorder %s36, %s52
      %p54 = scmp.eq.s32.totalorder %s28, 0
      %p55 = por %p53, %p54
      %s57 = sadd.s32 %s56, 1
      %p60 = scmp.eq.s32.totalorder %s22, 1
      %p61 = scmp.ne.s32.totalorder %s56, %s58
      %p62 = scmp.eq.s32.totalorder %s22, 0
      %p63 = por %p61, %p62
      %p64 = scmp.ne.s32.totalorder %s56, %s58
      %p65 = scmp.eq.s32.totalorder %s27, 1
      %p66 = por %p64, %p65
      %p67 = scmp.ne.s32.totalorder %s58, %s59
      %p68 = scmp.eq.s32.totalorder %s27, 0
      %p69 = por %p67, %p68
      %p70 = scmp.ne.s32.totalorder %s58, %s59
      %p71 = scmp.eq.s32.totalorder %s28, 1
      %p72 = por %p70, %p71
      %p74 = scmp.ne.s32.totalorder %s59, %s73
      %p75 = scmp.eq.s32.totalorder %s28, 0
      %p76 = por %p74, %p75
      %s78 = sadd.s32 %s77, 1
      %p81 = scmp.eq.s32.totalorder %s22, 1
      %p82 = scmp.ne.s32.totalorder %s77, %s79
      %p83 = scmp.eq.s32.totalorder %s22, 0
      %p84 = por %p82, %p83
      %p85 = scmp.ne.s32.totalorder %s77, %s79
      %p86 = scmp.eq.s32.totalorder %s27, 1
      %p87 = por %p85, %p86
      %p88 = scmp.ne.s32.totalorder %s79, %s80
      %p89 = scmp.eq.s32.totalorder %s27, 0
      %p90 = por %p88, %p89
      %p91 = scmp.ne.s32.totalorder %s79, %s80
      %p92 = scmp.eq.s32.totalorder %s28, 1
      %p93 = por %p91, %p92
      %p95 = scmp.ne.s32.totalorder %s80, %s94
      %p96 = scmp.eq.s32.totalorder %s28, 0
      %p97 = por %p95, %p96
      %s99 = sadd.s32 %s98, 1
      %p102 = scmp.eq.s32.totalorder %s22, 1
      %p103 = scmp.ne.s32.totalorder %s98, %s100
      %p104 = scmp.eq.s32.totalorder %s22, 0
      %p105 = por %p103, %p104
      %p106 = scmp.ne.s32.totalorder %s98, %s100
      %p107 = scmp.eq.s32.totalorder %s27, 1
      %p108 = por %p106, %p107
      %p109 = scmp.ne.s32.totalorder %s100, %s101
      %p110 = scmp.eq.s32.totalorder %s27, 0
      %p111 = por %p109, %p110
      %p112 = scmp.ne.s32.totalorder %s100, %s101
      %p113 = scmp.eq.s32.totalorder %s28, 1
      %p114 = por %p112, %p113
      %p116 = scmp.ne.s32.totalorder %s101, %s115
      %p117 = scmp.eq.s32.totalorder %s28, 0
      %p118 = por %p116, %p117
      %s120 = sadd.s32 %s119, 1
      %p123 = scmp.eq.s32.totalorder %s22, 1
      %p124 = scmp.ne.s32.totalorder %s119, %s121
      %p125 = scmp.eq.s32.totalorder %s22, 0
      %p126 = por %p124, %p125
      %p127 = scmp.ne.s32.totalorder %s119, %s121
      %p128 = scmp.eq.s32.totalorder %s27, 1
      %p129 = por %p127, %p128
      %p130 = scmp.ne.s32.totalorder %s121, %s122
      %p131 = scmp.eq.s32.totalorder %s27, 0
      %p132 = por %p130, %p131
      %p133 = scmp.ne.s32.totalorder %s121, %s122
      %p134 = scmp.eq.s32.totalorder %s28, 1
      %p135 = por %p133, %p134
      %p137 = scmp.ne.s32.totalorder %s122, %s136
      %p138 = scmp.eq.s32.totalorder %s28, 0
      %p139 = por %p137, %p138
      %s141 = sadd.s32 %s140, 1
      %p144 = scmp.eq.s32.totalorder %s22, 1
      %p145 = scmp.ne.s32.totalorder %s140, %s142
      %p146 = scmp.eq.s32.totalorder %s22, 0
      %p147 = por %p145, %p146
      %p148 = scmp.ne.s32.totalorder %s140, %s142
      %p149 = scmp.eq.s32.totalorder %s27, 1
      %p150 = por %p148, %p149
      %p151 = scmp.ne.s32.totalorder %s142, %s143
      %p152 = scmp.eq.s32.totalorder %s27, 0
      %p153 = por %p151, %p152
      %p154 = scmp.ne.s32.totalorder %s142, %s143
      %p155 = scmp.eq.s32.totalorder %s28, 1
      %p156 = por %p154, %p155
      %p158 = scmp.ne.s32.totalorder %s143, %s157
      %p159 = scmp.eq.s32.totalorder %s28, 0
      %p160 = por %p158, %p159
      %s162 = sadd.s32 %s161, 1
      %p165 = scmp.eq.s32.totalorder %s22, 1
      %p166 = scmp.ne.s32.totalorder %s161, %s163
      %p167 = scmp.eq.s32.totalorder %s22, 0
      %p168 = por %p166, %p167
      %p169 = scmp.ne.s32.totalorder %s161, %s163
      %p170 = scmp.eq.s32.totalorder %s27, 1
      %p171 = por %p169, %p170
      %p172 = scmp.ne.s32.totalorder %s163, %s164
      %p173 = scmp.eq.s32.totalorder %s27, 0
      %p174 = por %p172, %p173
      %p175 = scmp.ne.s32.totalorder %s163, %s164
      %p176 = scmp.eq.s32.totalorder %s28, 1
      %p177 = por %p175, %p176
      %p179 = scmp.ne.s32.totalorder %s164, %s178
      %p180 = scmp.eq.s32.totalorder %s28, 0
      %p181 = por %p179, %p180
      %s183 = sadd.s32 %s182, 1
      %p186 = scmp.eq.s32.totalorder %s22, 1
      %p187 = scmp.ne.s32.totalorder %s182, %s184
      %p188 = scmp.eq.s32.totalorder %s22, 0
      %p189 = por %p187, %p188
      %p190 = scmp.ne.s32.totalorder %s182, %s184
      %p191 = scmp.eq.s32.totalorder %s27, 1
      %p192 = por %p190, %p191
      %p193 = scmp.ne.s32.totalorder %s184, %s185
      %p194 = scmp.eq.s32.totalorder %s27, 0
      %p195 = por %p193, %p194
      %p196 = scmp.ne.s32.totalorder %s184, %s185
      %p197 = scmp.eq.s32.totalorder %s28, 1
      %p198 = por %p196, %p197
      %p200 = scmp.ne.s32.totalorder %s185, %s199
      %p201 = scmp.eq.s32.totalorder %s28, 0
      %p202 = por %p200, %p201
      %s204 = sadd.s32 %s203, 1
      %p207 = scmp.eq.s32.totalorder %s22, 1
      %p208 = scmp.ne.s32.totalorder %s203, %s205
      %p209 = scmp.eq.s32.totalorder %s22, 0
      %p210 = por %p208, %p209
      %p211 = scmp.ne.s32.totalorder %s203, %s205
      %p212 = scmp.eq.s32.totalorder %s27, 1
      %p213 = por %p211, %p212
      %p214 = scmp.ne.s32.totalorder %s205, %s206
      %p215 = scmp.eq.s32.totalorder %s27, 0
      %p216 = por %p214, %p215
      %p217 = scmp.ne.s32.totalorder %s205, %s206
      %p218 = scmp.eq.s32.totalorder %s28, 1
      %p219 = por %p217, %p218
      %p221 = scmp.ne.s32.totalorder %s206, %s220
      %p222 = scmp.eq.s32.totalorder %s28, 0
      %p223 = por %p221, %p222
      %s225 = sadd.s32 %s224, 1
      %p228 = scmp.eq.s32.totalorder %s22, 1
      %p229 = scmp.ne.s32.totalorder %s224, %s226
      %p230 = scmp.eq.s32.totalorder %s22, 0
      %p231 = por %p229, %p230
      %p232 = scmp.ne.s32.totalorder %s224, %s226
      %p233 = scmp.eq.s32.totalorder %s27, 1
      %p234 = por %p232, %p233
      %p235 = scmp.ne.s32.totalorder %s226, %s227
      %p236 = scmp.eq.s32.totalorder %s27, 0
      %p237 = por %p235, %p236
      %p238 = scmp.ne.s32.totalorder %s226, %s227
      %p239 = scmp.eq.s32.totalorder %s28, 1
      %p240 = por %p238, %p239
      %p242 = scmp.ne.s32.totalorder %s227, %s241
      %p243 = scmp.eq.s32.totalorder %s28, 0
      %p244 = por %p242, %p243
      %s246 = sadd.s32 %s245, 1
      %p249 = scmp.eq.s32.totalorder %s22, 1
      %p250 = scmp.ne.s32.totalorder %s245, %s247
      %p251 = scmp.eq.s32.totalorder %s22, 0
      %p252 = por %p250, %p251
      %p253 = scmp.ne.s32.totalorder %s245, %s247
      %p254 = scmp.eq.s32.totalorder %s27, 1
      %p255 = por %p253, %p254
      %p256 = scmp.ne.s32.totalorder %s247, %s248
      %p257 = scmp.eq.s32.totalorder %s27, 0
      %p258 = por %p256, %p257
      %p259 = scmp.ne.s32.totalorder %s247, %s248
      %p260 = scmp.eq.s32.totalorder %s28, 1
      %p261 = por %p259, %p260
      %p263 = scmp.ne.s32.totalorder %s248, %s262
      %p264 = scmp.eq.s32.totalorder %s28, 0
      %p265 = por %p263, %p264
      %s267 = sadd.s32 %s266, 1
      %p270 = scmp.eq.s32.totalorder %s22, 1
      %p271 = scmp.ne.s32.totalorder %s266, %s268
      %p272 = scmp.eq.s32.totalorder %s22, 0
      %p273 = por %p271, %p272
      %p274 = scmp.ne.s32.totalorder %s266, %s268
      %p275 = scmp.eq.s32.totalorder %s27, 1
      %p276 = por %p274, %p275
      %p277 = scmp.ne.s32.totalorder %s268, %s269
      %p278 = scmp.eq.s32.totalorder %s27, 0
      %p279 = por %p277, %p278
      %p280 = scmp.ne.s32.totalorder %s268, %s269
      %p281 = scmp.eq.s32.totalorder %s28, 1
      %p282 = por %p280, %p281
      %p284 = scmp.ne.s32.totalorder %s269, %s283
      %p285 = scmp.eq.s32.totalorder %s28, 0
      %p286 = por %p284, %p285
      %s288 = sadd.s32 %s287, 1
      %p291 = scmp.eq.s32.totalorder %s22, 1
      %p292 = scmp.ne.s32.totalorder %s287, %s289
      %p293 = scmp.eq.s32.totalorder %s22, 0
      %p294 = por %p292, %p293
      %p295 = scmp.ne.s32.totalorder %s287, %s289
      %p296 = scmp.eq.s32.totalorder %s27, 1
      %p297 = por %p295, %p296
      %p298 = scmp.ne.s32.totalorder %s289, %s290
      %p299 = scmp.eq.s32.totalorder %s27, 0
      %p300 = por %p298, %p299
      %p301 = scmp.ne.s32.totalorder %s289, %s290
      %p302 = scmp.eq.s32.totalorder %s28, 1
      %p303 = por %p301, %p302
      %p305 = scmp.ne.s32.totalorder %s290, %s304
      %p306 = scmp.eq.s32.totalorder %s28, 0
      %p307 = por %p305, %p306
      %s309 = sadd.s32 %s308, 1
      %p312 = scmp.eq.s32.totalorder %s22, 1
      %p313 = scmp.ne.s32.totalorder %s308, %s310
      %p314 = scmp.eq.s32.totalorder %s22, 0
      %p315 = por %p313, %p314
      %p316 = scmp.ne.s32.totalorder %s308, %s310
      %p317 = scmp.eq.s32.totalorder %s27, 1
      %p318 = por %p316, %p317
      %p319 = scmp.ne.s32.totalorder %s310, %s311
      %p320 = scmp.eq.s32.totalorder %s27, 0
      %p321 = por %p319, %p320
      %p322 = scmp.ne.s32.totalorder %s310, %s311
      %p323 = scmp.eq.s32.totalorder %s28, 1
      %p324 = por %p322, %p323
      %p326 = scmp.ne.s32.totalorder %s311, %s325
      %p327 = scmp.eq.s32.totalorder %s28, 0
      %p328 = por %p326, %p327
      %s330 = sadd.s32 %s329, 1
      %p333 = scmp.eq.s32.totalorder %s22, 1
      %p334 = scmp.ne.s32.totalorder %s329, %s331
      %p335 = scmp.eq.s32.totalorder %s22, 0
      %p336 = por %p334, %p335
      %p337 = scmp.ne.s32.totalorder %s329, %s331
      %p338 = scmp.eq.s32.totalorder %s27, 1
      %p339 = por %p337, %p338
      %p340 = scmp.ne.s32.totalorder %s331, %s332
      %p341 = scmp.eq.s32.totalorder %s27, 0
      %p342 = por %p340, %p341
      %p343 = scmp.ne.s32.totalorder %s331, %s332
      %p344 = scmp.eq.s32.totalorder %s28, 1
      %p345 = por %p343, %p344
      %p347 = scmp.ne.s32.totalorder %s332, %s346
      %p348 = scmp.eq.s32.totalorder %s28, 0
      %p349 = por %p347, %p348
      %s350 = ssub.s32 %s22, %s29
      %p351 = scmp.eq.s32.totalorder %s350, 0
      %s353 = sadd.s32 %s352, 1
      %s354 = scalar_select %p351, %s352, %s353
      %p357 = pneg %p351
      %p358 = scmp.eq.s32.totalorder %s22, 1
      %p359 = por %p357, %p358
      %p360 = scmp.ne.s32.totalorder %s352, %s355
      %p361 = scmp.eq.s32.totalorder %s22, 0
      %p362 = por %p360, %p361
      %p363 = scmp.ne.s32.totalorder %s352, %s355
      %p364 = scmp.eq.s32.totalorder %s27, 1
      %p365 = por %p363, %p364
      %p366 = scmp.ne.s32.totalorder %s355, %s356
      %p367 = scmp.eq.s32.totalorder %s27, 0
      %p368 = por %p366, %p367
      %p369 = scmp.ne.s32.totalorder %s355, %s356
      %p370 = scmp.eq.s32.totalorder %s28, 1
      %p371 = por %p369, %p370
      %p373 = scmp.ne.s32.totalorder %s356, %s372
      %p374 = scmp.eq.s32.totalorder %s28, 0
      %p375 = por %p373, %p374
      %p376 = scmp.le.s32.totalorder 1, %s22
      %p377 = scmp.lt.s32.totalorder %s22, 3
      %p378 = pnand %p376, %p377
      %p379 = pneg %p378
      // Predicated region
      $region9: #{cloud_yolo_forward.1} parent=5 // pred_check
        _
      $region10: #{cloud_yolo_forward.1} parent=5 // pred_check_branch
        %381 = sbr.rel (%p378) target = $region12
      $region11: #{cloud_yolo_forward.1} parent=5 // pred_region
        %s382 = ssub.s32 %s22, 1
        // Predicated region
        $region13: #{cloud_yolo_forward.1} parent=11 // pred_check
          %p383 = pneg %p69
        $region14: #{cloud_yolo_forward.1} parent=11 // pred_check_branch
          %385 = sbr.rel (%p383) target = $region16
        $region15: #{cloud_yolo_forward.1} parent=11 // pred_region
          %s387 = ssub.s32 9216, 9216
          %388 = vsyncadd [#allocation3], %s387
          %s389 = sshll.u32 [#allocation2], 4
          %s390 = int_to_ptr.vmem [resolvable:$true] %s389
          %395 = dma.hbm_to_vmem [thread:$0]  %s1, 9216, %s390, [#allocation3], 128, 128, 8
        $region16: #{cloud_yolo_forward.1} parent=11 // pred_fallthru
          _
        // Predicated region
        $region17: #{cloud_yolo_forward.1} parent=11 // pred_check
          %p396 = pneg %p90
        $region18: #{cloud_yolo_forward.1} parent=11 // pred_check_branch
          %398 = sbr.rel (%p396) target = $region20
        $region19: #{cloud_yolo_forward.1} parent=11 // pred_region
          _
        $region20: #{cloud_yolo_forward.1} parent=11 // pred_fallthru
          _
        // Predicated region
        $region21: #{cloud_yolo_forward.1} parent=11 // pred_check
          %p399 = pneg %p111
        $region22: #{cloud_yolo_forward.1} parent=11 // pred_check_branch
          %401 = sbr.rel (%p399) target = $region24
        $region23: #{cloud_yolo_forward.1} parent=11 // pred_region
          _
        $region24: #{cloud_yolo_forward.1} parent=11 // pred_fallthru
          _
        // Predicated region
        $region25: #{cloud_yolo_forward.1} parent=11 // pred_check
          %p402 = pneg %p132
        $region26: #{cloud_yolo_forward.1} parent=11 // pred_check_branch
          %404 = sbr.rel (%p402) target = $region28
        $region27: #{cloud_yolo_forward.1} parent=11 // pred_region
          _
        $region28: #{cloud_yolo_forward.1} parent=11 // pred_fallthru
          _
        // Predicated region
        $region29: #{cloud_yolo_forward.1} parent=11 // pred_check
          %p405 = pneg %p153
        $region30: #{cloud_yolo_forward.1} parent=11 // pred_check_branch
          %407 = sbr.rel (%p405) target = $region32
        $region31: #{cloud_yolo_forward.1} parent=11 // pred_region
          _
        $region32: #{cloud_yolo_forward.1} parent=11 // pred_fallthru
          _
        // Predicated region
        $region33: #{cloud_yolo_forward.1} parent=11 // pred_check
          %p408 = pneg %p174
        $region34: #{cloud_yolo_forward.1} parent=11 // pred_check_branch
          %410 = sbr.rel (%p408) target = $region36
        $region35: #{cloud_yolo_forward.1} parent=11 // pred_region
          _
        $region36: #{cloud_yolo_forward.1} parent=11 // pred_fallthru
          _
        // Predicated region
        $region37: #{cloud_yolo_forward.1} parent=11 // pred_check
          %p411 = pneg %p195
        $region38: #{cloud_yolo_forward.1} parent=11 // pred_check_branch
          %413 = sbr.rel (%p411) target = $region40
        $region39: #{cloud_yolo_forward.1} parent=11 // pred_region
          _
        $region40: #{cloud_yolo_forward.1} parent=11 // pred_fallthru
          _
        // Predicated region
        $region41: #{cloud_yolo_forward.1} parent=11 // pred_check
          %p414 = pneg %p216
        $region42: #{cloud_yolo_forward.1} parent=11 // pred_check_branch
          %416 = sbr.rel (%p414) target = $region44
        $region43: #{cloud_yolo_forward.1} parent=11 // pred_region
          _
        $region44: #{cloud_yolo_forward.1} parent=11 // pred_fallthru
          _
        // Predicated region
        $region45: #{cloud_yolo_forward.1} parent=11 // pred_check
          %p417 = pneg %p237
        $region46: #{cloud_yolo_forward.1} parent=11 // pred_check_branch
          %419 = sbr.rel (%p417) target = $region48
        $region47: #{cloud_yolo_forward.1} parent=11 // pred_region
          _
        $region48: #{cloud_yolo_forward.1} parent=11 // pred_fallthru
          _
        // Predicated region
        $region49: #{cloud_yolo_forward.1} parent=11 // pred_check
          %p420 = pneg %p258
        $region50: #{cloud_yolo_forward.1} parent=11 // pred_check_branch
          %422 = sbr.rel (%p420) target = $region52
        $region51: #{cloud_yolo_forward.1} parent=11 // pred_region
          _
        $region52: #{cloud_yolo_forward.1} parent=11 // pred_fallthru
          _
        // Predicated region
        $region53: #{cloud_yolo_forward.1} parent=11 // pred_check
          %p423 = pneg %p279
        $region54: #{cloud_yolo_forward.1} parent=11 // pred_check_branch
          %425 = sbr.rel (%p423) target = $region56
        $region55: #{cloud_yolo_forward.1} parent=11 // pred_region
          _
        $region56: #{cloud_yolo_forward.1} parent=11 // pred_fallthru
          _
        // Predicated region
        $region57: #{cloud_yolo_forward.1} parent=11 // pred_check
          %p426 = pneg %p300
        $region58: #{cloud_yolo_forward.1} parent=11 // pred_check_branch
          %428 = sbr.rel (%p426) target = $region60
        $region59: #{cloud_yolo_forward.1} parent=11 // pred_region
          _
        $region60: #{cloud_yolo_forward.1} parent=11 // pred_fallthru
          _
        // Predicated region
        $region61: #{cloud_yolo_forward.1} parent=11 // pred_check
          %p429 = pneg %p321
        $region62: #{cloud_yolo_forward.1} parent=11 // pred_check_branch
          %431 = sbr.rel (%p429) target = $region64
        $region63: #{cloud_yolo_forward.1} parent=11 // pred_region
          _
        $region64: #{cloud_yolo_forward.1} parent=11 // pred_fallthru
          _
        // Predicated region
        $region65: #{cloud_yolo_forward.1} parent=11 // pred_check
          %p432 = pneg %p342
        $region66: #{cloud_yolo_forward.1} parent=11 // pred_check_branch
          %434 = sbr.rel (%p432) target = $region68
        $region67: #{cloud_yolo_forward.1} parent=11 // pred_region
          _
        $region68: #{cloud_yolo_forward.1} parent=11 // pred_fallthru
          _
      $region12: #{cloud_yolo_forward.1} parent=5 // pred_fallthru
        _
      %p435 = scmp.lt.s32.totalorder %s22, 2
      // Predicated region
      $region69: #{cloud_yolo_forward.1} parent=5 // pred_check
        %p436 = pneg %p435
      $region70: #{cloud_yolo_forward.1} parent=5 // pred_check_branch
        %438 = sbr.rel (%p436) target = $region72
      $region71: #{cloud_yolo_forward.1} parent=5 // pred_region
        // Predicated region
        $region73: #{cloud_yolo_forward.1} parent=71 // pred_check
          %p439 = pneg %p42
        $region74: #{cloud_yolo_forward.1} parent=71 // pred_check_branch
          %441 = sbr.rel (%p439) target = $region76
        $region75: #{cloud_yolo_forward.1} parent=71 // pred_region
          %p442 = scmp.lt.s32.totalorder %s22, 1
          %s443 = scalar_select %p442, %s22, 1
          %s444 = smul.addr %s443, 32
          %s445 = smul.addr %s444, 4
          %s446 = scalar_lea.vmem %s0, %s445
        $region76: #{cloud_yolo_forward.1} parent=71 // pred_fallthru
          _
      $region72: #{cloud_yolo_forward.1} parent=5 // pred_fallthru
        _
      %p447 = scmp.le.s32.totalorder 1, %s22
      %p448 = scmp.lt.s32.totalorder %s22, 3
      %p449 = pnand %p447, %p448
      %p450 = pneg %p449
      // Predicated region
      $region77: #{cloud_yolo_forward.1} parent=5 // pred_check
        _
      $region78: #{cloud_yolo_forward.1} parent=5 // pred_check_branch
        %452 = sbr.rel (%p449) target = $region80
      $region79: #{cloud_yolo_forward.1} parent=5 // pred_region
        %s453 = ssub.s32 %s22, 1
        // Predicated region
        $region81: #{cloud_yolo_forward.1} parent=79 // pred_check
          %p454 = pneg %p69
        $region82: #{cloud_yolo_forward.1} parent=79 // pred_check_branch
          %456 = sbr.rel (%p454) target = $region84
        $region83: #{cloud_yolo_forward.1} parent=79 // pred_region
          %457 = dma.done [#allocation3], 9216
        $region84: #{cloud_yolo_forward.1} parent=79 // pred_fallthru
          _
        %p458 = scmp.lt.s32.totalorder %s27, 1
        %s459 = scalar_select %p458, %s27, 1
        %s460 = smul.addr %s459, 32
        %s461 = smul.addr %s460, 4
        %s462 = scalar_lea.vmem %s0, %s461
        %p463 = pneg %p48
        %p464 = pneg %p45
        %p465 = pneg %p69
        %p466 = pneg %p66
        %p467 = pneg %p90
        %p468 = pneg %p87
        %p469 = pneg %p111
        %p470 = pneg %p108
        %p471 = pneg %p132
        %p472 = pneg %p129
        %p473 = pneg %p153
        %p474 = pneg %p150
        %p475 = pneg %p174
        %p476 = pneg %p171
        %p477 = pneg %p195
        %p478 = pneg %p192
        %p479 = pneg %p216
        %p480 = pneg %p213
        %p481 = pneg %p237
        %p482 = pneg %p234
        %p483 = pneg %p258
        %p484 = pneg %p255
        %p485 = pneg %p279
        %p486 = pneg %p276
        %p487 = pneg %p300
        %p488 = pneg %p297
        %p489 = pneg %p321
        %p490 = pneg %p318
        %p491 = pneg %p342
        %p492 = pneg %p339
        %p493 = pneg %p368
        %p494 = pneg %p365
        %p495 = scmp.lt.s32.totalorder %s27, 1
        %s496 = scalar_select %p495, %s27, 1
        %s497 = smul.addr %s496, 2
        %s498 = smul.addr %s497, 8
        %s499 = scalar_lea.vmem %s15, %s498
        %p500 = scmp.lt.s32.totalorder %s27, 1
        %s501 = scalar_select %p500, %s27, 1
        %s502 = smul.addr %s501, 32
        %s503 = smul.addr %s502, 4
        %s504 = scalar_lea.vmem %s0, %s503
        %p505 = scmp.lt.s32.totalorder %s27, 1
        %s506 = scalar_select %p505, %s27, 1
        %s507 = smul.addr %s506, 2
        %s508 = smul.addr %s507, 8
        %s509 = scalar_lea.vmem %s15, %s508
        %v511 = vld [vmem:[%s504] sm:$0xf]
        %v512 = vld [vmem:[%s504 + $0x4] sm:$0xf]
        %v513 = vld [vmem:[%s504 + $0x8] sm:$0xf]
        %v514 = vld [vmem:[%s504 + $0xc] sm:$0xf]
        %v515 = vld [vmem:[%s504 + $0x10] sm:$0xf]
        %v516 = vld [vmem:[%s504 + $0x14] sm:$0xf]
        %v517 = vld [vmem:[%s504 + $0x18] sm:$0xf]
        %v518 = vld [vmem:[%s504 + $0x1c] sm:$0xf]
        %v519 = vld [vmem:[%s504 + $0x20] sm:$0xf]
        %v520 = vld [vmem:[%s504 + $0x24] sm:$0xf]
        %v521 = vld [vmem:[%s504 + $0x28] sm:$0xf]
        %v522 = vld [vmem:[%s504 + $0x2c] sm:$0xf]
        %v523 = vld [vmem:[%s504 + $0x30] sm:$0xf]
        %v524 = vld [vmem:[%s504 + $0x34] sm:$0xf]
        %v525 = vld [vmem:[%s504 + $0x38] sm:$0xf]
        %v526 = vld [vmem:[%s504 + $0x3c] sm:$0xf]
        %v527 = vld [vmem:[%s504 + $0x40] sm:$0xf]
        %v528 = vld [vmem:[%s504 + $0x44] sm:$0xf]
        %v529 = vld [vmem:[%s504 + $0x48] sm:$0xf]
        %v530 = vld [vmem:[%s504 + $0x4c] sm:$0xf]
        %v531 = vld [vmem:[%s504 + $0x50] sm:$0xf]
        %v532 = vld [vmem:[%s504 + $0x54] sm:$0xf]
        %v533 = vld [vmem:[%s504 + $0x58] sm:$0xf]
        %v534 = vld [vmem:[%s504 + $0x5c] sm:$0xf]
        %v535 = vld [vmem:[%s504 + $0x60] sm:$0xf]
        %v536 = vld [vmem:[%s504 + $0x64] sm:$0xf]
        %v537 = vld [vmem:[%s504 + $0x68] sm:$0xf]
        %v538 = vld [vmem:[%s504 + $0x6c] sm:$0xf]
        %v539 = vld [vmem:[%s504 + $0x70] sm:$0xf]
        %v540 = vld [vmem:[%s504 + $0x74] sm:$0xf]
        %v541 = vld [vmem:[%s504 + $0x78] sm:$0xf]
        %v542 = vld [vmem:[%s504 + $0x7c] sm:$0xf]
        %v543 = vld [vmem:[#allocation2] sm:$0xff]
        %v544 = vld [vmem:[#allocation2 + $0x8] sm:$0xff]
        %v545 = vld [vmem:[#allocation2 + $0x10] sm:$0xff]
        %v546 = vld [vmem:[#allocation2 + $0x18] sm:$0xff]
        %v547 = vld [vmem:[#allocation2 + $0x20] sm:$0xff]
        %v548 = vld [vmem:[#allocation2 + $0x28] sm:$0xff]
        %v549 = vld [vmem:[#allocation2 + $0x30] sm:$0xff]
        %v550 = vld [vmem:[#allocation2 + $0x38] sm:$0xff]
        %v559 = vunpack.c.l.b16 %v543
        %v560 = vunpack.c.h.b16 %v543
        %v561 = vunpack.c.l.b16 %v544
        %v562 = vunpack.c.h.b16 %v544
        %v563 = vunpack.c.l.b16 %v545
        %v564 = vunpack.c.h.b16 %v545
        %v565 = vunpack.c.l.b16 %v546
        %v566 = vunpack.c.h.b16 %v546
        %v567 = vunpack.c.l.b16 %v547
        %v568 = vunpack.c.h.b16 %v547
        %v569 = vunpack.c.l.b16 %v548
        %v570 = vunpack.c.h.b16 %v548
        %v571 = vunpack.c.l.b16 %v549
        %v572 = vunpack.c.h.b16 %v549
        %v573 = vunpack.c.l.b16 %v550
        %v574 = vunpack.c.h.b16 %v550
        %v575 = vpack.c.b16 %v561, %v559
        %v576 = vpack.c.b16 %v562, %v560
        %v577 = vpack.c.b16 %v565, %v563
        %v578 = vpack.c.b16 %v566, %v564
        %v579 = vpack.c.b16 %v569, %v567
        %v580 = vpack.c.b16 %v570, %v568
        %v581 = vpack.c.b16 %v573, %v571
        %v582 = vpack.c.b16 %v574, %v572
        %v623 = vunpack.c.l.b16 %v511
        %v624 = vunpack.c.l.b16 %v512
        %v625 = vunpack.c.l.b16 %v513
        %v626 = vunpack.c.l.b16 %v514
        %v627 = vunpack.c.l.b16 %v515
        %v628 = vunpack.c.l.b16 %v516
        %v629 = vunpack.c.l.b16 %v517
        %v630 = vunpack.c.l.b16 %v518
        %v631 = vunpack.c.l.b16 %v519
        %v632 = vunpack.c.l.b16 %v520
        %v633 = vunpack.c.l.b16 %v521
        %v634 = vunpack.c.l.b16 %v522
        %v635 = vunpack.c.l.b16 %v523
        %v636 = vunpack.c.l.b16 %v524
        %v637 = vunpack.c.l.b16 %v525
        %v638 = vunpack.c.l.b16 %v526
        %v639 = vunpack.c.l.b16 %v527
        %v640 = vunpack.c.l.b16 %v528
        %v641 = vunpack.c.l.b16 %v529
        %v642 = vunpack.c.l.b16 %v530
        %v643 = vunpack.c.l.b16 %v531
        %v644 = vunpack.c.l.b16 %v532
        %v645 = vunpack.c.l.b16 %v533
        %v646 = vunpack.c.l.b16 %v534
        %v647 = vunpack.c.l.b16 %v535
        %v648 = vunpack.c.l.b16 %v536
        %v649 = vunpack.c.l.b16 %v537
        %v650 = vunpack.c.l.b16 %v538
        %v651 = vunpack.c.l.b16 %v539
        %v652 = vunpack.c.l.b16 %v540
        %v653 = vunpack.c.l.b16 %v541
        %v654 = vunpack.c.l.b16 %v542
        %v655 = vpack.c.b16 %v624, %v623
        %v656 = vpack.c.b16 %v626, %v625
        %v657 = vpack.c.b16 %v628, %v627
        %v658 = vpack.c.b16 %v630, %v629
        %v659 = vpack.c.b16 %v632, %v631
        %v660 = vpack.c.b16 %v634, %v633
        %v661 = vpack.c.b16 %v636, %v635
        %v662 = vpack.c.b16 %v638, %v637
        %v663 = vpack.c.b16 %v640, %v639
        %v664 = vpack.c.b16 %v642, %v641
        %v665 = vpack.c.b16 %v644, %v643
        %v666 = vpack.c.b16 %v646, %v645
        %v667 = vpack.c.b16 %v648, %v647
        %v668 = vpack.c.b16 %v650, %v649
        %v669 = vpack.c.b16 %v652, %v651
        %v670 = vpack.c.b16 %v654, %v653
        %687 = vmatprep.subr.bf16.mxu0 0
        %688 = vmatpush1.bf16.msra.mxu0 %v655
        %689 = vmatprep.subr.bf16.mxu0 0
        %690 = vmatpush1.bf16.msra.mxu0 %v656
        %691 = vmatprep.subr.bf16.mxu0 0
        %692 = vmatpush1.bf16.msra.mxu0 %v657
        %693 = vmatprep.subr.bf16.mxu0 0
        %694 = vmatpush1.bf16.msra.mxu0 %v658
        %695 = vmatprep.subr.bf16.mxu0 0
        %696 = vmatpush1.bf16.msra.mxu0 %v659
        %697 = vmatprep.subr.bf16.mxu0 0
        %698 = vmatpush1.bf16.msra.mxu0 %v660
        %699 = vmatprep.subr.bf16.mxu0 0
        %700 = vmatpush1.bf16.msra.mxu0 %v661
        %701 = vmatprep.subr.bf16.mxu0 0
        %702 = vmatpush1.bf16.msra.mxu0 %v662
        %703 = vmatprep.subr.bf16.mxu0 0
        %704 = vmatpush1.bf16.msra.mxu0 %v663
        %705 = vmatprep.subr.bf16.mxu0 0
        %706 = vmatpush1.bf16.msra.mxu0 %v664
        %707 = vmatprep.subr.bf16.mxu0 0
        %708 = vmatpush1.bf16.msra.mxu0 %v665
        %709 = vmatprep.subr.bf16.mxu0 0
        %710 = vmatpush1.bf16.msra.mxu0 %v666
        %711 = vmatprep.subr.bf16.mxu0 0
        %712 = vmatpush1.bf16.msra.mxu0 %v667
        %713 = vmatprep.subr.bf16.mxu0 0
        %714 = vmatpush1.bf16.msra.mxu0 %v668
        %715 = vmatprep.subr.bf16.mxu0 0
        %716 = vmatpush1.bf16.msra.mxu0 %v669
        %717 = vmatprep.subr.bf16.mxu0 0
        %718 = vmatpush1.bf16.msra.mxu0 %v670
        %719 = vmatprep.mubr.bf16.mxu0 %v576
        %720 = vmatmul.mubr.bf16.gmra.mrb[0].mxu0 %v575
        %v721 = vpop.f32.mrb[0].mxu0
        %v722 = vadd.f32 0.0, %v721
        %v723 = vpop.f32.mrb[0].mxu0
        %v724 = vpop.f32.mrb[0].mxu0
        %v725 = vadd.f32 0.0, %v724
        %v726 = vpop.f32.mrb[0].mxu0
        %727 = vmatprep.mubr.bf16.mxu0 %v578
        %728 = vmatmul.mubr.bf16.gmra.mrb[0].mxu0 %v577
        %v729 = vpop.f32.mrb[0].mxu0
        %v730 = vadd.f32 0.0, %v729
        %v731 = vpop.f32.mrb[0].mxu0
        %v732 = vpop.f32.mrb[0].mxu0
        %v733 = vadd.f32 0.0, %v732
        %v734 = vpop.f32.mrb[0].mxu0
        %735 = vmatprep.mubr.bf16.mxu0 %v580
        %736 = vmatmul.mubr.bf16.gmra.mrb[0].mxu0 %v579
        %v737 = vpop.f32.mrb[0].mxu0
        %v738 = vadd.f32 0.0, %v737
        %v739 = vpop.f32.mrb[0].mxu0
        %v740 = vpop.f32.mrb[0].mxu0
        %v741 = vadd.f32 0.0, %v740
        %v742 = vpop.f32.mrb[0].mxu0
        %743 = vmatprep.mubr.bf16.mxu0 %v582
        %744 = vmatmul.mubr.bf16.gmra.mrb[0].mxu0 %v581
        %v745 = vpop.f32.mrb[0].mxu0
        %v746 = vadd.f32 0.0, %v745
        %v747 = vpop.f32.mrb[0].mxu0
        %v748 = vpop.f32.mrb[0].mxu0
        %v749 = vadd.f32 0.0, %v748
        %v750 = vpop.f32.mrb[0].mxu0
        %751 = vdwg.mxu0
        %v752 = vpack.c.bf16 %v725, %v722
        %v753 = vpack.c.bf16 %v733, %v730
        %v754 = vpack.c.bf16 %v741, %v738
        %v755 = vpack.c.bf16 %v749, %v746
        %v756 = vld [vmem:[%s2] sm:$0x3]
        %s757 = scalar_lea.vmem [#allocation2], 64
        %v758 = vld [vmem:[%s757] sm:$0xff]
        %v759 = vld [vmem:[%s757 + $0x8] sm:$0xff]
        %v760 = vld [vmem:[%s757 + $0x10] sm:$0xff]
        %v761 = vld [vmem:[%s757 + $0x18] sm:$0xff]
        %v762 = vld [vmem:[%s757 + $0x20] sm:$0xff]
        %v763 = vld [vmem:[%s757 + $0x28] sm:$0xff]
        %v764 = vld [vmem:[%s757 + $0x30] sm:$0xff]
        %v765 = vld [vmem:[%s757 + $0x38] sm:$0xff]
        %v774 = vunpack.c.l.b16 %v758
        %v775 = vunpack.c.h.b16 %v758
        %v776 = vunpack.c.l.b16 %v759
        %v777 = vunpack.c.h.b16 %v759
        %v778 = vunpack.c.l.b16 %v760
        %v779 = vunpack.c.h.b16 %v760
        %v780 = vunpack.c.l.b16 %v761
        %v781 = vunpack.c.h.b16 %v761
        %v782 = vunpack.c.l.b16 %v762
        %v783 = vunpack.c.h.b16 %v762
        %v784 = vunpack.c.l.b16 %v763
        %v785 = vunpack.c.h.b16 %v763
        %v786 = vunpack.c.l.b16 %v764
        %v787 = vunpack.c.h.b16 %v764
        %v788 = vunpack.c.l.b16 %v765
        %v789 = vunpack.c.h.b16 %v765
        %v790 = vpack.c.b16 %v776, %v774
        %v791 = vpack.c.b16 %v777, %v775
        %v792 = vpack.c.b16 %v780, %v778
        %v793 = vpack.c.b16 %v781, %v779
        %v794 = vpack.c.b16 %v784, %v782
        %v795 = vpack.c.b16 %v785, %v783
        %v796 = vpack.c.b16 %v788, %v786
        %v797 = vpack.c.b16 %v789, %v787
        %806 = vmatprep.subr.bf16.mxu0 0
        %807 = vmatpush1.bf16.msra.mxu0 %v655
        %808 = vmatprep.subr.bf16.mxu0 0
        %809 = vmatpush1.bf16.msra.mxu0 %v656
        %810 = vmatprep.subr.bf16.mxu0 0
        %811 = vmatpush1.bf16.msra.mxu0 %v657
        %812 = vmatprep.subr.bf16.mxu0 0
        %813 = vmatpush1.bf16.msra.mxu0 %v658
        %814 = vmatprep.subr.bf16.mxu0 0
        %815 = vmatpush1.bf16.msra.mxu0 %v659
        %816 = vmatprep.subr.bf16.mxu0 0
        %817 = vmatpush1.bf16.msra.mxu0 %v660
        %818 = vmatprep.subr.bf16.mxu0 0
        %819 = vmatpush1.bf16.msra.mxu0 %v661
        %820 = vmatprep.subr.bf16.mxu0 0
        %821 = vmatpush1.bf16.msra.mxu0 %v662
        %822 = vmatprep.subr.bf16.mxu0 0
        %823 = vmatpush1.bf16.msra.mxu0 %v663
        %824 = vmatprep.subr.bf16.mxu0 0
        %825 = vmatpush1.bf16.msra.mxu0 %v664
        %826 = vmatprep.subr.bf16.mxu0 0
        %827 = vmatpush1.bf16.msra.mxu0 %v665
        %828 = vmatprep.subr.bf16.mxu0 0
        %829 = vmatpush1.bf16.msra.mxu0 %v666
        %830 = vmatprep.subr.bf16.mxu0 0
        %831 = vmatpush1.bf16.msra.mxu0 %v667
        %832 = vmatprep.subr.bf16.mxu0 0
        %833 = vmatpush1.bf16.msra.mxu0 %v668
        %834 = vmatprep.subr.bf16.mxu0 0
        %835 = vmatpush1.bf16.msra.mxu0 %v669
        %836 = vmatprep.subr.bf16.mxu0 0
        %837 = vmatpush1.bf16.msra.mxu0 %v670
        %838 = vmatprep.mubr.bf16.mxu0 %v791
        %839 = vmatmul.mubr.bf16.gmra.mrb[0].mxu0 %v790
        %v840 = vpop.f32.mrb[0].mxu0
        %v841 = vadd.f32 0.0, %v840
        %v842 = vpop.f32.mrb[0].mxu0
        %v843 = vpop.f32.mrb[0].mxu0
        %v844 = vadd.f32 0.0, %v843
        %v845 = vpop.f32.mrb[0].mxu0
        %846 = vmatprep.mubr.bf16.mxu0 %v793
        %847 = vmatmul.mubr.bf16.gmra.mrb[0].mxu0 %v792
        %v848 = vpop.f32.mrb[0].mxu0
        %v849 = vadd.f32 0.0, %v848
        %v850 = vpop.f32.mrb[0].mxu0
        %v851 = vpop.f32.mrb[0].mxu0
        %v852 = vadd.f32 0.0, %v851
        %v853 = vpop.f32.mrb[0].mxu0
        %854 = vmatprep.mubr.bf16.mxu0 %v795
        %855 = vmatmul.mubr.bf16.gmra.mrb[0].mxu0 %v794
        %v856 = vpop.f32.mrb[0].mxu0
        %v857 = vadd.f32 0.0, %v856
        %v858 = vpop.f32.mrb[0].mxu0
        %v859 = vpop.f32.mrb[0].mxu0
        %v860 = vadd.f32 0.0, %v859
        %v861 = vpop.f32.mrb[0].mxu0
        %862 = vmatprep.mubr.bf16.mxu0 %v797
        %863 = vmatmul.mubr.bf16.gmra.mrb[0].mxu0 %v796
        %v864 = vpop.f32.mrb[0].mxu0
        %v865 = vadd.f32 0.0, %v864
        %v866 = vpop.f32.mrb[0].mxu0
        %v867 = vpop.f32.mrb[0].mxu0
        %v868 = vadd.f32 0.0, %v867
        %v869 = vpop.f32.mrb[0].mxu0
        %870 = vdwg.mxu0
        %v871 = vpack.c.bf16 %v844, %v841
        %v872 = vpack.c.bf16 %v852, %v849
        %v873 = vpack.c.bf16 %v860, %v857
        %v874 = vpack.c.bf16 %v868, %v865
        %s875 = scalar_lea.vmem %s2, 2
        %v876 = vld [vmem:[%s875] sm:$0x3]
        %vm877 = vcmask 23552
        %v879 = vsel %vm877, %v871, 0
        %v882 = vsel %vm877, %v872, 0
        %v885 = vsel %vm877, %v873, 0
        %v888 = vsel %vm877, %v874, 0
        %vm890 = vcmask 1040384
        %vm891 = vcmask 1041408
        %v892 = vsel %vm890, 4294967295, 65535
        %v893 = vsel %vm891, %v892, 0
        %v895 = vand.u32 %v876, %v893
        %897 = vmatprep.subr.bf16.mxu0 0
        %898 = vmatpush1.bf16.msra.mxu0 %v895
        %899 = vmatprep.subr.bf16.mxu0 0
        %900 = vmatpush1.bf16.msra.mxu0 0
        %901 = vmatprep.subr.bf16.mxu0 0
        %902 = vmatpush1.bf16.msra.mxu0 0
        %903 = vmatprep.subr.bf16.mxu0 0
        %904 = vmatpush1.bf16.msra.mxu0 0
        %905 = vmatprep.subr.bf16.mxu0 0
        %906 = vmatpush1.bf16.msra.mxu0 0
        %907 = vmatprep.subr.bf16.mxu0 0
        %908 = vmatpush1.bf16.msra.mxu0 0
        %909 = vmatprep.subr.bf16.mxu0 0
        %910 = vmatpush1.bf16.msra.mxu0 0
        %911 = vmatprep.subr.bf16.mxu0 0
        %912 = vmatpush1.bf16.msra.mxu0 0
        %913 = vmatprep.subr.bf16.mxu0 0
        %914 = vmatpush1.bf16.msra.mxu0 0
        %915 = vmatprep.subr.bf16.mxu0 0
        %916 = vmatpush1.bf16.msra.mxu0 0
        %917 = vmatprep.subr.bf16.mxu0 0
        %918 = vmatpush1.bf16.msra.mxu0 0
        %919 = vmatprep.subr.bf16.mxu0 0
        %920 = vmatpush1.bf16.msra.mxu0 0
        %921 = vmatprep.subr.bf16.mxu0 0
        %922 = vmatpush1.bf16.msra.mxu0 0
        %923 = vmatprep.subr.bf16.mxu0 0
        %924 = vmatpush1.bf16.msra.mxu0 0
        %925 = vmatprep.subr.bf16.mxu0 0
        %926 = vmatpush1.bf16.msra.mxu0 0
        %927 = vmatprep.subr.bf16.mxu0 0
        %928 = vmatpush1.bf16.msra.mxu0 0
        %929 = vmatprep.mubr.bf16.mxu0 0
        %930 = vmatmul.mubr.bf16.gmra.mrb[0].mxu0 %v879
        %v931 = vpop.f32.mrb[0].mxu0
        %v932 = vadd.f32 0.0, %v931
        %v933 = vpop.f32.mrb[0].mxu0
        %v934 = vpop.f32.mrb[0].mxu0
        %v935 = vadd.f32 0.0, %v934
        %v936 = vpop.f32.mrb[0].mxu0
        %937 = vmatprep.mubr.bf16.mxu0 0
        %938 = vmatmul.mubr.bf16.gmra.mrb[0].mxu0 %v882
        %v939 = vpop.f32.mrb[0].mxu0
        %v940 = vadd.f32 0.0, %v939
        %v941 = vpop.f32.mrb[0].mxu0
        %v942 = vpop.f32.mrb[0].mxu0
        %v943 = vadd.f32 0.0, %v942
        %v944 = vpop.f32.mrb[0].mxu0
        %945 = vmatprep.mubr.bf16.mxu0 0
        %946 = vmatmul.mubr.bf16.gmra.mrb[0].mxu0 %v885
        %v947 = vpop.f32.mrb[0].mxu0
        %v948 = vadd.f32 0.0, %v947
        %v949 = vpop.f32.mrb[0].mxu0
        %v950 = vpop.f32.mrb[0].mxu0
        %v951 = vadd.f32 0.0, %v950
        %v952 = vpop.f32.mrb[0].mxu0
        %953 = vmatprep.mubr.bf16.mxu0 0
        %954 = vmatmul.mubr.bf16.gmra.mrb[0].mxu0 %v888
        %v955 = vpop.f32.mrb[0].mxu0
        %v956 = vadd.f32 0.0, %v955
        %v957 = vpop.f32.mrb[0].mxu0
        %v958 = vpop.f32.mrb[0].mxu0
        %v959 = vadd.f32 0.0, %v958
        %v960 = vpop.f32.mrb[0].mxu0
        %961 = vdwg.mxu0
        %v963 = vsel %vm877, %v752, 0
        %v966 = vsel %vm877, %v753, 0
        %v969 = vsel %vm877, %v754, 0
        %v972 = vsel %vm877, %v755, 0
        %v975 = vand.u32 %v756, %v893
        %977 = vmatprep.subr.bf16.mxu0 0
        %978 = vmatpush1.bf16.msra.mxu0 %v975
        %979 = vmatprep.subr.bf16.mxu0 0
        %980 = vmatpush1.bf16.msra.mxu0 0
        %981 = vmatprep.subr.bf16.mxu0 0
        %982 = vmatpush1.bf16.msra.mxu0 0
        %983 = vmatprep.subr.bf16.mxu0 0
        %984 = vmatpush1.bf16.msra.mxu0 0
        %985 = vmatprep.subr.bf16.mxu0 0
        %986 = vmatpush1.bf16.msra.mxu0 0
        %987 = vmatprep.subr.bf16.mxu0 0
        %988 = vmatpush1.bf16.msra.mxu0 0
        %989 = vmatprep.subr.bf16.mxu0 0
        %990 = vmatpush1.bf16.msra.mxu0 0
        %991 = vmatprep.subr.bf16.mxu0 0
        %992 = vmatpush1.bf16.msra.mxu0 0
        %993 = vmatprep.subr.bf16.mxu0 0
        %994 = vmatpush1.bf16.msra.mxu0 0
        %995 = vmatprep.subr.bf16.mxu0 0
        %996 = vmatpush1.bf16.msra.mxu0 0
        %997 = vmatprep.subr.bf16.mxu0 0
        %998 = vmatpush1.bf16.msra.mxu0 0
        %999 = vmatprep.subr.bf16.mxu0 0
        %1000 = vmatpush1.bf16.msra.mxu0 0
        %1001 = vmatprep.subr.bf16.mxu0 0
        %1002 = vmatpush1.bf16.msra.mxu0 0
        %1003 = vmatprep.subr.bf16.mxu0 0
        %1004 = vmatpush1.bf16.msra.mxu0 0
        %1005 = vmatprep.subr.bf16.mxu0 0
        %1006 = vmatpush1.bf16.msra.mxu0 0
        %1007 = vmatprep.subr.bf16.mxu0 0
        %1008 = vmatpush1.bf16.msra.mxu0 0
        %1009 = vmatprep.mubr.bf16.mxu0 0
        %1010 = vmatmul.mubr.bf16.gmra.mrb[0].mxu0 %v963
        %v1011 = vpop.f32.mrb[0].mxu0
        %v1012 = vadd.f32 %v932, %v1011
        %v1013 = vpop.f32.mrb[0].mxu0
        %v1014 = vpop.f32.mrb[0].mxu0
        %v1015 = vadd.f32 %v935, %v1014
        %v1016 = vpop.f32.mrb[0].mxu0
        %1017 = vmatprep.mubr.bf16.mxu0 0
        %1018 = vmatmul.mubr.bf16.gmra.mrb[0].mxu0 %v966
        %v1019 = vpop.f32.mrb[0].mxu0
        %v1020 = vadd.f32 %v940, %v1019
        %v1021 = vpop.f32.mrb[0].mxu0
        %v1022 = vpop.f32.mrb[0].mxu0
        %v1023 = vadd.f32 %v943, %v1022
        %v1024 = vpop.f32.mrb[0].mxu0
        %1025 = vmatprep.mubr.bf16.mxu0 0
        %1026 = vmatmul.mubr.bf16.gmra.mrb[0].mxu0 %v969
        %v1027 = vpop.f32.mrb[0].mxu0
        %v1028 = vadd.f32 %v948, %v1027
        %v1029 = vpop.f32.mrb[0].mxu0
        %v1030 = vpop.f32.mrb[0].mxu0
        %v1031 = vadd.f32 %v951, %v1030
        %v1032 = vpop.f32.mrb[0].mxu0
        %1033 = vmatprep.mubr.bf16.mxu0 0
        %1034 = vmatmul.mubr.bf16.gmra.mrb[0].mxu0 %v972
        %v1035 = vpop.f32.mrb[0].mxu0
        %v1036 = vadd.f32 %v956, %v1035
        %v1037 = vpop.f32.mrb[0].mxu0
        %v1038 = vpop.f32.mrb[0].mxu0
        %v1039 = vadd.f32 %v959, %v1038
        %v1040 = vpop.f32.mrb[0].mxu0
        %1041 = vdwg.mxu0
        %s1042 = scalar_lea.vmem [#allocation2], 128
        %v1043 = vld [vmem:[%s1042] sm:$0xff]
        %v1044 = vld [vmem:[%s1042 + $0x8] sm:$0xff]
        %v1045 = vld [vmem:[%s1042 + $0x10] sm:$0xff]
        %v1046 = vld [vmem:[%s1042 + $0x18] sm:$0xff]
        %v1047 = vld [vmem:[%s1042 + $0x20] sm:$0xff]
        %v1048 = vld [vmem:[%s1042 + $0x28] sm:$0xff]
        %v1049 = vld [vmem:[%s1042 + $0x30] sm:$0xff]
        %v1050 = vld [vmem:[%s1042 + $0x38] sm:$0xff]
        %v1059 = vunpack.c.l.b16 %v1043
        %v1060 = vunpack.c.h.b16 %v1043
        %v1061 = vunpack.c.l.b16 %v1044
        %v1062 = vunpack.c.h.b16 %v1044
        %v1063 = vunpack.c.l.b16 %v1045
        %v1064 = vunpack.c.h.b16 %v1045
        %v1065 = vunpack.c.l.b16 %v1046
        %v1066 = vunpack.c.h.b16 %v1046
        %v1067 = vunpack.c.l.b16 %v1047
        %v1068 = vunpack.c.h.b16 %v1047
        %v1069 = vunpack.c.l.b16 %v1048
        %v1070 = vunpack.c.h.b16 %v1048
        %v1071 = vunpack.c.l.b16 %v1049
        %v1072 = vunpack.c.h.b16 %v1049
        %v1073 = vunpack.c.l.b16 %v1050
        %v1074 = vunpack.c.h.b16 %v1050
        %v1075 = vpack.c.b16 %v1061, %v1059
        %v1076 = vpack.c.b16 %v1062, %v1060
        %v1077 = vpack.c.b16 %v1065, %v1063
        %v1078 = vpack.c.b16 %v1066, %v1064
        %v1079 = vpack.c.b16 %v1069, %v1067
        %v1080 = vpack.c.b16 %v1070, %v1068
        %v1081 = vpack.c.b16 %v1073, %v1071
        %v1082 = vpack.c.b16 %v1074, %v1072
        %1091 = vmatprep.subr.bf16.mxu0 0
        %1092 = vmatpush1.bf16.msra.mxu0 %v655
        %1093 = vmatprep.subr.bf16.mxu0 0
        %1094 = vmatpush1.bf16.msra.mxu0 %v656
        %1095 = vmatprep.subr.bf16.mxu0 0
        %1096 = vmatpush1.bf16.msra.mxu0 %v657
        %1097 = vmatprep.subr.bf16.mxu0 0
        %1098 = vmatpush1.bf16.msra.mxu0 %v658
        %1099 = vmatprep.subr.bf16.mxu0 0
        %1100 = vmatpush1.bf16.msra.mxu0 %v659
        %1101 = vmatprep.subr.bf16.mxu0 0
        %1102 = vmatpush1.bf16.msra.mxu0 %v660
        %1103 = vmatprep.subr.bf16.mxu0 0
        %1104 = vmatpush1.bf16.msra.mxu0 %v661
        %1105 = vmatprep.subr.bf16.mxu0 0
        %1106 = vmatpush1.bf16.msra.mxu0 %v662
        %1107 = vmatprep.subr.bf16.mxu0 0
        %1108 = vmatpush1.bf16.msra.mxu0 %v663
        %1109 = vmatprep.subr.bf16.mxu0 0
        %1110 = vmatpush1.bf16.msra.mxu0 %v664
        %1111 = vmatprep.subr.bf16.mxu0 0
        %1112 = vmatpush1.bf16.msra.mxu0 %v665
        %1113 = vmatprep.subr.bf16.mxu0 0
        %1114 = vmatpush1.bf16.msra.mxu0 %v666
        %1115 = vmatprep.subr.bf16.mxu0 0
        %1116 = vmatpush1.bf16.msra.mxu0 %v667
        %1117 = vmatprep.subr.bf16.mxu0 0
        %1118 = vmatpush1.bf16.msra.mxu0 %v668
        %1119 = vmatprep.subr.bf16.mxu0 0
        %1120 = vmatpush1.bf16.msra.mxu0 %v669
        %1121 = vmatprep.subr.bf16.mxu0 0
        %1122 = vmatpush1.bf16.msra.mxu0 %v670
        %1123 = vmatprep.mubr.bf16.mxu0 %v1076
        %1124 = vmatmul.mubr.bf16.gmra.mrb[0].mxu0 %v1075
        %v1125 = vpop.f32.mrb[0].mxu0
        %v1126 = vadd.f32 0.0, %v1125
        %v1127 = vpop.f32.mrb[0].mxu0
        %v1128 = vpop.f32.mrb[0].mxu0
        %v1129 = vadd.f32 0.0, %v1128
        %v1130 = vpop.f32.mrb[0].mxu0
        %1131 = vmatprep.mubr.bf16.mxu0 %v1078
        %1132 = vmatmul.mubr.bf16.gmra.mrb[0].mxu0 %v1077
        %v1133 = vpop.f32.mrb[0].mxu0
        %v1134 = vadd.f32 0.0, %v1133
        %v1135 = vpop.f32.mrb[0].mxu0
        %v1136 = vpop.f32.mrb[0].mxu0
        %v1137 = vadd.f32 0.0, %v1136
        %v1138 = vpop.f32.mrb[0].mxu0
        %1139 = vmatprep.mubr.bf16.mxu0 %v1080
        %1140 = vmatmul.mubr.bf16.gmra.mrb[0].mxu0 %v1079
        %v1141 = vpop.f32.mrb[0].mxu0
        %v1142 = vadd.f32 0.0, %v1141
        %v1143 = vpop.f32.mrb[0].mxu0
        %v1144 = vpop.f32.mrb[0].mxu0
        %v1145 = vadd.f32 0.0, %v1144
        %v1146 = vpop.f32.mrb[0].mxu0
        %1147 = vmatprep.mubr.bf16.mxu0 %v1082
        %1148 = vmatmul.mubr.bf16.gmra.mrb[0].mxu0 %v1081
        %v1149 = vpop.f32.mrb[0].mxu0
        %v1150 = vadd.f32 0.0, %v1149
        %v1151 = vpop.f32.mrb[0].mxu0
        %v1152 = vpop.f32.mrb[0].mxu0
        %v1153 = vadd.f32 0.0, %v1152
        %v1154 = vpop.f32.mrb[0].mxu0
        %1155 = vdwg.mxu0
        %v1156 = vpack.c.bf16 %v1129, %v1126
        %v1157 = vpack.c.bf16 %v1137, %v1134
        %v1158 = vpack.c.bf16 %v1145, %v1142
        %v1159 = vpack.c.bf16 %v1153, %v1150
        %s1160 = scalar_lea.vmem %s2, 4
        %v1161 = vld [vmem:[%s1160] sm:$0x3]
        %v1163 = vsel %vm877, %v1156, 0
        %v1166 = vsel %vm877, %v1157, 0
        %v1169 = vsel %vm877, %v1158, 0
        %v1172 = vsel %vm877, %v1159, 0
        %v1175 = vand.u32 %v1161, %v893
        %1177 = vmatprep.subr.bf16.mxu0 0
        %1178 = vmatpush1.bf16.msra.mxu0 %v1175
        %1179 = vmatprep.subr.bf16.mxu0 0
        %1180 = vmatpush1.bf16.msra.mxu0 0
        %1181 = vmatprep.subr.bf16.mxu0 0
        %1182 = vmatpush1.bf16.msra.mxu0 0
        %1183 = vmatprep.subr.bf16.mxu0 0
        %1184 = vmatpush1.bf16.msra.mxu0 0
        %1185 = vmatprep.subr.bf16.mxu0 0
        %1186 = vmatpush1.bf16.msra.mxu0 0
        %1187 = vmatprep.subr.bf16.mxu0 0
        %1188 = vmatpush1.bf16.msra.mxu0 0
        %1189 = vmatprep.subr.bf16.mxu0 0
        %1190 = vmatpush1.bf16.msra.mxu0 0
        %1191 = vmatprep.subr.bf16.mxu0 0
        %1192 = vmatpush1.bf16.msra.mxu0 0
        %1193 = vmatprep.subr.bf16.mxu0 0
        %1194 = vmatpush1.bf16.msra.mxu0 0
        %1195 = vmatprep.subr.bf16.mxu0 0
        %1196 = vmatpush1.bf16.msra.mxu0 0
        %1197 = vmatprep.subr.bf16.mxu0 0
        %1198 = vmatpush1.bf16.msra.mxu0 0
        %1199 = vmatprep.subr.bf16.mxu0 0
        %1200 = vmatpush1.bf16.msra.mxu0 0
        %1201 = vmatprep.subr.bf16.mxu0 0
        %1202 = vmatpush1.bf16.msra.mxu0 0
        %1203 = vmatprep.subr.bf16.mxu0 0
        %1204 = vmatpush1.bf16.msra.mxu0 0
        %1205 = vmatprep.subr.bf16.mxu0 0
        %1206 = vmatpush1.bf16.msra.mxu0 0
        %1207 = vmatprep.subr.bf16.mxu0 0
        %1208 = vmatpush1.bf16.msra.mxu0 0
        %1209 = vmatprep.mubr.bf16.mxu0 0
        %1210 = vmatmul.mubr.bf16.gmra.mrb[0].mxu0 %v1163
        %v1211 = vpop.f32.mrb[0].mxu0
        %v1212 = vadd.f32 0.0, %v1211
        %v1213 = vpop.f32.mrb[0].mxu0
        %v1214 = vpop.f32.mrb[0].mxu0
        %v1215 = vadd.f32 0.0, %v1214
        %v1216 = vpop.f32.mrb[0].mxu0
        %1217 = vmatprep.mubr.bf16.mxu0 0
        %1218 = vmatmul.mubr.bf16.gmra.mrb[0].mxu0 %v1166
        %v1219 = vpop.f32.mrb[0].mxu0
        %v1220 = vadd.f32 0.0, %v1219
        %v1221 = vpop.f32.mrb[0].mxu0
        %v1222 = vpop.f32.mrb[0].mxu0
        %v1223 = vadd.f32 0.0, %v1222
        %v1224 = vpop.f32.mrb[0].mxu0
        %1225 = vmatprep.mubr.bf16.mxu0 0
        %1226 = vmatmul.mubr.bf16.gmra.mrb[0].mxu0 %v1169
        %v1227 = vpop.f32.mrb[0].mxu0
        %v1228 = vadd.f32 0.0, %v1227
        %v1229 = vpop.f32.mrb[0].mxu0
        %v1230 = vpop.f32.mrb[0].mxu0
        %v1231 = vadd.f32 0.0, %v1230
        %v1232 = vpop.f32.mrb[0].mxu0
        %1233 = vmatprep.mubr.bf16.mxu0 0
        %1234 = vmatmul.mubr.bf16.gmra.mrb[0].mxu0 %v1172
        %v1235 = vpop.f32.mrb[0].mxu0
        %v1236 = vadd.f32 0.0, %v1235
        %v1237 = vpop.f32.mrb[0].mxu0
        %v1238 = vpop.f32.mrb[0].mxu0
        %v1239 = vadd.f32 0.0, %v1238
        %v1240 = vpop.f32.mrb[0].mxu0
        %1241 = vdwg.mxu0
        %v1242 = vadd.f32 %v1012, %v1212
        %v1243 = vadd.f32 %v1015, %v1215
        %v1244 = vadd.f32 %v1020, %v1220
        %v1245 = vadd.f32 %v1023, %v1223
        %v1246 = vadd.f32 %v1028, %v1228
        %v1247 = vadd.f32 %v1031, %v1231
        %v1248 = vadd.f32 %v1036, %v1236
        %v1249 = vadd.f32 %v1039, %v1239
        %s1250 = scalar_lea.vmem [#allocation2], 192
        %v1251 = vld [vmem:[%s1250] sm:$0xff]
        %v1252 = vld [vmem:[%s1250 + $0x8] sm:$0xff]
        %v1253 = vld [vmem:[%s1250 + $0x10] sm:$0xff]
        %v1254 = vld [vmem:[%s1250 + $0x18] sm:$0xff]
        %v1255 = vld [vmem:[%s1250 + $0x20] sm:$0xff]
        %v1256 = vld [vmem:[%s1250 + $0x28] sm:$0xff]
        %v1257 = vld [vmem:[%s1250 + $0x30] sm:$0xff]
        %v1258 = vld [vmem:[%s1250 + $0x38] sm:$0xff]
        %v1267 = vunpack.c.l.b16 %v1251
        %v1268 = vunpack.c.h.b16 %v1251
        %v1269 = vunpack.c.l.b16 %v1252
        %v1270 = vunpack.c.h.b16 %v1252
        %v1271 = vunpack.c.l.b16 %v1253
        %v1272 = vunpack.c.h.b16 %v1253
        %v1273 = vunpack.c.l.b16 %v1254
        %v1274 = vunpack.c.h.b16 %v1254
        %v1275 = vunpack.c.l.b16 %v1255
        %v1276 = vunpack.c.h.b16 %v1255
        %v1277 = vunpack.c.l.b16 %v1256
        %v1278 = vunpack.c.h.b16 %v1256
        %v1279 = vunpack.c.l.b16 %v1257
        %v1280 = vunpack.c.h.b16 %v1257
        %v1281 = vunpack.c.l.b16 %v1258
        %v1282 = vunpack.c.h.b16 %v1258
        %v1283 = vpack.c.b16 %v1269, %v1267
        %v1284 = vpack.c.b16 %v1270, %v1268
        %v1285 = vpack.c.b16 %v1273, %v1271
        %v1286 = vpack.c.b16 %v1274, %v1272
        %v1287 = vpack.c.b16 %v1277, %v1275
        %v1288 = vpack.c.b16 %v1278, %v1276
        %v1289 = vpack.c.b16 %v1281, %v1279
        %v1290 = vpack.c.b16 %v1282, %v1280
        %1299 = vmatprep.subr.bf16.mxu0 0
        %1300 = vmatpush1.bf16.msra.mxu0 %v655
        %1301 = vmatprep.subr.bf16.mxu0 0
        %1302 = vmatpush1.bf16.msra.mxu0 %v656
        %1303 = vmatprep.subr.bf16.mxu0 0
        %1304 = vmatpush1.bf16.msra.mxu0 %v657
        %1305 = vmatprep.subr.bf16.mxu0 0
        %1306 = vmatpush1.bf16.msra.mxu0 %v658
        %1307 = vmatprep.subr.bf16.mxu0 0
        %1308 = vmatpush1.bf16.msra.mxu0 %v659
        %1309 = vmatprep.subr.bf16.mxu0 0
        %1310 = vmatpush1.bf16.msra.mxu0 %v660
        %1311 = vmatprep.subr.bf16.mxu0 0
        %1312 = vmatpush1.bf16.msra.mxu0 %v661
        %1313 = vmatprep.subr.bf16.mxu0 0
        %1314 = vmatpush1.bf16.msra.mxu0 %v662
        %1315 = vmatprep.subr.bf16.mxu0 0
        %1316 = vmatpush1.bf16.msra.mxu0 %v663
        %1317 = vmatprep.subr.bf16.mxu0 0
        %1318 = vmatpush1.bf16.msra.mxu0 %v664
        %1319 = vmatprep.subr.bf16.mxu0 0
        %1320 = vmatpush1.bf16.msra.mxu0 %v665
        %1321 = vmatprep.subr.bf16.mxu0 0
        %1322 = vmatpush1.bf16.msra.mxu0 %v666
        %1323 = vmatprep.subr.bf16.mxu0 0
        %1324 = vmatpush1.bf16.msra.mxu0 %v667
        %1325 = vmatprep.subr.bf16.mxu0 0
        %1326 = vmatpush1.bf16.msra.mxu0 %v668
        %1327 = vmatprep.subr.bf16.mxu0 0
        %1328 = vmatpush1.bf16.msra.mxu0 %v669
        %1329 = vmatprep.subr.bf16.mxu0 0
        %1330 = vmatpush1.bf16.msra.mxu0 %v670
        %1331 = vmatprep.mubr.bf16.mxu0 %v1284
        %1332 = vmatmul.mubr.bf16.gmra.mrb[0].mxu0 %v1283
        %v1333 = vpop.f32.mrb[0].mxu0
        %v1334 = vadd.f32 0.0, %v1333
        %v1335 = vpop.f32.mrb[0].mxu0
        %v1336 = vpop.f32.mrb[0].mxu0
        %v1337 = vadd.f32 0.0, %v1336
        %v1338 = vpop.f32.mrb[0].mxu0
        %1339 = vmatprep.mubr.bf16.mxu0 %v1286
        %1340 = vmatmul.mubr.bf16.gmra.mrb[0].mxu0 %v1285
        %v1341 = vpop.f32.mrb[0].mxu0
        %v1342 = vadd.f32 0.0, %v1341
        %v1343 = vpop.f32.mrb[0].mxu0
        %v1344 = vpop.f32.mrb[0].mxu0
        %v1345 = vadd.f32 0.0, %v1344
        %v1346 = vpop.f32.mrb[0].mxu0
        %1347 = vmatprep.mubr.bf16.mxu0 %v1288
        %1348 = vmatmul.mubr.bf16.gmra.mrb[0].mxu0 %v1287
        %v1349 = vpop.f32.mrb[0].mxu0
        %v1350 = vadd.f32 0.0, %v1349
        %v1351 = vpop.f32.mrb[0].mxu0
        %v1352 = vpop.f32.mrb[0].mxu0
        %v1353 = vadd.f32 0.0, %v1352
        %v1354 = vpop.f32.mrb[0].mxu0
        %1355 = vmatprep.mubr.bf16.mxu0 %v1290
        %1356 = vmatmul.mubr.bf16.gmra.mrb[0].mxu0 %v1289
        %v1357 = vpop.f32.mrb[0].mxu0
        %v1358 = vadd.f32 0.0, %v1357
        %v1359 = vpop.f32.mrb[0].mxu0
        %v1360 = vpop.f32.mrb[0].mxu0
        %v1361 = vadd.f32 0.0, %v1360
        %v1362 = vpop.f32.mrb[0].mxu0
        %1363 = vdwg.mxu0
        %v1364 = vpack.c.bf16 %v1337, %v1334
        %v1365 = vpack.c.bf16 %v1345, %v1342
        %v1366 = vpack.c.bf16 %v1353, %v1350
        %v1367 = vpack.c.bf16 %v1361, %v1358
        %s1368 = scalar_lea.vmem %s2, 6
        %v1369 = vld [vmem:[%s1368] sm:$0x3]
        %v1371 = vsel %vm877, %v1364, 0
        %v1374 = vsel %vm877, %v1365, 0
        %v1377 = vsel %vm877, %v1366, 0
        %v1380 = vsel %vm877, %v1367, 0
        %v1383 = vand.u32 %v1369, %v893
        %1385 = vmatprep.subr.bf16.mxu0 0
        %1386 = vmatpush1.bf16.msra.mxu0 %v1383
        %1387 = vmatprep.subr.bf16.mxu0 0
        %1388 = vmatpush1.bf16.msra.mxu0 0
        %1389 = vmatprep.subr.bf16.mxu0 0
        %1390 = vmatpush1.bf16.msra.mxu0 0
        %1391 = vmatprep.subr.bf16.mxu0 0
        %1392 = vmatpush1.bf16.msra.mxu0 0
        %1393 = vmatprep.subr.bf16.mxu0 0
        %1394 = vmatpush1.bf16.msra.mxu0 0
        %1395 = vmatprep.subr.bf16.mxu0 0
        %1396 = vmatpush1.bf16.msra.mxu0 0
        %1397 = vmatprep.subr.bf16.mxu0 0
        %1398 = vmatpush1.bf16.msra.mxu0 0
        %1399 = vmatprep.subr.bf16.mxu0 0
        %1400 = vmatpush1.bf16.msra.mxu0 0
        %1401 = vmatprep.subr.bf16.mxu0 0
        %1402 = vmatpush1.bf16.msra.mxu0 0
        %1403 = vmatprep.subr.bf16.mxu0 0
        %1404 = vmatpush1.bf16.msra.mxu0 0
        %1405 = vmatprep.subr.bf16.mxu0 0
        %1406 = vmatpush1.bf16.msra.mxu0 0
        %1407 = vmatprep.subr.bf16.mxu0 0
        %1408 = vmatpush1.bf16.msra.mxu0 0
        %1409 = vmatprep.subr.bf16.mxu0 0
        %1410 = vmatpush1.bf16.msra.mxu0 0
        %1411 = vmatprep.subr.bf16.mxu0 0
        %1412 = vmatpush1.bf16.msra.mxu0 0
        %1413 = vmatprep.subr.bf16.mxu0 0
        %1414 = vmatpush1.bf16.msra.mxu0 0
        %1415 = vmatprep.subr.bf16.mxu0 0
        %1416 = vmatpush1.bf16.msra.mxu0 0
        %1417 = vmatprep.mubr.bf16.mxu0 0
        %1418 = vmatmul.mubr.bf16.gmra.mrb[0].mxu0 %v1371
        %v1419 = vpop.f32.mrb[0].mxu0
        %v1420 = vadd.f32 0.0, %v1419
        %v1421 = vpop.f32.mrb[0].mxu0
        %v1422 = vpop.f32.mrb[0].mxu0
        %v1423 = vadd.f32 0.0, %v1422
        %v1424 = vpop.f32.mrb[0].mxu0
        %1425 = vmatprep.mubr.bf16.mxu0 0
        %1426 = vmatmul.mubr.bf16.gmra.mrb[0].mxu0 %v1374
        %v1427 = vpop.f32.mrb[0].mxu0
        %v1428 = vadd.f32 0.0, %v1427
        %v1429 = vpop.f32.mrb[0].mxu0
        %v1430 = vpop.f32.mrb[0].mxu0
        %v1431 = vadd.f32 0.0, %v1430
        %v1432 = vpop.f32.mrb[0].mxu0
        %1433 = vmatprep.mubr.bf16.mxu0 0
        %1434 = vmatmul.mubr.bf16.gmra.mrb[0].mxu0 %v1377
        %v1435 = vpop.f32.mrb[0].mxu0
        %v1436 = vadd.f32 0.0, %v1435
        %v1437 = vpop.f32.mrb[0].mxu0
        %v1438 = vpop.f32.mrb[0].mxu0
        %v1439 = vadd.f32 0.0, %v1438
        %v1440 = vpop.f32.mrb[0].mxu0
        %1441 = vmatprep.mubr.bf16.mxu0 0
        %1442 = vmatmul.mubr.bf16.gmra.mrb[0].mxu0 %v1380
        %v1443 = vpop.f32.mrb[0].mxu0
        %v1444 = vadd.f32 0.0, %v1443
        %v1445 = vpop.f32.mrb[0].mxu0
        %v1446 = vpop.f32.mrb[0].mxu0
        %v1447 = vadd.f32 0.0, %v1446
        %v1448 = vpop.f32.mrb[0].mxu0
        %1449 = vdwg.mxu0
        %v1450 = vadd.f32 %v1242, %v1420
        %v1451 = vadd.f32 %v1243, %v1423
        %v1452 = vadd.f32 %v1244, %v1428
        %v1453 = vadd.f32 %v1245, %v1431
        %v1454 = vadd.f32 %v1246, %v1436
        %v1455 = vadd.f32 %v1247, %v1439
        %v1456 = vadd.f32 %v1248, %v1444
        %v1457 = vadd.f32 %v1249, %v1447
        %s1458 = scalar_lea.vmem [#allocation2], 256
        %v1459 = vld [vmem:[%s1458] sm:$0xff]
        %v1460 = vld [vmem:[%s1458 + $0x8] sm:$0xff]
        %v1461 = vld [vmem:[%s1458 + $0x10] sm:$0xff]
        %v1462 = vld [vmem:[%s1458 + $0x18] sm:$0xff]
        %v1463 = vld [vmem:[%s1458 + $0x20] sm:$0xff]
        %v1464 = vld [vmem:[%s1458 + $0x28] sm:$0xff]
        %v1465 = vld [vmem:[%s1458 + $0x30] sm:$0xff]
        %v1466 = vld [vmem:[%s1458 + $0x38] sm:$0xff]
        %v1475 = vunpack.c.l.b16 %v1459
        %v1476 = vunpack.c.h.b16 %v1459
        %v1477 = vunpack.c.l.b16 %v1460
        %v1478 = vunpack.c.h.b16 %v1460
        %v1479 = vunpack.c.l.b16 %v1461
        %v1480 = vunpack.c.h.b16 %v1461
        %v1481 = vunpack.c.l.b16 %v1462
        %v1482 = vunpack.c.h.b16 %v1462
        %v1483 = vunpack.c.l.b16 %v1463
        %v1484 = vunpack.c.h.b16 %v1463
        %v1485 = vunpack.c.l.b16 %v1464
        %v1486 = vunpack.c.h.b16 %v1464
        %v1487 = vunpack.c.l.b16 %v1465
        %v1488 = vunpack.c.h.b16 %v1465
        %v1489 = vunpack.c.l.b16 %v1466
        %v1490 = vunpack.c.h.b16 %v1466
        %v1491 = vpack.c.b16 %v1477, %v1475
        %v1492 = vpack.c.b16 %v1478, %v1476
        %v1493 = vpack.c.b16 %v1481, %v1479
        %v1494 = vpack.c.b16 %v1482, %v1480
        %v1495 = vpack.c.b16 %v1485, %v1483
        %v1496 = vpack.c.b16 %v1486, %v1484
        %v1497 = vpack.c.b16 %v1489, %v1487
        %v1498 = vpack.c.b16 %v1490, %v1488
        %1507 = vmatprep.subr.bf16.mxu0 0
        %1508 = vmatpush1.bf16.msra.mxu0 %v655
        %1509 = vmatprep.subr.bf16.mxu0 0
        %1510 = vmatpush1.bf16.msra.mxu0 %v656
        %1511 = vmatprep.subr.bf16.mxu0 0
        %1512 = vmatpush1.bf16.msra.mxu0 %v657
        %1513 = vmatprep.subr.bf16.mxu0 0
        %1514 = vmatpush1.bf16.msra.mxu0 %v658
        %1515 = vmatprep.subr.bf16.mxu0 0
        %1516 = vmatpush1.bf16.msra.mxu0 %v659
        %1517 = vmatprep.subr.bf16.mxu0 0
        %1518 = vmatpush1.bf16.msra.mxu0 %v660
        %1519 = vmatprep.subr.bf16.mxu0 0
        %1520 = vmatpush1.bf16.msra.mxu0 %v661
        %1521 = vmatprep.subr.bf16.mxu0 0
        %1522 = vmatpush1.bf16.msra.mxu0 %v662
        %1523 = vmatprep.subr.bf16.mxu0 0
        %1524 = vmatpush1.bf16.msra.mxu0 %v663
        %1525 = vmatprep.subr.bf16.mxu0 0
        %1526 = vmatpush1.bf16.msra.mxu0 %v664
        %1527 = vmatprep.subr.bf16.mxu0 0
        %1528 = vmatpush1.bf16.msra.mxu0 %v665
        %1529 = vmatprep.subr.bf16.mxu0 0
        %1530 = vmatpush1.bf16.msra.mxu0 %v666
        %1531 = vmatprep.subr.bf16.mxu0 0
        %1532 = vmatpush1.bf16.msra.mxu0 %v667
        %1533 = vmatprep.subr.bf16.mxu0 0
        %1534 = vmatpush1.bf16.msra.mxu0 %v668
        %1535 = vmatprep.subr.bf16.mxu0 0
        %1536 = vmatpush1.bf16.msra.mxu0 %v669
        %1537 = vmatprep.subr.bf16.mxu0 0
        %1538 = vmatpush1.bf16.msra.mxu0 %v670
        %1539 = vmatprep.mubr.bf16.mxu0 %v1492
        %1540 = vmatmul.mubr.bf16.gmra.mrb[0].mxu0 %v1491
        %v1541 = vpop.f32.mrb[0].mxu0
        %v1542 = vadd.f32 0.0, %v1541
        %v1543 = vpop.f32.mrb[0].mxu0
        %v1544 = vpop.f32.mrb[0].mxu0
        %v1545 = vadd.f32 0.0, %v1544
        %v1546 = vpop.f32.mrb[0].mxu0
        %1547 = vmatprep.mubr.bf16.mxu0 %v1494
        %1548 = vmatmul.mubr.bf16.gmra.mrb[0].mxu0 %v1493
        %v1549 = vpop.f32.mrb[0].mxu0
        %v1550 = vadd.f32 0.0, %v1549
        %v1551 = vpop.f32.mrb[0].mxu0
        %v1552 = vpop.f32.mrb[0].mxu0
        %v1553 = vadd.f32 0.0, %v1552
        %v1554 = vpop.f32.mrb[0].mxu0
        %1555 = vmatprep.mubr.bf16.mxu0 %v1496
        %1556 = vmatmul.mubr.bf16.gmra.mrb[0].mxu0 %v1495
        %v1557 = vpop.f32.mrb[0].mxu0
        %v1558 = vadd.f32 0.0, %v1557
        %v1559 = vpop.f32.mrb[0].mxu0
        %v1560 = vpop.f32.mrb[0].mxu0
        %v1561 = vadd.f32 0.0, %v1560
        %v1562 = vpop.f32.mrb[0].mxu0
        %1563 = vmatprep.mubr.bf16.mxu0 %v1498
        %1564 = vmatmul.mubr.bf16.gmra.mrb[0].mxu0 %v1497
        %v1565 = vpop.f32.mrb[0].mxu0
        %v1566 = vadd.f32 0.0, %v1565
        %v1567 = vpop.f32.mrb[0].mxu0
        %v1568 = vpop.f32.mrb[0].mxu0
        %v1569 = vadd.f32 0.0, %v1568
        %v1570 = vpop.f32.mrb[0].mxu0
        %1571 = vdwg.mxu0
        %v1572 = vpack.c.bf16 %v1545, %v1542
        %v1573 = vpack.c.bf16 %v1553, %v1550
        %v1574 = vpack.c.bf16 %v1561, %v1558
        %v1575 = vpack.c.bf16 %v1569, %v1566
        %s1576 = scalar_lea.vmem %s2, 8
        %v1577 = vld [vmem:[%s1576] sm:$0x3]
        %v1579 = vsel %vm877, %v1572, 0
        %v1582 = vsel %vm877, %v1573, 0
        %v1585 = vsel %vm877, %v1574, 0
        %v1588 = vsel %vm877, %v1575, 0
        %v1591 = vand.u32 %v1577, %v893
        %1593 = vmatprep.subr.bf16.mxu0 0
        %1594 = vmatpush1.bf16.msra.mxu0 %v1591
        %1595 = vmatprep.subr.bf16.mxu0 0
        %1596 = vmatpush1.bf16.msra.mxu0 0
        %1597 = vmatprep.subr.bf16.mxu0 0
        %1598 = vmatpush1.bf16.msra.mxu0 0
        %1599 = vmatprep.subr.bf16.mxu0 0
        %1600 = vmatpush1.bf16.msra.mxu0 0
        %1601 = vmatprep.subr.bf16.mxu0 0
        %1602 = vmatpush1.bf16.msra.mxu0 0
        %1603 = vmatprep.subr.bf16.mxu0 0
        %1604 = vmatpush1.bf16.msra.mxu0 0
        %1605 = vmatprep.subr.bf16.mxu0 0
        %1606 = vmatpush1.bf16.msra.mxu0 0
        %1607 = vmatprep.subr.bf16.mxu0 0
        %1608 = vmatpush1.bf16.msra.mxu0 0
        %1609 = vmatprep.subr.bf16.mxu0 0
        %1610 = vmatpush1.bf16.msra.mxu0 0
        %1611 = vmatprep.subr.bf16.mxu0 0
        %1612 = vmatpush1.bf16.msra.mxu0 0
        %1613 = vmatprep.subr.bf16.mxu0 0
        %1614 = vmatpush1.bf16.msra.mxu0 0
        %1615 = vmatprep.subr.bf16.mxu0 0
        %1616 = vmatpush1.bf16.msra.mxu0 0
        %1617 = vmatprep.subr.bf16.mxu0 0
        %1618 = vmatpush1.bf16.msra.mxu0 0
        %1619 = vmatprep.subr.bf16.mxu0 0
        %1620 = vmatpush1.bf16.msra.mxu0 0
        %1621 = vmatprep.subr.bf16.mxu0 0
        %1622 = vmatpush1.bf16.msra.mxu0 0
        %1623 = vmatprep.subr.bf16.mxu0 0
        %1624 = vmatpush1.bf16.msra.mxu0 0
        %1625 = vmatprep.mubr.bf16.mxu0 0
        %1626 = vmatmul.mubr.bf16.gmra.mrb[0].mxu0 %v1579
        %v1627 = vpop.f32.mrb[0].mxu0
        %v1628 = vadd.f32 0.0, %v1627
        %v1629 = vpop.f32.mrb[0].mxu0
        %v1630 = vpop.f32.mrb[0].mxu0
        %v1631 = vadd.f32 0.0, %v1630
        %v1632 = vpop.f32.mrb[0].mxu0
        %1633 = vmatprep.mubr.bf16.mxu0 0
        %1634 = vmatmul.mubr.bf16.gmra.mrb[0].mxu0 %v1582
        %v1635 = vpop.f32.mrb[0].mxu0
        %v1636 = vadd.f32 0.0, %v1635
        %v1637 = vpop.f32.mrb[0].mxu0
        %v1638 = vpop.f32.mrb[0].mxu0
        %v1639 = vadd.f32 0.0, %v1638
        %v1640 = vpop.f32.mrb[0].mxu0
        %1641 = vmatprep.mubr.bf16.mxu0 0
        %1642 = vmatmul.mubr.bf16.gmra.mrb[0].mxu0 %v1585
        %v1643 = vpop.f32.mrb[0].mxu0
        %v1644 = vadd.f32 0.0, %v1643
        %v1645 = vpop.f32.mrb[0].mxu0
        %v1646 = vpop.f32.mrb[0].mxu0
        %v1647 = vadd.f32 0.0, %v1646
        %v1648 = vpop.f32.mrb[0].mxu0
        %1649 = vmatprep.mubr.bf16.mxu0 0
        %1650 = vmatmul.mubr.bf16.gmra.mrb[0].mxu0 %v1588
        %v1651 = vpop.f32.mrb[0].mxu0
        %v1652 = vadd.f32 0.0, %v1651
        %v1653 = vpop.f32.mrb[0].mxu0
        %v1654 = vpop.f32.mrb[0].mxu0
        %v1655 = vadd.f32 0.0, %v1654
        %v1656 = vpop.f32.mrb[0].mxu0
        %1657 = vdwg.mxu0
        %v1658 = vadd.f32 %v1450, %v1628
        %v1659 = vadd.f32 %v1451, %v1631
        %v1660 = vadd.f32 %v1452, %v1636
        %v1661 = vadd.f32 %v1453, %v1639
        %v1662 = vadd.f32 %v1454, %v1644
        %v1663 = vadd.f32 %v1455, %v1647
        %v1664 = vadd.f32 %v1456, %v1652
        %v1665 = vadd.f32 %v1457, %v1655
        %s1666 = scalar_lea.vmem [#allocation2], 320
        %v1667 = vld [vmem:[%s1666] sm:$0xff]
        %v1668 = vld [vmem:[%s1666 + $0x8] sm:$0xff]
        %v1669 = vld [vmem:[%s1666 + $0x10] sm:$0xff]
        %v1670 = vld [vmem:[%s1666 + $0x18] sm:$0xff]
        %v1671 = vld [vmem:[%s1666 + $0x20] sm:$0xff]
        %v1672 = vld [vmem:[%s1666 + $0x28] sm:$0xff]
        %v1673 = vld [vmem:[%s1666 + $0x30] sm:$0xff]
        %v1674 = vld [vmem:[%s1666 + $0x38] sm:$0xff]
        %v1683 = vunpack.c.l.b16 %v1667
        %v1684 = vunpack.c.h.b16 %v1667
        %v1685 = vunpack.c.l.b16 %v1668
        %v1686 = vunpack.c.h.b16 %v1668
        %v1687 = vunpack.c.l.b16 %v1669
        %v1688 = vunpack.c.h.b16 %v1669
        %v1689 = vunpack.c.l.b16 %v1670
        %v1690 = vunpack.c.h.b16 %v1670
        %v1691 = vunpack.c.l.b16 %v1671
        %v1692 = vunpack.c.h.b16 %v1671
        %v1693 = vunpack.c.l.b16 %v1672
        %v1694 = vunpack.c.h.b16 %v1672
        %v1695 = vunpack.c.l.b16 %v1673
        %v1696 = vunpack.c.h.b16 %v1673
        %v1697 = vunpack.c.l.b16 %v1674
        %v1698 = vunpack.c.h.b16 %v1674
        %v1699 = vpack.c.b16 %v1685, %v1683
        %v1700 = vpack.c.b16 %v1686, %v1684
        %v1701 = vpack.c.b16 %v1689, %v1687
        %v1702 = vpack.c.b16 %v1690, %v1688
        %v1703 = vpack.c.b16 %v1693, %v1691
        %v1704 = vpack.c.b16 %v1694, %v1692
        %v1705 = vpack.c.b16 %v1697, %v1695
        %v1706 = vpack.c.b16 %v1698, %v1696
        %1715 = vmatprep.subr.bf16.mxu0 0
        %1716 = vmatpush1.bf16.msra.mxu0 %v655
        %1717 = vmatprep.subr.bf16.mxu0 0
        %1718 = vmatpush1.bf16.msra.mxu0 %v656
        %1719 = vmatprep.subr.bf16.mxu0 0
        %1720 = vmatpush1.bf16.msra.mxu0 %v657
        %1721 = vmatprep.subr.bf16.mxu0 0
        %1722 = vmatpush1.bf16.msra.mxu0 %v658
        %1723 = vmatprep.subr.bf16.mxu0 0
        %1724 = vmatpush1.bf16.msra.mxu0 %v659
        %1725 = vmatprep.subr.bf16.mxu0 0
        %1726 = vmatpush1.bf16.msra.mxu0 %v660
        %1727 = vmatprep.subr.bf16.mxu0 0
        %1728 = vmatpush1.bf16.msra.mxu0 %v661
        %1729 = vmatprep.subr.bf16.mxu0 0
        %1730 = vmatpush1.bf16.msra.mxu0 %v662
        %1731 = vmatprep.subr.bf16.mxu0 0
        %1732 = vmatpush1.bf16.msra.mxu0 %v663
        %1733 = vmatprep.subr.bf16.mxu0 0
        %1734 = vmatpush1.bf16.msra.mxu0 %v664
        %1735 = vmatprep.subr.bf16.mxu0 0
        %1736 = vmatpush1.bf16.msra.mxu0 %v665
        %1737 = vmatprep.subr.bf16.mxu0 0
        %1738 = vmatpush1.bf16.msra.mxu0 %v666
        %1739 = vmatprep.subr.bf16.mxu0 0
        %1740 = vmatpush1.bf16.msra.mxu0 %v667
        %1741 = vmatprep.subr.bf16.mxu0 0
        %1742 = vmatpush1.bf16.msra.mxu0 %v668
        %1743 = vmatprep.subr.bf16.mxu0 0
        %1744 = vmatpush1.bf16.msra.mxu0 %v669
        %1745 = vmatprep.subr.bf16.mxu0 0
        %1746 = vmatpush1.bf16.msra.mxu0 %v670
        %1747 = vmatprep.mubr.bf16.mxu0 %v1700
        %1748 = vmatmul.mubr.bf16.gmra.mrb[0].mxu0 %v1699
        %v1749 = vpop.f32.mrb[0].mxu0
        %v1750 = vadd.f32 0.0, %v1749
        %v1751 = vpop.f32.mrb[0].mxu0
        %v1752 = vpop.f32.mrb[0].mxu0
        %v1753 = vadd.f32 0.0, %v1752
        %v1754 = vpop.f32.mrb[0].mxu0
        %1755 = vmatprep.mubr.bf16.mxu0 %v1702
        %1756 = vmatmul.mubr.bf16.gmra.mrb[0].mxu0 %v1701
        %v1757 = vpop.f32.mrb[0].mxu0
        %v1758 = vadd.f32 0.0, %v1757
        %v1759 = vpop.f32.mrb[0].mxu0
        %v1760 = vpop.f32.mrb[0].mxu0
        %v1761 = vadd.f32 0.0, %v1760
        %v1762 = vpop.f32.mrb[0].mxu0
        %1763 = vmatprep.mubr.bf16.mxu0 %v1704
        %1764 = vmatmul.mubr.bf16.gmra.mrb[0].mxu0 %v1703
        %v1765 = vpop.f32.mrb[0].mxu0
        %v1766 = vadd.f32 0.0, %v1765
        %v1767 = vpop.f32.mrb[0].mxu0
        %v1768 = vpop.f32.mrb[0].mxu0
        %v1769 = vadd.f32 0.0, %v1768
        %v1770 = vpop.f32.mrb[0].mxu0
        %1771 = vmatprep.mubr.bf16.mxu0 %v1706
        %1772 = vmatmul.mubr.bf16.gmra.mrb[0].mxu0 %v1705
        %v1773 = vpop.f32.mrb[0].mxu0
        %v1774 = vadd.f32 0.0, %v1773
        %v1775 = vpop.f32.mrb[0].mxu0
        %v1776 = vpop.f32.mrb[0].mxu0
        %v1777 = vadd.f32 0.0, %v1776
        %v1778 = vpop.f32.mrb[0].mxu0
        %1779 = vdwg.mxu0
        %v1780 = vpack.c.bf16 %v1753, %v1750
        %v1781 = vpack.c.bf16 %v1761, %v1758
        %v1782 = vpack.c.bf16 %v1769, %v1766
        %v1783 = vpack.c.bf16 %v1777, %v1774
        %s1784 = scalar_lea.vmem %s2, 10
        %v1785 = vld [vmem:[%s1784] sm:$0x3]
        %v1787 = vsel %vm877, %v1780, 0
        %v1790 = vsel %vm877, %v1781, 0
        %v1793 = vsel %vm877, %v1782, 0
        %v1796 = vsel %vm877, %v1783, 0
        %v1799 = vand.u32 %v1785, %v893
        %1801 = vmatprep.subr.bf16.mxu0 0
        %1802 = vmatpush1.bf16.msra.mxu0 %v1799
        %1803 = vmatprep.subr.bf16.mxu0 0
        %1804 = vmatpush1.bf16.msra.mxu0 0
        %1805 = vmatprep.subr.bf16.mxu0 0
        %1806 = vmatpush1.bf16.msra.mxu0 0
        %1807 = vmatprep.subr.bf16.mxu0 0
        %1808 = vmatpush1.bf16.msra.mxu0 0
        %1809 = vmatprep.subr.bf16.mxu0 0
        %1810 = vmatpush1.bf16.msra.mxu0 0
        %1811 = vmatprep.subr.bf16.mxu0 0
        %1812 = vmatpush1.bf16.msra.mxu0 0
        %1813 = vmatprep.subr.bf16.mxu0 0
        %1814 = vmatpush1.bf16.msra.mxu0 0
        %1815 = vmatprep.subr.bf16.mxu0 0
        %1816 = vmatpush1.bf16.msra.mxu0 0
        %1817 = vmatprep.subr.bf16.mxu0 0
        %1818 = vmatpush1.bf16.msra.mxu0 0
        %1819 = vmatprep.subr.bf16.mxu0 0
        %1820 = vmatpush1.bf16.msra.mxu0 0
        %1821 = vmatprep.subr.bf16.mxu0 0
        %1822 = vmatpush1.bf16.msra.mxu0 0
        %1823 = vmatprep.subr.bf16.mxu0 0
        %1824 = vmatpush1.bf16.msra.mxu0 0
        %1825 = vmatprep.subr.bf16.mxu0 0
        %1826 = vmatpush1.bf16.msra.mxu0 0
        %1827 = vmatprep.subr.bf16.mxu0 0
        %1828 = vmatpush1.bf16.msra.mxu0 0
        %1829 = vmatprep.subr.bf16.mxu0 0
        %1830 = vmatpush1.bf16.msra.mxu0 0
        %1831 = vmatprep.subr.bf16.mxu0 0
        %1832 = vmatpush1.bf16.msra.mxu0 0
        %1833 = vmatprep.mubr.bf16.mxu0 0
        %1834 = vmatmul.mubr.bf16.gmra.mrb[0].mxu0 %v1787
        %v1835 = vpop.f32.mrb[0].mxu0
        %v1836 = vadd.f32 0.0, %v1835
        %v1837 = vpop.f32.mrb[0].mxu0
        %v1838 = vpop.f32.mrb[0].mxu0
        %v1839 = vadd.f32 0.0, %v1838
        %v1840 = vpop.f32.mrb[0].mxu0
        %1841 = vmatprep.mubr.bf16.mxu0 0
        %1842 = vmatmul.mubr.bf16.gmra.mrb[0].mxu0 %v1790
        %v1843 = vpop.f32.mrb[0].mxu0
        %v1844 = vadd.f32 0.0, %v1843
        %v1845 = vpop.f32.mrb[0].mxu0
        %v1846 = vpop.f32.mrb[0].mxu0
        %v1847 = vadd.f32 0.0, %v1846
        %v1848 = vpop.f32.mrb[0].mxu0
        %1849 = vmatprep.mubr.bf16.mxu0 0
        %1850 = vmatmul.mubr.bf16.gmra.mrb[0].mxu0 %v1793
        %v1851 = vpop.f32.mrb[0].mxu0
        %v1852 = vadd.f32 0.0, %v1851
        %v1853 = vpop.f32.mrb[0].mxu0
        %v1854 = vpop.f32.mrb[0].mxu0
        %v1855 = vadd.f32 0.0, %v1854
        %v1856 = vpop.f32.mrb[0].mxu0
        %1857 = vmatprep.mubr.bf16.mxu0 0
        %1858 = vmatmul.mubr.bf16.gmra.mrb[0].mxu0 %v1796
        %v1859 = vpop.f32.mrb[0].mxu0
        %v1860 = vadd.f32 0.0, %v1859
        %v1861 = vpop.f32.mrb[0].mxu0
        %v1862 = vpop.f32.mrb[0].mxu0
        %v1863 = vadd.f32 0.0, %v1862
        %v1864 = vpop.f32.mrb[0].mxu0
        %1865 = vdwg.mxu0
        %v1866 = vadd.f32 %v1658, %v1836
        %v1867 = vadd.f32 %v1659, %v1839
        %v1868 = vadd.f32 %v1660, %v1844
        %v1869 = vadd.f32 %v1661, %v1847
        %v1870 = vadd.f32 %v1662, %v1852
        %v1871 = vadd.f32 %v1663, %v1855
        %v1872 = vadd.f32 %v1664, %v1860
        %v1873 = vadd.f32 %v1665, %v1863
        %s1874 = scalar_lea.vmem [#allocation2], 384
        %v1875 = vld [vmem:[%s1874] sm:$0xff]
        %v1876 = vld [vmem:[%s1874 + $0x8] sm:$0xff]
        %v1877 = vld [vmem:[%s1874 + $0x10] sm:$0xff]
        %v1878 = vld [vmem:[%s1874 + $0x18] sm:$0xff]
        %v1879 = vld [vmem:[%s1874 + $0x20] sm:$0xff]
        %v1880 = vld [vmem:[%s1874 + $0x28] sm:$0xff]
        %v1881 = vld [vmem:[%s1874 + $0x30] sm:$0xff]
        %v1882 = vld [vmem:[%s1874 + $0x38] sm:$0xff]
        %v1891 = vunpack.c.l.b16 %v1875
        %v1892 = vunpack.c.h.b16 %v1875
        %v1893 = vunpack.c.l.b16 %v1876
        %v1894 = vunpack.c.h.b16 %v1876
        %v1895 = vunpack.c.l.b16 %v1877
        %v1896 = vunpack.c.h.b16 %v1877
        %v1897 = vunpack.c.l.b16 %v1878
        %v1898 = vunpack.c.h.b16 %v1878
        %v1899 = vunpack.c.l.b16 %v1879
        %v1900 = vunpack.c.h.b16 %v1879
        %v1901 = vunpack.c.l.b16 %v1880
        %v1902 = vunpack.c.h.b16 %v1880
        %v1903 = vunpack.c.l.b16 %v1881
        %v1904 = vunpack.c.h.b16 %v1881
        %v1905 = vunpack.c.l.b16 %v1882
        %v1906 = vunpack.c.h.b16 %v1882
        %v1907 = vpack.c.b16 %v1893, %v1891
        %v1908 = vpack.c.b16 %v1894, %v1892
        %v1909 = vpack.c.b16 %v1897, %v1895
        %v1910 = vpack.c.b16 %v1898, %v1896
        %v1911 = vpack.c.b16 %v1901, %v1899
        %v1912 = vpack.c.b16 %v1902, %v1900
        %v1913 = vpack.c.b16 %v1905, %v1903
        %v1914 = vpack.c.b16 %v1906, %v1904
        %1923 = vmatprep.subr.bf16.mxu0 0
        %1924 = vmatpush1.bf16.msra.mxu0 %v655
        %1925 = vmatprep.subr.bf16.mxu0 0
        %1926 = vmatpush1.bf16.msra.mxu0 %v656
        %1927 = vmatprep.subr.bf16.mxu0 0
        %1928 = vmatpush1.bf16.msra.mxu0 %v657
        %1929 = vmatprep.subr.bf16.mxu0 0
        %1930 = vmatpush1.bf16.msra.mxu0 %v658
        %1931 = vmatprep.subr.bf16.mxu0 0
        %1932 = vmatpush1.bf16.msra.mxu0 %v659
        %1933 = vmatprep.subr.bf16.mxu0 0
        %1934 = vmatpush1.bf16.msra.mxu0 %v660
        %1935 = vmatprep.subr.bf16.mxu0 0
        %1936 = vmatpush1.bf16.msra.mxu0 %v661
        %1937 = vmatprep.subr.bf16.mxu0 0
        %1938 = vmatpush1.bf16.msra.mxu0 %v662
        %1939 = vmatprep.subr.bf16.mxu0 0
        %1940 = vmatpush1.bf16.msra.mxu0 %v663
        %1941 = vmatprep.subr.bf16.mxu0 0
        %1942 = vmatpush1.bf16.msra.mxu0 %v664
        %1943 = vmatprep.subr.bf16.mxu0 0
        %1944 = vmatpush1.bf16.msra.mxu0 %v665
        %1945 = vmatprep.subr.bf16.mxu0 0
        %1946 = vmatpush1.bf16.msra.mxu0 %v666
        %1947 = vmatprep.subr.bf16.mxu0 0
        %1948 = vmatpush1.bf16.msra.mxu0 %v667
        %1949 = vmatprep.subr.bf16.mxu0 0
        %1950 = vmatpush1.bf16.msra.mxu0 %v668
        %1951 = vmatprep.subr.bf16.mxu0 0
        %1952 = vmatpush1.bf16.msra.mxu0 %v669
        %1953 = vmatprep.subr.bf16.mxu0 0
        %1954 = vmatpush1.bf16.msra.mxu0 %v670
        %1955 = vmatprep.mubr.bf16.mxu0 %v1908
        %1956 = vmatmul.mubr.bf16.gmra.mrb[0].mxu0 %v1907
        %v1957 = vpop.f32.mrb[0].mxu0
        %v1958 = vadd.f32 0.0, %v1957
        %v1959 = vpop.f32.mrb[0].mxu0
        %v1960 = vpop.f32.mrb[0].mxu0
        %v1961 = vadd.f32 0.0, %v1960
        %v1962 = vpop.f32.mrb[0].mxu0
        %1963 = vmatprep.mubr.bf16.mxu0 %v1910
        %1964 = vmatmul.mubr.bf16.gmra.mrb[0].mxu0 %v1909
        %v1965 = vpop.f32.mrb[0].mxu0
        %v1966 = vadd.f32 0.0, %v1965
        %v1967 = vpop.f32.mrb[0].mxu0
        %v1968 = vpop.f32.mrb[0].mxu0
        %v1969 = vadd.f32 0.0, %v1968
        %v1970 = vpop.f32.mrb[0].mxu0
        %1971 = vmatprep.mubr.bf16.mxu0 %v1912
        %1972 = vmatmul.mubr.bf16.gmra.mrb[0].mxu0 %v1911
        %v1973 = vpop.f32.mrb[0].mxu0
        %v1974 = vadd.f32 0.0, %v1973
        %v1975 = vpop.f32.mrb[0].mxu0
        %v1976 = vpop.f32.mrb[0].mxu0
        %v1977 = vadd.f32 0.0, %v1976
        %v1978 = vpop.f32.mrb[0].mxu0
        %1979 = vmatprep.mubr.bf16.mxu0 %v1914
        %1980 = vmatmul.mubr.bf16.gmra.mrb[0].mxu0 %v1913
        %v1981 = vpop.f32.mrb[0].mxu0
        %v1982 = vadd.f32 0.0, %v1981
        %v1983 = vpop.f32.mrb[0].mxu0
        %v1984 = vpop.f32.mrb[0].mxu0
        %v1985 = vadd.f32 0.0, %v1984
        %v1986 = vpop.f32.mrb[0].mxu0
        %1987 = vdwg.mxu0
        %v1988 = vpack.c.bf16 %v1961, %v1958
        %v1989 = vpack.c.bf16 %v1969, %v1966
        %v1990 = vpack.c.bf16 %v1977, %v1974
        %v1991 = vpack.c.bf16 %v1985, %v1982
        %s1992 = scalar_lea.vmem %s2, 12
        %v1993 = vld [vmem:[%s1992] sm:$0x3]
        %v1995 = vsel %vm877, %v1988, 0
        %v1998 = vsel %vm877, %v1989, 0
        %v2001 = vsel %vm877, %v1990, 0
        %v2004 = vsel %vm877, %v1991, 0
        %v2007 = vand.u32 %v1993, %v893
        %2009 = vmatprep.subr.bf16.mxu0 0
        %2010 = vmatpush1.bf16.msra.mxu0 %v2007
        %2011 = vmatprep.subr.bf16.mxu0 0
        %2012 = vmatpush1.bf16.msra.mxu0 0
        %2013 = vmatprep.subr.bf16.mxu0 0
        %2014 = vmatpush1.bf16.msra.mxu0 0
        %2015 = vmatprep.subr.bf16.mxu0 0
        %2016 = vmatpush1.bf16.msra.mxu0 0
        %2017 = vmatprep.subr.bf16.mxu0 0
        %2018 = vmatpush1.bf16.msra.mxu0 0
        %2019 = vmatprep.subr.bf16.mxu0 0
        %2020 = vmatpush1.bf16.msra.mxu0 0
        %2021 = vmatprep.subr.bf16.mxu0 0
        %2022 = vmatpush1.bf16.msra.mxu0 0
        %2023 = vmatprep.subr.bf16.mxu0 0
        %2024 = vmatpush1.bf16.msra.mxu0 0
        %2025 = vmatprep.subr.bf16.mxu0 0
        %2026 = vmatpush1.bf16.msra.mxu0 0
        %2027 = vmatprep.subr.bf16.mxu0 0
        %2028 = vmatpush1.bf16.msra.mxu0 0
        %2029 = vmatprep.subr.bf16.mxu0 0
        %2030 = vmatpush1.bf16.msra.mxu0 0
        %2031 = vmatprep.subr.bf16.mxu0 0
        %2032 = vmatpush1.bf16.msra.mxu0 0
        %2033 = vmatprep.subr.bf16.mxu0 0
        %2034 = vmatpush1.bf16.msra.mxu0 0
        %2035 = vmatprep.subr.bf16.mxu0 0
        %2036 = vmatpush1.bf16.msra.mxu0 0
        %2037 = vmatprep.subr.bf16.mxu0 0
        %2038 = vmatpush1.bf16.msra.mxu0 0
        %2039 = vmatprep.subr.bf16.mxu0 0
        %2040 = vmatpush1.bf16.msra.mxu0 0
        %2041 = vmatprep.mubr.bf16.mxu0 0
        %2042 = vmatmul.mubr.bf16.gmra.mrb[0].mxu0 %v1995
        %v2043 = vpop.f32.mrb[0].mxu0
        %v2044 = vadd.f32 0.0, %v2043
        %v2045 = vpop.f32.mrb[0].mxu0
        %v2046 = vpop.f32.mrb[0].mxu0
        %v2047 = vadd.f32 0.0, %v2046
        %v2048 = vpop.f32.mrb[0].mxu0
        %2049 = vmatprep.mubr.bf16.mxu0 0
        %2050 = vmatmul.mubr.bf16.gmra.mrb[0].mxu0 %v1998
        %v2051 = vpop.f32.mrb[0].mxu0
        %v2052 = vadd.f32 0.0, %v2051
        %v2053 = vpop.f32.mrb[0].mxu0
        %v2054 = vpop.f32.mrb[0].mxu0
        %v2055 = vadd.f32 0.0, %v2054
        %v2056 = vpop.f32.mrb[0].mxu0
        %2057 = vmatprep.mubr.bf16.mxu0 0
        %2058 = vmatmul.mubr.bf16.gmra.mrb[0].mxu0 %v2001
        %v2059 = vpop.f32.mrb[0].mxu0
        %v2060 = vadd.f32 0.0, %v2059
        %v2061 = vpop.f32.mrb[0].mxu0
        %v2062 = vpop.f32.mrb[0].mxu0
        %v2063 = vadd.f32 0.0, %v2062
        %v2064 = vpop.f32.mrb[0].mxu0
        %2065 = vmatprep.mubr.bf16.mxu0 0
        %2066 = vmatmul.mubr.bf16.gmra.mrb[0].mxu0 %v2004
        %v2067 = vpop.f32.mrb[0].mxu0
        %v2068 = vadd.f32 0.0, %v2067
        %v2069 = vpop.f32.mrb[0].mxu0
        %v2070 = vpop.f32.mrb[0].mxu0
        %v2071 = vadd.f32 0.0, %v2070
        %v2072 = vpop.f32.mrb[0].mxu0
        %2073 = vdwg.mxu0
        %v2074 = vadd.f32 %v1866, %v2044
        %v2075 = vadd.f32 %v1867, %v2047
        %v2076 = vadd.f32 %v1868, %v2052
        %v2077 = vadd.f32 %v1869, %v2055
        %v2078 = vadd.f32 %v1870, %v2060
        %v2079 = vadd.f32 %v1871, %v2063
        %v2080 = vadd.f32 %v1872, %v2068
        %v2081 = vadd.f32 %v1873, %v2071
        %s2082 = scalar_lea.vmem [#allocation2], 448
        %v2083 = vld [vmem:[%s2082] sm:$0xff]
        %v2084 = vld [vmem:[%s2082 + $0x8] sm:$0xff]
        %v2085 = vld [vmem:[%s2082 + $0x10] sm:$0xff]
        %v2086 = vld [vmem:[%s2082 + $0x18] sm:$0xff]
        %v2087 = vld [vmem:[%s2082 + $0x20] sm:$0xff]
        %v2088 = vld [vmem:[%s2082 + $0x28] sm:$0xff]
        %v2089 = vld [vmem:[%s2082 + $0x30] sm:$0xff]
        %v2090 = vld [vmem:[%s2082 + $0x38] sm:$0xff]
        %v2099 = vunpack.c.l.b16 %v2083
        %v2100 = vunpack.c.h.b16 %v2083
        %v2101 = vunpack.c.l.b16 %v2084
        %v2102 = vunpack.c.h.b16 %v2084
        %v2103 = vunpack.c.l.b16 %v2085
        %v2104 = vunpack.c.h.b16 %v2085
        %v2105 = vunpack.c.l.b16 %v2086
        %v2106 = vunpack.c.h.b16 %v2086
        %v2107 = vunpack.c.l.b16 %v2087
        %v2108 = vunpack.c.h.b16 %v2087
        %v2109 = vunpack.c.l.b16 %v2088
        %v2110 = vunpack.c.h.b16 %v2088
        %v2111 = vunpack.c.l.b16 %v2089
        %v2112 = vunpack.c.h.b16 %v2089
        %v2113 = vunpack.c.l.b16 %v2090
        %v2114 = vunpack.c.h.b16 %v2090
        %v2115 = vpack.c.b16 %v2101, %v2099
        %v2116 = vpack.c.b16 %v2102, %v2100
        %v2117 = vpack.c.b16 %v2105, %v2103
        %v2118 = vpack.c.b16 %v2106, %v2104
        %v2119 = vpack.c.b16 %v2109, %v2107
        %v2120 = vpack.c.b16 %v2110, %v2108
        %v2121 = vpack.c.b16 %v2113, %v2111
        %v2122 = vpack.c.b16 %v2114, %v2112
        %2131 = vmatprep.subr.bf16.mxu0 0
        %2132 = vmatpush1.bf16.msra.mxu0 %v655
        %2133 = vmatprep.subr.bf16.mxu0 0
        %2134 = vmatpush1.bf16.msra.mxu0 %v656
        %2135 = vmatprep.subr.bf16.mxu0 0
        %2136 = vmatpush1.bf16.msra.mxu0 %v657
        %2137 = vmatprep.subr.bf16.mxu0 0
        %2138 = vmatpush1.bf16.msra.mxu0 %v658
        %2139 = vmatprep.subr.bf16.mxu0 0
        %2140 = vmatpush1.bf16.msra.mxu0 %v659
        %2141 = vmatprep.subr.bf16.mxu0 0
        %2142 = vmatpush1.bf16.msra.mxu0 %v660
        %2143 = vmatprep.subr.bf16.mxu0 0
        %2144 = vmatpush1.bf16.msra.mxu0 %v661
        %2145 = vmatprep.subr.bf16.mxu0 0
        %2146 = vmatpush1.bf16.msra.mxu0 %v662
        %2147 = vmatprep.subr.bf16.mxu0 0
        %2148 = vmatpush1.bf16.msra.mxu0 %v663
        %2149 = vmatprep.subr.bf16.mxu0 0
        %2150 = vmatpush1.bf16.msra.mxu0 %v664
        %2151 = vmatprep.subr.bf16.mxu0 0
        %2152 = vmatpush1.bf16.msra.mxu0 %v665
        %2153 = vmatprep.subr.bf16.mxu0 0
        %2154 = vmatpush1.bf16.msra.mxu0 %v666
        %2155 = vmatprep.subr.bf16.mxu0 0
        %2156 = vmatpush1.bf16.msra.mxu0 %v667
        %2157 = vmatprep.subr.bf16.mxu0 0
        %2158 = vmatpush1.bf16.msra.mxu0 %v668
        %2159 = vmatprep.subr.bf16.mxu0 0
        %2160 = vmatpush1.bf16.msra.mxu0 %v669
        %2161 = vmatprep.subr.bf16.mxu0 0
        %2162 = vmatpush1.bf16.msra.mxu0 %v670
        %2163 = vmatprep.mubr.bf16.mxu0 %v2116
        %2164 = vmatmul.mubr.bf16.gmra.mrb[0].mxu0 %v2115
        %v2165 = vpop.f32.mrb[0].mxu0
        %v2166 = vadd.f32 0.0, %v2165
        %v2167 = vpop.f32.mrb[0].mxu0
        %v2168 = vpop.f32.mrb[0].mxu0
        %v2169 = vadd.f32 0.0, %v2168
        %v2170 = vpop.f32.mrb[0].mxu0
        %2171 = vmatprep.mubr.bf16.mxu0 %v2118
        %2172 = vmatmul.mubr.bf16.gmra.mrb[0].mxu0 %v2117
        %v2173 = vpop.f32.mrb[0].mxu0
        %v2174 = vadd.f32 0.0, %v2173
        %v2175 = vpop.f32.mrb[0].mxu0
        %v2176 = vpop.f32.mrb[0].mxu0
        %v2177 = vadd.f32 0.0, %v2176
        %v2178 = vpop.f32.mrb[0].mxu0
        %2179 = vmatprep.mubr.bf16.mxu0 %v2120
        %2180 = vmatmul.mubr.bf16.gmra.mrb[0].mxu0 %v2119
        %v2181 = vpop.f32.mrb[0].mxu0
        %v2182 = vadd.f32 0.0, %v2181
        %v2183 = vpop.f32.mrb[0].mxu0
        %v2184 = vpop.f32.mrb[0].mxu0
        %v2185 = vadd.f32 0.0, %v2184
        %v2186 = vpop.f32.mrb[0].mxu0
        %2187 = vmatprep.mubr.bf16.mxu0 %v2122
        %2188 = vmatmul.mubr.bf16.gmra.mrb[0].mxu0 %v2121
        %v2189 = vpop.f32.mrb[0].mxu0
        %v2190 = vadd.f32 0.0, %v2189
        %v2191 = vpop.f32.mrb[0].mxu0
        %v2192 = vpop.f32.mrb[0].mxu0
        %v2193 = vadd.f32 0.0, %v2192
        %v2194 = vpop.f32.mrb[0].mxu0
        %2195 = vdwg.mxu0
        %v2196 = vpack.c.bf16 %v2169, %v2166
        %v2197 = vpack.c.bf16 %v2177, %v2174
        %v2198 = vpack.c.bf16 %v2185, %v2182
        %v2199 = vpack.c.bf16 %v2193, %v2190
        %s2200 = scalar_lea.vmem %s2, 14
        %v2201 = vld [vmem:[%s2200] sm:$0x3]
        %v2203 = vsel %vm877, %v2196, 0
        %v2206 = vsel %vm877, %v2197, 0
        %v2209 = vsel %vm877, %v2198, 0
        %v2212 = vsel %vm877, %v2199, 0
        %v2215 = vand.u32 %v2201, %v893
        %2217 = vmatprep.subr.bf16.mxu0 0
        %2218 = vmatpush1.bf16.msra.mxu0 %v2215
        %2219 = vmatprep.subr.bf16.mxu0 0
        %2220 = vmatpush1.bf16.msra.mxu0 0
        %2221 = vmatprep.subr.bf16.mxu0 0
        %2222 = vmatpush1.bf16.msra.mxu0 0
        %2223 = vmatprep.subr.bf16.mxu0 0
        %2224 = vmatpush1.bf16.msra.mxu0 0
        %2225 = vmatprep.subr.bf16.mxu0 0
        %2226 = vmatpush1.bf16.msra.mxu0 0
        %2227 = vmatprep.subr.bf16.mxu0 0
        %2228 = vmatpush1.bf16.msra.mxu0 0
        %2229 = vmatprep.subr.bf16.mxu0 0
        %2230 = vmatpush1.bf16.msra.mxu0 0
        %2231 = vmatprep.subr.bf16.mxu0 0
        %2232 = vmatpush1.bf16.msra.mxu0 0
        %2233 = vmatprep.subr.bf16.mxu0 0
        %2234 = vmatpush1.bf16.msra.mxu0 0
        %2235 = vmatprep.subr.bf16.mxu0 0
        %2236 = vmatpush1.bf16.msra.mxu0 0
        %2237 = vmatprep.subr.bf16.mxu0 0
        %2238 = vmatpush1.bf16.msra.mxu0 0
        %2239 = vmatprep.subr.bf16.mxu0 0
        %2240 = vmatpush1.bf16.msra.mxu0 0
        %2241 = vmatprep.subr.bf16.mxu0 0
        %2242 = vmatpush1.bf16.msra.mxu0 0
        %2243 = vmatprep.subr.bf16.mxu0 0
        %2244 = vmatpush1.bf16.msra.mxu0 0
        %2245 = vmatprep.subr.bf16.mxu0 0
        %2246 = vmatpush1.bf16.msra.mxu0 0
        %2247 = vmatprep.subr.bf16.mxu0 0
        %2248 = vmatpush1.bf16.msra.mxu0 0
        %2249 = vmatprep.mubr.bf16.mxu0 0
        %2250 = vmatmul.mubr.bf16.gmra.mrb[0].mxu0 %v2203
        %v2251 = vpop.f32.mrb[0].mxu0
        %v2252 = vadd.f32 0.0, %v2251
        %v2253 = vpop.f32.mrb[0].mxu0
        %v2254 = vpop.f32.mrb[0].mxu0
        %v2255 = vadd.f32 0.0, %v2254
        %v2256 = vpop.f32.mrb[0].mxu0
        %2257 = vmatprep.mubr.bf16.mxu0 0
        %2258 = vmatmul.mubr.bf16.gmra.mrb[0].mxu0 %v2206
        %v2259 = vpop.f32.mrb[0].mxu0
        %v2260 = vadd.f32 0.0, %v2259
        %v2261 = vpop.f32.mrb[0].mxu0
        %v2262 = vpop.f32.mrb[0].mxu0
        %v2263 = vadd.f32 0.0, %v2262
        %v2264 = vpop.f32.mrb[0].mxu0
        %2265 = vmatprep.mubr.bf16.mxu0 0
        %2266 = vmatmul.mubr.bf16.gmra.mrb[0].mxu0 %v2209
        %v2267 = vpop.f32.mrb[0].mxu0
        %v2268 = vadd.f32 0.0, %v2267
        %v2269 = vpop.f32.mrb[0].mxu0
        %v2270 = vpop.f32.mrb[0].mxu0
        %v2271 = vadd.f32 0.0, %v2270
        %v2272 = vpop.f32.mrb[0].mxu0
        %2273 = vmatprep.mubr.bf16.mxu0 0
        %2274 = vmatmul.mubr.bf16.gmra.mrb[0].mxu0 %v2212
        %v2275 = vpop.f32.mrb[0].mxu0
        %v2276 = vadd.f32 0.0, %v2275
        %v2277 = vpop.f32.mrb[0].mxu0
        %v2278 = vpop.f32.mrb[0].mxu0
        %v2279 = vadd.f32 0.0, %v2278
        %v2280 = vpop.f32.mrb[0].mxu0
        %2281 = vdwg.mxu0
        %v2282 = vadd.f32 %v2074, %v2252
        %v2283 = vadd.f32 %v2075, %v2255
        %v2284 = vadd.f32 %v2076, %v2260
        %v2285 = vadd.f32 %v2077, %v2263
        %v2286 = vadd.f32 %v2078, %v2268
        %v2287 = vadd.f32 %v2079, %v2271
        %v2288 = vadd.f32 %v2080, %v2276
        %v2289 = vadd.f32 %v2081, %v2279
        %s2290 = scalar_lea.vmem [#allocation2], 512
        %v2291 = vld [vmem:[%s2290] sm:$0xff]
        %v2292 = vld [vmem:[%s2290 + $0x8] sm:$0xff]
        %v2293 = vld [vmem:[%s2290 + $0x10] sm:$0xff]
        %v2294 = vld [vmem:[%s2290 + $0x18] sm:$0xff]
        %v2295 = vld [vmem:[%s2290 + $0x20] sm:$0xff]
        %v2296 = vld [vmem:[%s2290 + $0x28] sm:$0xff]
        %v2297 = vld [vmem:[%s2290 + $0x30] sm:$0xff]
        %v2298 = vld [vmem:[%s2290 + $0x38] sm:$0xff]
        %v2307 = vunpack.c.l.b16 %v2291
        %v2308 = vunpack.c.h.b16 %v2291
        %v2309 = vunpack.c.l.b16 %v2292
        %v2310 = vunpack.c.h.b16 %v2292
        %v2311 = vunpack.c.l.b16 %v2293
        %v2312 = vunpack.c.h.b16 %v2293
        %v2313 = vunpack.c.l.b16 %v2294
        %v2314 = vunpack.c.h.b16 %v2294
        %v2315 = vunpack.c.l.b16 %v2295
        %v2316 = vunpack.c.h.b16 %v2295
        %v2317 = vunpack.c.l.b16 %v2296
        %v2318 = vunpack.c.h.b16 %v2296
        %v2319 = vunpack.c.l.b16 %v2297
        %v2320 = vunpack.c.h.b16 %v2297
        %v2321 = vunpack.c.l.b16 %v2298
        %v2322 = vunpack.c.h.b16 %v2298
        %v2323 = vpack.c.b16 %v2309, %v2307
        %v2324 = vpack.c.b16 %v2310, %v2308
        %v2325 = vpack.c.b16 %v2313, %v2311
        %v2326 = vpack.c.b16 %v2314, %v2312
        %v2327 = vpack.c.b16 %v2317, %v2315
        %v2328 = vpack.c.b16 %v2318, %v2316
        %v2329 = vpack.c.b16 %v2321, %v2319
        %v2330 = vpack.c.b16 %v2322, %v2320
        %2339 = vmatprep.subr.bf16.mxu0 0
        %2340 = vmatpush1.bf16.msra.mxu0 %v655
        %2341 = vmatprep.subr.bf16.mxu0 0
        %2342 = vmatpush1.bf16.msra.mxu0 %v656
        %2343 = vmatprep.subr.bf16.mxu0 0
        %2344 = vmatpush1.bf16.msra.mxu0 %v657
        %2345 = vmatprep.subr.bf16.mxu0 0
        %2346 = vmatpush1.bf16.msra.mxu0 %v658
        %2347 = vmatprep.subr.bf16.mxu0 0
        %2348 = vmatpush1.bf16.msra.mxu0 %v659
        %2349 = vmatprep.subr.bf16.mxu0 0
        %2350 = vmatpush1.bf16.msra.mxu0 %v660
        %2351 = vmatprep.subr.bf16.mxu0 0
        %2352 = vmatpush1.bf16.msra.mxu0 %v661
        %2353 = vmatprep.subr.bf16.mxu0 0
        %2354 = vmatpush1.bf16.msra.mxu0 %v662
        %2355 = vmatprep.subr.bf16.mxu0 0
        %2356 = vmatpush1.bf16.msra.mxu0 %v663
        %2357 = vmatprep.subr.bf16.mxu0 0
        %2358 = vmatpush1.bf16.msra.mxu0 %v664
        %2359 = vmatprep.subr.bf16.mxu0 0
        %2360 = vmatpush1.bf16.msra.mxu0 %v665
        %2361 = vmatprep.subr.bf16.mxu0 0
        %2362 = vmatpush1.bf16.msra.mxu0 %v666
        %2363 = vmatprep.subr.bf16.mxu0 0
        %2364 = vmatpush1.bf16.msra.mxu0 %v667
        %2365 = vmatprep.subr.bf16.mxu0 0
        %2366 = vmatpush1.bf16.msra.mxu0 %v668
        %2367 = vmatprep.subr.bf16.mxu0 0
        %2368 = vmatpush1.bf16.msra.mxu0 %v669
        %2369 = vmatprep.subr.bf16.mxu0 0
        %2370 = vmatpush1.bf16.msra.mxu0 %v670
        %2371 = vmatprep.mubr.bf16.mxu0 %v2324
        %2372 = vmatmul.mubr.bf16.gmra.mrb[0].mxu0 %v2323
        %v2373 = vpop.f32.mrb[0].mxu0
        %v2374 = vadd.f32 0.0, %v2373
        %v2375 = vpop.f32.mrb[0].mxu0
        %v2376 = vpop.f32.mrb[0].mxu0
        %v2377 = vadd.f32 0.0, %v2376
        %v2378 = vpop.f32.mrb[0].mxu0
        %2379 = vmatprep.mubr.bf16.mxu0 %v2326
        %2380 = vmatmul.mubr.bf16.gmra.mrb[0].mxu0 %v2325
        %v2381 = vpop.f32.mrb[0].mxu0
        %v2382 = vadd.f32 0.0, %v2381
        %v2383 = vpop.f32.mrb[0].mxu0
        %v2384 = vpop.f32.mrb[0].mxu0
        %v2385 = vadd.f32 0.0, %v2384
        %v2386 = vpop.f32.mrb[0].mxu0
        %2387 = vmatprep.mubr.bf16.mxu0 %v2328
        %2388 = vmatmul.mubr.bf16.gmra.mrb[0].mxu0 %v2327
        %v2389 = vpop.f32.mrb[0].mxu0
        %v2390 = vadd.f32 0.0, %v2389
        %v2391 = vpop.f32.mrb[0].mxu0
        %v2392 = vpop.f32.mrb[0].mxu0
        %v2393 = vadd.f32 0.0, %v2392
        %v2394 = vpop.f32.mrb[0].mxu0
        %2395 = vmatprep.mubr.bf16.mxu0 %v2330
        %2396 = vmatmul.mubr.bf16.gmra.mrb[0].mxu0 %v2329
        %v2397 = vpop.f32.mrb[0].mxu0
        %v2398 = vadd.f32 0.0, %v2397
        %v2399 = vpop.f32.mrb[0].mxu0
        %v2400 = vpop.f32.mrb[0].mxu0
        %v2401 = vadd.f32 0.0, %v2400
        %v2402 = vpop.f32.mrb[0].mxu0
        %2403 = vdwg.mxu0
        %v2404 = vpack.c.bf16 %v2377, %v2374
        %v2405 = vpack.c.bf16 %v2385, %v2382
        %v2406 = vpack.c.bf16 %v2393, %v2390
        %v2407 = vpack.c.bf16 %v2401, %v2398
        %s2408 = scalar_lea.vmem %s2, 16
        %v2409 = vld [vmem:[%s2408] sm:$0x3]
        %v2411 = vsel %vm877, %v2404, 0
        %v2414 = vsel %vm877, %v2405, 0
        %v2417 = vsel %vm877, %v2406, 0
        %v2420 = vsel %vm877, %v2407, 0
        %v2423 = vand.u32 %v2409, %v893
        %2425 = vmatprep.subr.bf16.mxu0 0
        %2426 = vmatpush1.bf16.msra.mxu0 %v2423
        %2427 = vmatprep.subr.bf16.mxu0 0
        %2428 = vmatpush1.bf16.msra.mxu0 0
        %2429 = vmatprep.subr.bf16.mxu0 0
        %2430 = vmatpush1.bf16.msra.mxu0 0
        %2431 = vmatprep.subr.bf16.mxu0 0
        %2432 = vmatpush1.bf16.msra.mxu0 0
        %2433 = vmatprep.subr.bf16.mxu0 0
        %2434 = vmatpush1.bf16.msra.mxu0 0
        %2435 = vmatprep.subr.bf16.mxu0 0
        %2436 = vmatpush1.bf16.msra.mxu0 0
        %2437 = vmatprep.subr.bf16.mxu0 0
        %2438 = vmatpush1.bf16.msra.mxu0 0
        %2439 = vmatprep.subr.bf16.mxu0 0
        %2440 = vmatpush1.bf16.msra.mxu0 0
        %2441 = vmatprep.subr.bf16.mxu0 0
        %2442 = vmatpush1.bf16.msra.mxu0 0
        %2443 = vmatprep.subr.bf16.mxu0 0
        %2444 = vmatpush1.bf16.msra.mxu0 0
        %2445 = vmatprep.subr.bf16.mxu0 0
        %2446 = vmatpush1.bf16.msra.mxu0 0
        %2447 = vmatprep.subr.bf16.mxu0 0
        %2448 = vmatpush1.bf16.msra.mxu0 0
        %2449 = vmatprep.subr.bf16.mxu0 0
        %2450 = vmatpush1.bf16.msra.mxu0 0
        %2451 = vmatprep.subr.bf16.mxu0 0
        %2452 = vmatpush1.bf16.msra.mxu0 0
        %2453 = vmatprep.subr.bf16.mxu0 0
        %2454 = vmatpush1.bf16.msra.mxu0 0
        %2455 = vmatprep.subr.bf16.mxu0 0
        %2456 = vmatpush1.bf16.msra.mxu0 0
        %2457 = vmatprep.mubr.bf16.mxu0 0
        %2458 = vmatmul.mubr.bf16.gmra.mrb[0].mxu0 %v2411
        %v2459 = vpop.f32.mrb[0].mxu0
        %v2460 = vadd.f32 0.0, %v2459
        %v2461 = vpop.f32.mrb[0].mxu0
        %v2462 = vpop.f32.mrb[0].mxu0
        %v2463 = vadd.f32 0.0, %v2462
        %v2464 = vpop.f32.mrb[0].mxu0
        %2465 = vmatprep.mubr.bf16.mxu0 0
        %2466 = vmatmul.mubr.bf16.gmra.mrb[0].mxu0 %v2414
        %v2467 = vpop.f32.mrb[0].mxu0
        %v2468 = vadd.f32 0.0, %v2467
        %v2469 = vpop.f32.mrb[0].mxu0
        %v2470 = vpop.f32.mrb[0].mxu0
        %v2471 = vadd.f32 0.0, %v2470
        %v2472 = vpop.f32.mrb[0].mxu0
        %2473 = vmatprep.mubr.bf16.mxu0 0
        %2474 = vmatmul.mubr.bf16.gmra.mrb[0].mxu0 %v2417
        %v2475 = vpop.f32.mrb[0].mxu0
        %v2476 = vadd.f32 0.0, %v2475
        %v2477 = vpop.f32.mrb[0].mxu0
        %v2478 = vpop.f32.mrb[0].mxu0
        %v2479 = vadd.f32 0.0, %v2478
        %v2480 = vpop.f32.mrb[0].mxu0
        %2481 = vmatprep.mubr.bf16.mxu0 0
        %2482 = vmatmul.mubr.bf16.gmra.mrb[0].mxu0 %v2420
        %v2483 = vpop.f32.mrb[0].mxu0
        %v2484 = vadd.f32 0.0, %v2483
        %v2485 = vpop.f32.mrb[0].mxu0
        %v2486 = vpop.f32.mrb[0].mxu0
        %v2487 = vadd.f32 0.0, %v2486
        %v2488 = vpop.f32.mrb[0].mxu0
        %2489 = vdwg.mxu0
        %v2490 = vadd.f32 %v2282, %v2460
        %v2491 = vadd.f32 %v2283, %v2463
        %v2492 = vadd.f32 %v2284, %v2468
        %v2493 = vadd.f32 %v2285, %v2471
        %v2494 = vadd.f32 %v2286, %v2476
        %v2495 = vadd.f32 %v2287, %v2479
        %v2496 = vadd.f32 %v2288, %v2484
        %v2497 = vadd.f32 %v2289, %v2487
        %v2498 = vld [vmem:[%s3] sm:$0x1]
        %v2500 = vlaneseq
        %v2501 = vshrl.u32 %v2500, 7
        %v2502 = vsub.s32 0, %v2501
        %v2503 = vrot.slane %v2498, %v2502
        %v2505 = vadd.f32 %v2490, %v2503
        %v2506 = vadd.f32 %v2491, %v2503
        %v2507 = vadd.f32 %v2492, %v2503
        %v2508 = vadd.f32 %v2493, %v2503
        %v2509 = vadd.f32 %v2494, %v2503
        %v2510 = vadd.f32 %v2495, %v2503
        %v2511 = vadd.f32 %v2496, %v2503
        %v2512 = vadd.f32 %v2497, %v2503
        %v2513 = vsub.f32 0.0, %v2505
        %v2514 = vsub.f32 0.0, %v2506
        %v2515 = vsub.f32 0.0, %v2507
        %v2516 = vsub.f32 0.0, %v2508
        %v2517 = vsub.f32 0.0, %v2509
        %v2518 = vsub.f32 0.0, %v2510
        %v2519 = vsub.f32 0.0, %v2511
        %v2520 = vsub.f32 0.0, %v2512
        %v2521 = vmul.f32 %v2513, 1.442695
        %v2522 = vpow.pop %v2521
        %v2523 = vmul.f32 %v2514, 1.442695
        %v2524 = vpow.pop %v2523
        %v2525 = vmul.f32 %v2515, 1.442695
        %v2526 = vpow.pop %v2525
        %v2527 = vmul.f32 %v2516, 1.442695
        %v2528 = vpow.pop %v2527
        %v2529 = vmul.f32 %v2517, 1.442695
        %v2530 = vpow.pop %v2529
        %v2531 = vmul.f32 %v2518, 1.442695
        %v2532 = vpow.pop %v2531
        %v2533 = vmul.f32 %v2519, 1.442695
        %v2534 = vpow.pop %v2533
        %v2535 = vmul.f32 %v2520, 1.442695
        %v2536 = vpow.pop %v2535
        %v2537 = vadd.f32 %v2522, 1.0
        %v2538 = vadd.f32 %v2524, 1.0
        %v2539 = vadd.f32 %v2526, 1.0
        %v2540 = vadd.f32 %v2528, 1.0
        %v2541 = vadd.f32 %v2530, 1.0
        %v2542 = vadd.f32 %v2532, 1.0
        %v2543 = vadd.f32 %v2534, 1.0
        %v2544 = vadd.f32 %v2536, 1.0
        %v2545 = vrcp.pop %v2537
        %v2546 = vmul.f32 %v2505, %v2545
        %v2547 = vrcp.pop %v2538
        %v2548 = vmul.f32 %v2506, %v2547
        %v2549 = vrcp.pop %v2539
        %v2550 = vmul.f32 %v2507, %v2549
        %v2551 = vrcp.pop %v2540
        %v2552 = vmul.f32 %v2508, %v2551
        %v2553 = vrcp.pop %v2541
        %v2554 = vmul.f32 %v2509, %v2553
        %v2555 = vrcp.pop %v2542
        %v2556 = vmul.f32 %v2510, %v2555
        %v2557 = vrcp.pop %v2543
        %v2558 = vmul.f32 %v2511, %v2557
        %v2559 = vrcp.pop %v2544
        %v2560 = vmul.f32 %v2512, %v2559
        %v2561 = vpack.c.bf16 %v2548, %v2546
        %v2562 = vpack.c.bf16 %v2552, %v2550
        %v2563 = vpack.c.bf16 %v2556, %v2554
        %v2564 = vpack.c.bf16 %v2560, %v2558
        %v2565 = vld [vmem:[%s4] sm:$0xf]
        %v2566 = vld [vmem:[%s4 + $0x4] sm:$0xf]
        %v2569 = vunpack.c.l.b16 %v2565
        %v2570 = vunpack.c.l.b16 %v2566
        %v2571 = vpack.c.b16 %v2570, %v2569
        %vm2572 = vcmask 523264
        %v2574 = vsel %vm2572, %v2571, 0
        %2576 = vmatprep.subr.bf16.mxu0 0
        %2577 = vmatpush1.bf16.msra.mxu0 %v2561
        %2578 = vmatprep.subr.bf16.mxu0 0
        %2579 = vmatpush1.bf16.msra.mxu0 %v2562
        %2580 = vmatprep.subr.bf16.mxu0 0
        %2581 = vmatpush1.bf16.msra.mxu0 %v2563
        %2582 = vmatprep.subr.bf16.mxu0 0
        %2583 = vmatpush1.bf16.msra.mxu0 %v2564
        %2584 = vmatprep.subr.bf16.mxu0 0
        %2585 = vmatpush1.bf16.msra.mxu0 0
        %2586 = vmatprep.subr.bf16.mxu0 0
        %2587 = vmatpush1.bf16.msra.mxu0 0
        %2588 = vmatprep.subr.bf16.mxu0 0
        %2589 = vmatpush1.bf16.msra.mxu0 0
        %2590 = vmatprep.subr.bf16.mxu0 0
        %2591 = vmatpush1.bf16.msra.mxu0 0
        %2592 = vmatprep.subr.bf16.mxu0 0
        %2593 = vmatpush1.bf16.msra.mxu0 0
        %2594 = vmatprep.subr.bf16.mxu0 0
        %2595 = vmatpush1.bf16.msra.mxu0 0
        %2596 = vmatprep.subr.bf16.mxu0 0
        %2597 = vmatpush1.bf16.msra.mxu0 0
        %2598 = vmatprep.subr.bf16.mxu0 0
        %2599 = vmatpush1.bf16.msra.mxu0 0
        %2600 = vmatprep.subr.bf16.mxu0 0
        %2601 = vmatpush1.bf16.msra.mxu0 0
        %2602 = vmatprep.subr.bf16.mxu0 0
        %2603 = vmatpush1.bf16.msra.mxu0 0
        %2604 = vmatprep.subr.bf16.mxu0 0
        %2605 = vmatpush1.bf16.msra.mxu0 0
        %2606 = vmatprep.subr.bf16.mxu0 0
        %2607 = vmatpush1.bf16.msra.mxu0 0
        %2608 = vmatprep.mubr.bf16.mxu0 0
        %2609 = vmatmul.mubr.bf16.gmra.mrb[0].mxu0 %v2574
        %v2610 = vpop.f32.mrb[0].mxu0
        %v2611 = vadd.f32 0.0, %v2610
        %v2612 = vpop.f32.mrb[0].mxu0
        %v2613 = vpop.f32.mrb[0].mxu0
        %v2614 = vadd.f32 0.0, %v2613
        %v2615 = vpop.f32.mrb[0].mxu0
        %2616 = vdwg.mxu0
        %v2617 = vpack.c.bf16 %v2614, %v2611
        %v2618 = vld [vmem:[%s5] sm:$0xf]
        %v2619 = vld [vmem:[%s5 + $0x4] sm:$0xf]
        %s2620 = scalar_lea.vmem %s4, 8
        %v2621 = vld [vmem:[%s2620] sm:$0xf]
        %v2622 = vld [vmem:[%s2620 + $0x4] sm:$0xf]
        %v2625 = vunpack.c.l.b16 %v2621
        %v2626 = vunpack.c.l.b16 %v2622
        %v2627 = vpack.c.b16 %v2626, %v2625
        %v2629 = vsel %vm2572, %v2627, 0
        %2631 = vmatprep.subr.bf16.mxu0 0
        %2632 = vmatpush1.bf16.msra.mxu0 %v2561
        %2633 = vmatprep.subr.bf16.mxu0 0
        %2634 = vmatpush1.bf16.msra.mxu0 %v2562
        %2635 = vmatprep.subr.bf16.mxu0 0
        %2636 = vmatpush1.bf16.msra.mxu0 %v2563
        %2637 = vmatprep.subr.bf16.mxu0 0
        %2638 = vmatpush1.bf16.msra.mxu0 %v2564
        %2639 = vmatprep.subr.bf16.mxu0 0
        %2640 = vmatpush1.bf16.msra.mxu0 0
        %2641 = vmatprep.subr.bf16.mxu0 0
        %2642 = vmatpush1.bf16.msra.mxu0 0
        %2643 = vmatprep.subr.bf16.mxu0 0
        %2644 = vmatpush1.bf16.msra.mxu0 0
        %2645 = vmatprep.subr.bf16.mxu0 0
        %2646 = vmatpush1.bf16.msra.mxu0 0
        %2647 = vmatprep.subr.bf16.mxu0 0
        %2648 = vmatpush1.bf16.msra.mxu0 0
        %2649 = vmatprep.subr.bf16.mxu0 0
        %2650 = vmatpush1.bf16.msra.mxu0 0
        %2651 = vmatprep.subr.bf16.mxu0 0
        %2652 = vmatpush1.bf16.msra.mxu0 0
        %2653 = vmatprep.subr.bf16.mxu0 0
        %2654 = vmatpush1.bf16.msra.mxu0 0
        %2655 = vmatprep.subr.bf16.mxu0 0
        %2656 = vmatpush1.bf16.msra.mxu0 0
        %2657 = vmatprep.subr.bf16.mxu0 0
        %2658 = vmatpush1.bf16.msra.mxu0 0
        %2659 = vmatprep.subr.bf16.mxu0 0
        %2660 = vmatpush1.bf16.msra.mxu0 0
        %2661 = vmatprep.subr.bf16.mxu0 0
        %2662 = vmatpush1.bf16.msra.mxu0 0
        %2663 = vmatprep.mubr.bf16.mxu0 0
        %2664 = vmatmul.mubr.bf16.gmra.mrb[0].mxu0 %v2629
        %v2665 = vpop.f32.mrb[0].mxu0
        %v2666 = vadd.f32 0.0, %v2665
        %v2667 = vpop.f32.mrb[0].mxu0
        %v2668 = vpop.f32.mrb[0].mxu0
        %v2669 = vadd.f32 0.0, %v2668
        %v2670 = vpop.f32.mrb[0].mxu0
        %2671 = vdwg.mxu0
        %v2672 = vpack.c.bf16 %v2669, %v2666
        %s2673 = scalar_lea.vmem %s5, 8
        %v2674 = vld [vmem:[%s2673] sm:$0xf]
        %v2675 = vld [vmem:[%s2673 + $0x4] sm:$0xf]
        %v2678 = vunpack.c.l.b16 %v2674
        %v2679 = vunpack.c.l.b16 %v2675
        %v2680 = vpack.c.b16 %v2679, %v2678
        %vm2682 = vcmask 130048
        %v2684 = vsel %vm2682, %v2672, 0
        %2686 = vmatprep.subr.bf16.mxu0 0
        %2687 = vmatpush1.bf16.msra.mxu0 %v2680
        %2688 = vmatprep.subr.bf16.mxu0 0
        %2689 = vmatpush1.bf16.msra.mxu0 0
        %2690 = vmatprep.subr.bf16.mxu0 0
        %2691 = vmatpush1.bf16.msra.mxu0 0
        %2692 = vmatprep.subr.bf16.mxu0 0
        %2693 = vmatpush1.bf16.msra.mxu0 0
        %2694 = vmatprep.subr.bf16.mxu0 0
        %2695 = vmatpush1.bf16.msra.mxu0 0
        %2696 = vmatprep.subr.bf16.mxu0 0
        %2697 = vmatpush1.bf16.msra.mxu0 0
        %2698 = vmatprep.subr.bf16.mxu0 0
        %2699 = vmatpush1.bf16.msra.mxu0 0
        %2700 = vmatprep.subr.bf16.mxu0 0
        %2701 = vmatpush1.bf16.msra.mxu0 0
        %2702 = vmatprep.subr.bf16.mxu0 0
        %2703 = vmatpush1.bf16.msra.mxu0 0
        %2704 = vmatprep.subr.bf16.mxu0 0
        %2705 = vmatpush1.bf16.msra.mxu0 0
        %2706 = vmatprep.subr.bf16.mxu0 0
        %2707 = vmatpush1.bf16.msra.mxu0 0
        %2708 = vmatprep.subr.bf16.mxu0 0
        %2709 = vmatpush1.bf16.msra.mxu0 0
        %2710 = vmatprep.subr.bf16.mxu0 0
        %2711 = vmatpush1.bf16.msra.mxu0 0
        %2712 = vmatprep.subr.bf16.mxu0 0
        %2713 = vmatpush1.bf16.msra.mxu0 0
        %2714 = vmatprep.subr.bf16.mxu0 0
        %2715 = vmatpush1.bf16.msra.mxu0 0
        %2716 = vmatprep.subr.bf16.mxu0 0
        %2717 = vmatpush1.bf16.msra.mxu0 0
        %2718 = vmatprep.mubr.bf16.mxu0 0
        %2719 = vmatmul.mubr.bf16.gmra.mrb[0].mxu0 %v2684
        %v2720 = vpop.f32.mrb[0].mxu0
        %v2721 = vadd.f32 0.0, %v2720
        %v2722 = vpop.f32.mrb[0].mxu0
        %v2723 = vpop.f32.mrb[0].mxu0
        %v2724 = vadd.f32 0.0, %v2723
        %v2725 = vpop.f32.mrb[0].mxu0
        %2726 = vdwg.mxu0
        %v2729 = vunpack.c.l.b16 %v2618
        %v2730 = vunpack.c.l.b16 %v2619
        %v2731 = vpack.c.b16 %v2730, %v2729
        %v2734 = vsel %vm2682, %v2617, 0
        %2736 = vmatprep.subr.bf16.mxu0 0
        %2737 = vmatpush1.bf16.msra.mxu0 %v2731
        %2738 = vmatprep.subr.bf16.mxu0 0
        %2739 = vmatpush1.bf16.msra.mxu0 0
        %2740 = vmatprep.subr.bf16.mxu0 0
        %2741 = vmatpush1.bf16.msra.mxu0 0
        %2742 = vmatprep.subr.bf16.mxu0 0
        %2743 = vmatpush1.bf16.msra.mxu0 0
        %2744 = vmatprep.subr.bf16.mxu0 0
        %2745 = vmatpush1.bf16.msra.mxu0 0
        %2746 = vmatprep.subr.bf16.mxu0 0
        %2747 = vmatpush1.bf16.msra.mxu0 0
        %2748 = vmatprep.subr.bf16.mxu0 0
        %2749 = vmatpush1.bf16.msra.mxu0 0
        %2750 = vmatprep.subr.bf16.mxu0 0
        %2751 = vmatpush1.bf16.msra.mxu0 0
        %2752 = vmatprep.subr.bf16.mxu0 0
        %2753 = vmatpush1.bf16.msra.mxu0 0
        %2754 = vmatprep.subr.bf16.mxu0 0
        %2755 = vmatpush1.bf16.msra.mxu0 0
        %2756 = vmatprep.subr.bf16.mxu0 0
        %2757 = vmatpush1.bf16.msra.mxu0 0
        %2758 = vmatprep.subr.bf16.mxu0 0
        %2759 = vmatpush1.bf16.msra.mxu0 0
        %2760 = vmatprep.subr.bf16.mxu0 0
        %2761 = vmatpush1.bf16.msra.mxu0 0
        %2762 = vmatprep.subr.bf16.mxu0 0
        %2763 = vmatpush1.bf16.msra.mxu0 0
        %2764 = vmatprep.subr.bf16.mxu0 0
        %2765 = vmatpush1.bf16.msra.mxu0 0
        %2766 = vmatprep.subr.bf16.mxu0 0
        %2767 = vmatpush1.bf16.msra.mxu0 0
        %2768 = vmatprep.mubr.bf16.mxu0 0
        %2769 = vmatmul.mubr.bf16.gmra.mrb[0].mxu0 %v2734
        %v2770 = vpop.f32.mrb[0].mxu0
        %v2771 = vadd.f32 %v2721, %v2770
        %v2772 = vpop.f32.mrb[0].mxu0
        %v2773 = vpop.f32.mrb[0].mxu0
        %v2774 = vadd.f32 %v2724, %v2773
        %v2775 = vpop.f32.mrb[0].mxu0
        %2776 = vdwg.mxu0
        %s2777 = scalar_lea.vmem %s4, 16
        %v2778 = vld [vmem:[%s2777] sm:$0xf]
        %v2779 = vld [vmem:[%s2777 + $0x4] sm:$0xf]
        %v2782 = vunpack.c.l.b16 %v2778
        %v2783 = vunpack.c.l.b16 %v2779
        %v2784 = vpack.c.b16 %v2783, %v2782
        %v2786 = vsel %vm2572, %v2784, 0
        %2788 = vmatprep.subr.bf16.mxu0 0
        %2789 = vmatpush1.bf16.msra.mxu0 %v2561
        %2790 = vmatprep.subr.bf16.mxu0 0
        %2791 = vmatpush1.bf16.msra.mxu0 %v2562
        %2792 = vmatprep.subr.bf16.mxu0 0
        %2793 = vmatpush1.bf16.msra.mxu0 %v2563
        %2794 = vmatprep.subr.bf16.mxu0 0
        %2795 = vmatpush1.bf16.msra.mxu0 %v2564
        %2796 = vmatprep.subr.bf16.mxu0 0
        %2797 = vmatpush1.bf16.msra.mxu0 0
        %2798 = vmatprep.subr.bf16.mxu0 0
        %2799 = vmatpush1.bf16.msra.mxu0 0
        %2800 = vmatprep.subr.bf16.mxu0 0
        %2801 = vmatpush1.bf16.msra.mxu0 0
        %2802 = vmatprep.subr.bf16.mxu0 0
        %2803 = vmatpush1.bf16.msra.mxu0 0
        %2804 = vmatprep.subr.bf16.mxu0 0
        %2805 = vmatpush1.bf16.msra.mxu0 0
        %2806 = vmatprep.subr.bf16.mxu0 0
        %2807 = vmatpush1.bf16.msra.mxu0 0
        %2808 = vmatprep.subr.bf16.mxu0 0
        %2809 = vmatpush1.bf16.msra.mxu0 0
        %2810 = vmatprep.subr.bf16.mxu0 0
        %2811 = vmatpush1.bf16.msra.mxu0 0
        %2812 = vmatprep.subr.bf16.mxu0 0
        %2813 = vmatpush1.bf16.msra.mxu0 0
        %2814 = vmatprep.subr.bf16.mxu0 0
        %2815 = vmatpush1.bf16.msra.mxu0 0
        %2816 = vmatprep.subr.bf16.mxu0 0
        %2817 = vmatpush1.bf16.msra.mxu0 0
        %2818 = vmatprep.subr.bf16.mxu0 0
        %2819 = vmatpush1.bf16.msra.mxu0 0
        %2820 = vmatprep.mubr.bf16.mxu0 0
        %2821 = vmatmul.mubr.bf16.gmra.mrb[0].mxu0 %v2786
        %v2822 = vpop.f32.mrb[0].mxu0
        %v2823 = vadd.f32 0.0, %v2822
        %v2824 = vpop.f32.mrb[0].mxu0
        %v2825 = vpop.f32.mrb[0].mxu0
        %v2826 = vadd.f32 0.0, %v2825
        %v2827 = vpop.f32.mrb[0].mxu0
        %2828 = vdwg.mxu0
        %v2829 = vpack.c.bf16 %v2826, %v2823
        %s2830 = scalar_lea.vmem %s5, 16
        %v2831 = vld [vmem:[%s2830] sm:$0xf]
        %v2832 = vld [vmem:[%s2830 + $0x4] sm:$0xf]
        %v2835 = vunpack.c.l.b16 %v2831
        %v2836 = vunpack.c.l.b16 %v2832
        %v2837 = vpack.c.b16 %v2836, %v2835
        %v2840 = vsel %vm2682, %v2829, 0
        %2842 = vmatprep.subr.bf16.mxu0 0
        %2843 = vmatpush1.bf16.msra.mxu0 %v2837
        %2844 = vmatprep.subr.bf16.mxu0 0
        %2845 = vmatpush1.bf16.msra.mxu0 0
        %2846 = vmatprep.subr.bf16.mxu0 0
        %2847 = vmatpush1.bf16.msra.mxu0 0
        %2848 = vmatprep.subr.bf16.mxu0 0
        %2849 = vmatpush1.bf16.msra.mxu0 0
        %2850 = vmatprep.subr.bf16.mxu0 0
        %2851 = vmatpush1.bf16.msra.mxu0 0
        %2852 = vmatprep.subr.bf16.mxu0 0
        %2853 = vmatpush1.bf16.msra.mxu0 0
        %2854 = vmatprep.subr.bf16.mxu0 0
        %2855 = vmatpush1.bf16.msra.mxu0 0
        %2856 = vmatprep.subr.bf16.mxu0 0
        %2857 = vmatpush1.bf16.msra.mxu0 0
        %2858 = vmatprep.subr.bf16.mxu0 0
        %2859 = vmatpush1.bf16.msra.mxu0 0
        %2860 = vmatprep.subr.bf16.mxu0 0
        %2861 = vmatpush1.bf16.msra.mxu0 0
        %2862 = vmatprep.subr.bf16.mxu0 0
        %2863 = vmatpush1.bf16.msra.mxu0 0
        %2864 = vmatprep.subr.bf16.mxu0 0
        %2865 = vmatpush1.bf16.msra.mxu0 0
        %2866 = vmatprep.subr.bf16.mxu0 0
        %2867 = vmatpush1.bf16.msra.mxu0 0
        %2868 = vmatprep.subr.bf16.mxu0 0
        %2869 = vmatpush1.bf16.msra.mxu0 0
        %2870 = vmatprep.subr.bf16.mxu0 0
        %2871 = vmatpush1.bf16.msra.mxu0 0
        %2872 = vmatprep.subr.bf16.mxu0 0
        %2873 = vmatpush1.bf16.msra.mxu0 0
        %2874 = vmatprep.mubr.bf16.mxu0 0
        %2875 = vmatmul.mubr.bf16.gmra.mrb[0].mxu0 %v2840
        %v2876 = vpop.f32.mrb[0].mxu0
        %v2877 = vadd.f32 0.0, %v2876
        %v2878 = vpop.f32.mrb[0].mxu0
        %v2879 = vpop.f32.mrb[0].mxu0
        %v2880 = vadd.f32 0.0, %v2879
        %v2881 = vpop.f32.mrb[0].mxu0
        %2882 = vdwg.mxu0
        %v2883 = vadd.f32 %v2771, %v2877
        %v2884 = vadd.f32 %v2774, %v2880
        %s2885 = scalar_lea.vmem %s4, 24
        %v2886 = vld [vmem:[%s2885] sm:$0xf]
        %v2887 = vld [vmem:[%s2885 + $0x4] sm:$0xf]
        %v2890 = vunpack.c.l.b16 %v2886
        %v2891 = vunpack.c.l.b16 %v2887
        %v2892 = vpack.c.b16 %v2891, %v2890
        %v2894 = vsel %vm2572, %v2892, 0
        %2896 = vmatprep.subr.bf16.mxu0 0
        %2897 = vmatpush1.bf16.msra.mxu0 %v2561
        %2898 = vmatprep.subr.bf16.mxu0 0
        %2899 = vmatpush1.bf16.msra.mxu0 %v2562
        %2900 = vmatprep.subr.bf16.mxu0 0
        %2901 = vmatpush1.bf16.msra.mxu0 %v2563
        %2902 = vmatprep.subr.bf16.mxu0 0
        %2903 = vmatpush1.bf16.msra.mxu0 %v2564
        %2904 = vmatprep.subr.bf16.mxu0 0
        %2905 = vmatpush1.bf16.msra.mxu0 0
        %2906 = vmatprep.subr.bf16.mxu0 0
        %2907 = vmatpush1.bf16.msra.mxu0 0
        %2908 = vmatprep.subr.bf16.mxu0 0
        %2909 = vmatpush1.bf16.msra.mxu0 0
        %2910 = vmatprep.subr.bf16.mxu0 0
        %2911 = vmatpush1.bf16.msra.mxu0 0
        %2912 = vmatprep.subr.bf16.mxu0 0
        %2913 = vmatpush1.bf16.msra.mxu0 0
        %2914 = vmatprep.subr.bf16.mxu0 0
        %2915 = vmatpush1.bf16.msra.mxu0 0
        %2916 = vmatprep.subr.bf16.mxu0 0
        %2917 = vmatpush1.bf16.msra.mxu0 0
        %2918 = vmatprep.subr.bf16.mxu0 0
        %2919 = vmatpush1.bf16.msra.mxu0 0
        %2920 = vmatprep.subr.bf16.mxu0 0
        %2921 = vmatpush1.bf16.msra.mxu0 0
        %2922 = vmatprep.subr.bf16.mxu0 0
        %2923 = vmatpush1.bf16.msra.mxu0 0
        %2924 = vmatprep.subr.bf16.mxu0 0
        %2925 = vmatpush1.bf16.msra.mxu0 0
        %2926 = vmatprep.subr.bf16.mxu0 0
        %2927 = vmatpush1.bf16.msra.mxu0 0
        %2928 = vmatprep.mubr.bf16.mxu0 0
        %2929 = vmatmul.mubr.bf16.gmra.mrb[0].mxu0 %v2894
        %v2930 = vpop.f32.mrb[0].mxu0
        %v2931 = vadd.f32 0.0, %v2930
        %v2932 = vpop.f32.mrb[0].mxu0
        %v2933 = vpop.f32.mrb[0].mxu0
        %v2934 = vadd.f32 0.0, %v2933
        %v2935 = vpop.f32.mrb[0].mxu0
        %2936 = vdwg.mxu0
        %v2937 = vpack.c.bf16 %v2934, %v2931
        %s2938 = scalar_lea.vmem %s5, 24
        %v2939 = vld [vmem:[%s2938] sm:$0xf]
        %v2940 = vld [vmem:[%s2938 + $0x4] sm:$0xf]
        %v2943 = vunpack.c.l.b16 %v2939
        %v2944 = vunpack.c.l.b16 %v2940
        %v2945 = vpack.c.b16 %v2944, %v2943
        %v2948 = vsel %vm2682, %v2937, 0
        %2950 = vmatprep.subr.bf16.mxu0 0
        %2951 = vmatpush1.bf16.msra.mxu0 %v2945
        %2952 = vmatprep.subr.bf16.mxu0 0
        %2953 = vmatpush1.bf16.msra.mxu0 0
        %2954 = vmatprep.subr.bf16.mxu0 0
        %2955 = vmatpush1.bf16.msra.mxu0 0
        %2956 = vmatprep.subr.bf16.mxu0 0
        %2957 = vmatpush1.bf16.msra.mxu0 0
        %2958 = vmatprep.subr.bf16.mxu0 0
        %2959 = vmatpush1.bf16.msra.mxu0 0
        %2960 = vmatprep.subr.bf16.mxu0 0
        %2961 = vmatpush1.bf16.msra.mxu0 0
        %2962 = vmatprep.subr.bf16.mxu0 0
        %2963 = vmatpush1.bf16.msra.mxu0 0
        %2964 = vmatprep.subr.bf16.mxu0 0
        %2965 = vmatpush1.bf16.msra.mxu0 0
        %2966 = vmatprep.subr.bf16.mxu0 0
        %2967 = vmatpush1.bf16.msra.mxu0 0
        %2968 = vmatprep.subr.bf16.mxu0 0
        %2969 = vmatpush1.bf16.msra.mxu0 0
        %2970 = vmatprep.subr.bf16.mxu0 0
        %2971 = vmatpush1.bf16.msra.mxu0 0
        %2972 = vmatprep.subr.bf16.mxu0 0
        %2973 = vmatpush1.bf16.msra.mxu0 0
        %2974 = vmatprep.subr.bf16.mxu0 0
        %2975 = vmatpush1.bf16.msra.mxu0 0
        %2976 = vmatprep.subr.bf16.mxu0 0
        %2977 = vmatpush1.bf16.msra.mxu0 0
        %2978 = vmatprep.subr.bf16.mxu0 0
        %2979 = vmatpush1.bf16.msra.mxu0 0
        %2980 = vmatprep.subr.bf16.mxu0 0
        %2981 = vmatpush1.bf16.msra.mxu0 0
        %2982 = vmatprep.mubr.bf16.mxu0 0
        %2983 = vmatmul.mubr.bf16.gmra.mrb[0].mxu0 %v2948
        %v2984 = vpop.f32.mrb[0].mxu0
        %v2985 = vadd.f32 0.0, %v2984
        %v2986 = vpop.f32.mrb[0].mxu0
        %v2987 = vpop.f32.mrb[0].mxu0
        %v2988 = vadd.f32 0.0, %v2987
        %v2989 = vpop.f32.mrb[0].mxu0
        %2990 = vdwg.mxu0
        %v2991 = vadd.f32 %v2883, %v2985
        %v2992 = vadd.f32 %v2884, %v2988
        %s2993 = scalar_lea.vmem %s4, 32
        %v2994 = vld [vmem:[%s2993] sm:$0xf]
        %v2995 = vld [vmem:[%s2993 + $0x4] sm:$0xf]
        %v2998 = vunpack.c.l.b16 %v2994
        %v2999 = vunpack.c.l.b16 %v2995
        %v3000 = vpack.c.b16 %v2999, %v2998
        %v3002 = vsel %vm2572, %v3000, 0
        %3004 = vmatprep.subr.bf16.mxu0 0
        %3005 = vmatpush1.bf16.msra.mxu0 %v2561
        %3006 = vmatprep.subr.bf16.mxu0 0
        %3007 = vmatpush1.bf16.msra.mxu0 %v2562
        %3008 = vmatprep.subr.bf16.mxu0 0
        %3009 = vmatpush1.bf16.msra.mxu0 %v2563
        %3010 = vmatprep.subr.bf16.mxu0 0
        %3011 = vmatpush1.bf16.msra.mxu0 %v2564
        %3012 = vmatprep.subr.bf16.mxu0 0
        %3013 = vmatpush1.bf16.msra.mxu0 0
        %3014 = vmatprep.subr.bf16.mxu0 0
        %3015 = vmatpush1.bf16.msra.mxu0 0
        %3016 = vmatprep.subr.bf16.mxu0 0
        %3017 = vmatpush1.bf16.msra.mxu0 0
        %3018 = vmatprep.subr.bf16.mxu0 0
        %3019 = vmatpush1.bf16.msra.mxu0 0
        %3020 = vmatprep.subr.bf16.mxu0 0
        %3021 = vmatpush1.bf16.msra.mxu0 0
        %3022 = vmatprep.subr.bf16.mxu0 0
        %3023 = vmatpush1.bf16.msra.mxu0 0
        %3024 = vmatprep.subr.bf16.mxu0 0
        %3025 = vmatpush1.bf16.msra.mxu0 0
        %3026 = vmatprep.subr.bf16.mxu0 0
        %3027 = vmatpush1.bf16.msra.mxu0 0
        %3028 = vmatprep.subr.bf16.mxu0 0
        %3029 = vmatpush1.bf16.msra.mxu0 0
        %3030 = vmatprep.subr.bf16.mxu0 0
        %3031 = vmatpush1.bf16.msra.mxu0 0
        %3032 = vmatprep.subr.bf16.mxu0 0
        %3033 = vmatpush1.bf16.msra.mxu0 0
        %3034 = vmatprep.subr.bf16.mxu0 0
        %3035 = vmatpush1.bf16.msra.mxu0 0
        %3036 = vmatprep.mubr.bf16.mxu0 0
        %3037 = vmatmul.mubr.bf16.gmra.mrb[0].mxu0 %v3002
        %v3038 = vpop.f32.mrb[0].mxu0
        %v3039 = vadd.f32 0.0, %v3038
        %v3040 = vpop.f32.mrb[0].mxu0
        %v3041 = vpop.f32.mrb[0].mxu0
        %v3042 = vadd.f32 0.0, %v3041
        %v3043 = vpop.f32.mrb[0].mxu0
        %3044 = vdwg.mxu0
        %v3045 = vpack.c.bf16 %v3042, %v3039
        %s3046 = scalar_lea.vmem %s5, 32
        %v3047 = vld [vmem:[%s3046] sm:$0xf]
        %v3048 = vld [vmem:[%s3046 + $0x4] sm:$0xf]
        %v3051 = vunpack.c.l.b16 %v3047
        %v3052 = vunpack.c.l.b16 %v3048
        %v3053 = vpack.c.b16 %v3052, %v3051
        %v3056 = vsel %vm2682, %v3045, 0
        %3058 = vmatprep.subr.bf16.mxu0 0
        %3059 = vmatpush1.bf16.msra.mxu0 %v3053
        %3060 = vmatprep.subr.bf16.mxu0 0
        %3061 = vmatpush1.bf16.msra.mxu0 0
        %3062 = vmatprep.subr.bf16.mxu0 0
        %3063 = vmatpush1.bf16.msra.mxu0 0
        %3064 = vmatprep.subr.bf16.mxu0 0
        %3065 = vmatpush1.bf16.msra.mxu0 0
        %3066 = vmatprep.subr.bf16.mxu0 0
        %3067 = vmatpush1.bf16.msra.mxu0 0
        %3068 = vmatprep.subr.bf16.mxu0 0
        %3069 = vmatpush1.bf16.msra.mxu0 0
        %3070 = vmatprep.subr.bf16.mxu0 0
        %3071 = vmatpush1.bf16.msra.mxu0 0
        %3072 = vmatprep.subr.bf16.mxu0 0
        %3073 = vmatpush1.bf16.msra.mxu0 0
        %3074 = vmatprep.subr.bf16.mxu0 0
        %3075 = vmatpush1.bf16.msra.mxu0 0
        %3076 = vmatprep.subr.bf16.mxu0 0
        %3077 = vmatpush1.bf16.msra.mxu0 0
        %3078 = vmatprep.subr.bf16.mxu0 0
        %3079 = vmatpush1.bf16.msra.mxu0 0
        %3080 = vmatprep.subr.bf16.mxu0 0
        %3081 = vmatpush1.bf16.msra.mxu0 0
        %3082 = vmatprep.subr.bf16.mxu0 0
        %3083 = vmatpush1.bf16.msra.mxu0 0
        %3084 = vmatprep.subr.bf16.mxu0 0
        %3085 = vmatpush1.bf16.msra.mxu0 0
        %3086 = vmatprep.subr.bf16.mxu0 0
        %3087 = vmatpush1.bf16.msra.mxu0 0
        %3088 = vmatprep.subr.bf16.mxu0 0
        %3089 = vmatpush1.bf16.msra.mxu0 0
        %3090 = vmatprep.mubr.bf16.mxu0 0
        %3091 = vmatmul.mubr.bf16.gmra.mrb[0].mxu0 %v3056
        %v3092 = vpop.f32.mrb[0].mxu0
        %v3093 = vadd.f32 0.0, %v3092
        %v3094 = vpop.f32.mrb[0].mxu0
        %v3095 = vpop.f32.mrb[0].mxu0
        %v3096 = vadd.f32 0.0, %v3095
        %v3097 = vpop.f32.mrb[0].mxu0
        %3098 = vdwg.mxu0
        %v3099 = vadd.f32 %v2991, %v3093
        %v3100 = vadd.f32 %v2992, %v3096
        %s3101 = scalar_lea.vmem %s4, 40
        %v3102 = vld [vmem:[%s3101] sm:$0xf]
        %v3103 = vld [vmem:[%s3101 + $0x4] sm:$0xf]
        %v3106 = vunpack.c.l.b16 %v3102
        %v3107 = vunpack.c.l.b16 %v3103
        %v3108 = vpack.c.b16 %v3107, %v3106
        %v3110 = vsel %vm2572, %v3108, 0
        %3112 = vmatprep.subr.bf16.mxu0 0
        %3113 = vmatpush1.bf16.msra.mxu0 %v2561
        %3114 = vmatprep.subr.bf16.mxu0 0
        %3115 = vmatpush1.bf16.msra.mxu0 %v2562
        %3116 = vmatprep.subr.bf16.mxu0 0
        %3117 = vmatpush1.bf16.msra.mxu0 %v2563
        %3118 = vmatprep.subr.bf16.mxu0 0
        %3119 = vmatpush1.bf16.msra.mxu0 %v2564
        %3120 = vmatprep.subr.bf16.mxu0 0
        %3121 = vmatpush1.bf16.msra.mxu0 0
        %3122 = vmatprep.subr.bf16.mxu0 0
        %3123 = vmatpush1.bf16.msra.mxu0 0
        %3124 = vmatprep.subr.bf16.mxu0 0
        %3125 = vmatpush1.bf16.msra.mxu0 0
        %3126 = vmatprep.subr.bf16.mxu0 0
        %3127 = vmatpush1.bf16.msra.mxu0 0
        %3128 = vmatprep.subr.bf16.mxu0 0
        %3129 = vmatpush1.bf16.msra.mxu0 0
        %3130 = vmatprep.subr.bf16.mxu0 0
        %3131 = vmatpush1.bf16.msra.mxu0 0
        %3132 = vmatprep.subr.bf16.mxu0 0
        %3133 = vmatpush1.bf16.msra.mxu0 0
        %3134 = vmatprep.subr.bf16.mxu0 0
        %3135 = vmatpush1.bf16.msra.mxu0 0
        %3136 = vmatprep.subr.bf16.mxu0 0
        %3137 = vmatpush1.bf16.msra.mxu0 0
        %3138 = vmatprep.subr.bf16.mxu0 0
        %3139 = vmatpush1.bf16.msra.mxu0 0
        %3140 = vmatprep.subr.bf16.mxu0 0
        %3141 = vmatpush1.bf16.msra.mxu0 0
        %3142 = vmatprep.subr.bf16.mxu0 0
        %3143 = vmatpush1.bf16.msra.mxu0 0
        %3144 = vmatprep.mubr.bf16.mxu0 0
        %3145 = vmatmul.mubr.bf16.gmra.mrb[0].mxu0 %v3110
        %v3146 = vpop.f32.mrb[0].mxu0
        %v3147 = vadd.f32 0.0, %v3146
        %v3148 = vpop.f32.mrb[0].mxu0
        %v3149 = vpop.f32.mrb[0].mxu0
        %v3150 = vadd.f32 0.0, %v3149
        %v3151 = vpop.f32.mrb[0].mxu0
        %3152 = vdwg.mxu0
        %v3153 = vpack.c.bf16 %v3150, %v3147
        %s3154 = scalar_lea.vmem %s5, 40
        %v3155 = vld [vmem:[%s3154] sm:$0xf]
        %v3156 = vld [vmem:[%s3154 + $0x4] sm:$0xf]
        %v3159 = vunpack.c.l.b16 %v3155
        %v3160 = vunpack.c.l.b16 %v3156
        %v3161 = vpack.c.b16 %v3160, %v3159
        %v3164 = vsel %vm2682, %v3153, 0
        %3166 = vmatprep.subr.bf16.mxu0 0
        %3167 = vmatpush1.bf16.msra.mxu0 %v3161
        %3168 = vmatprep.subr.bf16.mxu0 0
        %3169 = vmatpush1.bf16.msra.mxu0 0
        %3170 = vmatprep.subr.bf16.mxu0 0
        %3171 = vmatpush1.bf16.msra.mxu0 0
        %3172 = vmatprep.subr.bf16.mxu0 0
        %3173 = vmatpush1.bf16.msra.mxu0 0
        %3174 = vmatprep.subr.bf16.mxu0 0
        %3175 = vmatpush1.bf16.msra.mxu0 0
        %3176 = vmatprep.subr.bf16.mxu0 0
        %3177 = vmatpush1.bf16.msra.mxu0 0
        %3178 = vmatprep.subr.bf16.mxu0 0
        %3179 = vmatpush1.bf16.msra.mxu0 0
        %3180 = vmatprep.subr.bf16.mxu0 0
        %3181 = vmatpush1.bf16.msra.mxu0 0
        %3182 = vmatprep.subr.bf16.mxu0 0
        %3183 = vmatpush1.bf16.msra.mxu0 0
        %3184 = vmatprep.subr.bf16.mxu0 0
        %3185 = vmatpush1.bf16.msra.mxu0 0
        %3186 = vmatprep.subr.bf16.mxu0 0
        %3187 = vmatpush1.bf16.msra.mxu0 0
        %3188 = vmatprep.subr.bf16.mxu0 0
        %3189 = vmatpush1.bf16.msra.mxu0 0
        %3190 = vmatprep.subr.bf16.mxu0 0
        %3191 = vmatpush1.bf16.msra.mxu0 0
        %3192 = vmatprep.subr.bf16.mxu0 0
        %3193 = vmatpush1.bf16.msra.mxu0 0
        %3194 = vmatprep.subr.bf16.mxu0 0
        %3195 = vmatpush1.bf16.msra.mxu0 0
        %3196 = vmatprep.subr.bf16.mxu0 0
        %3197 = vmatpush1.bf16.msra.mxu0 0
        %3198 = vmatprep.mubr.bf16.mxu0 0
        %3199 = vmatmul.mubr.bf16.gmra.mrb[0].mxu0 %v3164
        %v3200 = vpop.f32.mrb[0].mxu0
        %v3201 = vadd.f32 0.0, %v3200
        %v3202 = vpop.f32.mrb[0].mxu0
        %v3203 = vpop.f32.mrb[0].mxu0
        %v3204 = vadd.f32 0.0, %v3203
        %v3205 = vpop.f32.mrb[0].mxu0
        %3206 = vdwg.mxu0
        %v3207 = vadd.f32 %v3099, %v3201
        %v3208 = vadd.f32 %v3100, %v3204
        %s3209 = scalar_lea.vmem %s4, 48
        %v3210 = vld [vmem:[%s3209] sm:$0xf]
        %v3211 = vld [vmem:[%s3209 + $0x4] sm:$0xf]
        %v3214 = vunpack.c.l.b16 %v3210
        %v3215 = vunpack.c.l.b16 %v3211
        %v3216 = vpack.c.b16 %v3215, %v3214
        %v3218 = vsel %vm2572, %v3216, 0
        %3220 = vmatprep.subr.bf16.mxu0 0
        %3221 = vmatpush1.bf16.msra.mxu0 %v2561
        %3222 = vmatprep.subr.bf16.mxu0 0
        %3223 = vmatpush1.bf16.msra.mxu0 %v2562
        %3224 = vmatprep.subr.bf16.mxu0 0
        %3225 = vmatpush1.bf16.msra.mxu0 %v2563
        %3226 = vmatprep.subr.bf16.mxu0 0
        %3227 = vmatpush1.bf16.msra.mxu0 %v2564
        %3228 = vmatprep.subr.bf16.mxu0 0
        %3229 = vmatpush1.bf16.msra.mxu0 0
        %3230 = vmatprep.subr.bf16.mxu0 0
        %3231 = vmatpush1.bf16.msra.mxu0 0
        %3232 = vmatprep.subr.bf16.mxu0 0
        %3233 = vmatpush1.bf16.msra.mxu0 0
        %3234 = vmatprep.subr.bf16.mxu0 0
        %3235 = vmatpush1.bf16.msra.mxu0 0
        %3236 = vmatprep.subr.bf16.mxu0 0
        %3237 = vmatpush1.bf16.msra.mxu0 0
        %3238 = vmatprep.subr.bf16.mxu0 0
        %3239 = vmatpush1.bf16.msra.mxu0 0
        %3240 = vmatprep.subr.bf16.mxu0 0
        %3241 = vmatpush1.bf16.msra.mxu0 0
        %3242 = vmatprep.subr.bf16.mxu0 0
        %3243 = vmatpush1.bf16.msra.mxu0 0
        %3244 = vmatprep.subr.bf16.mxu0 0
        %3245 = vmatpush1.bf16.msra.mxu0 0
        %3246 = vmatprep.subr.bf16.mxu0 0
        %3247 = vmatpush1.bf16.msra.mxu0 0
        %3248 = vmatprep.subr.bf16.mxu0 0
        %3249 = vmatpush1.bf16.msra.mxu0 0
        %3250 = vmatprep.subr.bf16.mxu0 0
        %3251 = vmatpush1.bf16.msra.mxu0 0
        %3252 = vmatprep.mubr.bf16.mxu0 0
        %3253 = vmatmul.mubr.bf16.gmra.mrb[0].mxu0 %v3218
        %v3254 = vpop.f32.mrb[0].mxu0
        %v3255 = vadd.f32 0.0, %v3254
        %v3256 = vpop.f32.mrb[0].mxu0
        %v3257 = vpop.f32.mrb[0].mxu0
        %v3258 = vadd.f32 0.0, %v3257
        %v3259 = vpop.f32.mrb[0].mxu0
        %3260 = vdwg.mxu0
        %v3261 = vpack.c.bf16 %v3258, %v3255
        %s3262 = scalar_lea.vmem %s5, 48
        %v3263 = vld [vmem:[%s3262] sm:$0xf]
        %v3264 = vld [vmem:[%s3262 + $0x4] sm:$0xf]
        %v3267 = vunpack.c.l.b16 %v3263
        %v3268 = vunpack.c.l.b16 %v3264
        %v3269 = vpack.c.b16 %v3268, %v3267
        %v3272 = vsel %vm2682, %v3261, 0
        %3274 = vmatprep.subr.bf16.mxu0 0
        %3275 = vmatpush1.bf16.msra.mxu0 %v3269
        %3276 = vmatprep.subr.bf16.mxu0 0
        %3277 = vmatpush1.bf16.msra.mxu0 0
        %3278 = vmatprep.subr.bf16.mxu0 0
        %3279 = vmatpush1.bf16.msra.mxu0 0
        %3280 = vmatprep.subr.bf16.mxu0 0
        %3281 = vmatpush1.bf16.msra.mxu0 0
        %3282 = vmatprep.subr.bf16.mxu0 0
        %3283 = vmatpush1.bf16.msra.mxu0 0
        %3284 = vmatprep.subr.bf16.mxu0 0
        %3285 = vmatpush1.bf16.msra.mxu0 0
        %3286 = vmatprep.subr.bf16.mxu0 0
        %3287 = vmatpush1.bf16.msra.mxu0 0
        %3288 = vmatprep.subr.bf16.mxu0 0
        %3289 = vmatpush1.bf16.msra.mxu0 0
        %3290 = vmatprep.subr.bf16.mxu0 0
        %3291 = vmatpush1.bf16.msra.mxu0 0
        %3292 = vmatprep.subr.bf16.mxu0 0
        %3293 = vmatpush1.bf16.msra.mxu0 0
        %3294 = vmatprep.subr.bf16.mxu0 0
        %3295 = vmatpush1.bf16.msra.mxu0 0
        %3296 = vmatprep.subr.bf16.mxu0 0
        %3297 = vmatpush1.bf16.msra.mxu0 0
        %3298 = vmatprep.subr.bf16.mxu0 0
        %3299 = vmatpush1.bf16.msra.mxu0 0
        %3300 = vmatprep.subr.bf16.mxu0 0
        %3301 = vmatpush1.bf16.msra.mxu0 0
        %3302 = vmatprep.subr.bf16.mxu0 0
        %3303 = vmatpush1.bf16.msra.mxu0 0
        %3304 = vmatprep.subr.bf16.mxu0 0
        %3305 = vmatpush1.bf16.msra.mxu0 0
        %3306 = vmatprep.mubr.bf16.mxu0 0
        %3307 = vmatmul.mubr.bf16.gmra.mrb[0].mxu0 %v3272
        %v3308 = vpop.f32.mrb[0].mxu0
        %v3309 = vadd.f32 0.0, %v3308
        %v3310 = vpop.f32.mrb[0].mxu0
        %v3311 = vpop.f32.mrb[0].mxu0
        %v3312 = vadd.f32 0.0, %v3311
        %v3313 = vpop.f32.mrb[0].mxu0
        %3314 = vdwg.mxu0
        %v3315 = vadd.f32 %v3207, %v3309
        %v3316 = vadd.f32 %v3208, %v3312
        %s3317 = scalar_lea.vmem %s4, 56
        %v3318 = vld [vmem:[%s3317] sm:$0xf]
        %v3319 = vld [vmem:[%s3317 + $0x4] sm:$0xf]
        %v3322 = vunpack.c.l.b16 %v3318
        %v3323 = vunpack.c.l.b16 %v3319
        %v3324 = vpack.c.b16 %v3323, %v3322
        %v3326 = vsel %vm2572, %v3324, 0
        %3328 = vmatprep.subr.bf16.mxu0 0
        %3329 = vmatpush1.bf16.msra.mxu0 %v2561
        %3330 = vmatprep.subr.bf16.mxu0 0
        %3331 = vmatpush1.bf16.msra.mxu0 %v2562
        %3332 = vmatprep.subr.bf16.mxu0 0
        %3333 = vmatpush1.bf16.msra.mxu0 %v2563
        %3334 = vmatprep.subr.bf16.mxu0 0
        %3335 = vmatpush1.bf16.msra.mxu0 %v2564
        %3336 = vmatprep.subr.bf16.mxu0 0
        %3337 = vmatpush1.bf16.msra.mxu0 0
        %3338 = vmatprep.subr.bf16.mxu0 0
        %3339 = vmatpush1.bf16.msra.mxu0 0
        %3340 = vmatprep.subr.bf16.mxu0 0
        %3341 = vmatpush1.bf16.msra.mxu0 0
        %3342 = vmatprep.subr.bf16.mxu0 0
        %3343 = vmatpush1.bf16.msra.mxu0 0
        %3344 = vmatprep.subr.bf16.mxu0 0
        %3345 = vmatpush1.bf16.msra.mxu0 0
        %3346 = vmatprep.subr.bf16.mxu0 0
        %3347 = vmatpush1.bf16.msra.mxu0 0
        %3348 = vmatprep.subr.bf16.mxu0 0
        %3349 = vmatpush1.bf16.msra.mxu0 0
        %3350 = vmatprep.subr.bf16.mxu0 0
        %3351 = vmatpush1.bf16.msra.mxu0 0
        %3352 = vmatprep.subr.bf16.mxu0 0
        %3353 = vmatpush1.bf16.msra.mxu0 0
        %3354 = vmatprep.subr.bf16.mxu0 0
        %3355 = vmatpush1.bf16.msra.mxu0 0
        %3356 = vmatprep.subr.bf16.mxu0 0
        %3357 = vmatpush1.bf16.msra.mxu0 0
        %3358 = vmatprep.subr.bf16.mxu0 0
        %3359 = vmatpush1.bf16.msra.mxu0 0
        %3360 = vmatprep.mubr.bf16.mxu0 0
        %3361 = vmatmul.mubr.bf16.gmra.mrb[0].mxu0 %v3326
        %v3362 = vpop.f32.mrb[0].mxu0
        %v3363 = vadd.f32 0.0, %v3362
        %v3364 = vpop.f32.mrb[0].mxu0
        %v3365 = vpop.f32.mrb[0].mxu0
        %v3366 = vadd.f32 0.0, %v3365
        %v3367 = vpop.f32.mrb[0].mxu0
        %3368 = vdwg.mxu0
        %v3369 = vpack.c.bf16 %v3366, %v3363
        %s3370 = scalar_lea.vmem %s5, 56
        %v3371 = vld [vmem:[%s3370] sm:$0xf]
        %v3372 = vld [vmem:[%s3370 + $0x4] sm:$0xf]
        %v3375 = vunpack.c.l.b16 %v3371
        %v3376 = vunpack.c.l.b16 %v3372
        %v3377 = vpack.c.b16 %v3376, %v3375
        %v3380 = vsel %vm2682, %v3369, 0
        %3382 = vmatprep.subr.bf16.mxu0 0
        %3383 = vmatpush1.bf16.msra.mxu0 %v3377
        %3384 = vmatprep.subr.bf16.mxu0 0
        %3385 = vmatpush1.bf16.msra.mxu0 0
        %3386 = vmatprep.subr.bf16.mxu0 0
        %3387 = vmatpush1.bf16.msra.mxu0 0
        %3388 = vmatprep.subr.bf16.mxu0 0
        %3389 = vmatpush1.bf16.msra.mxu0 0
        %3390 = vmatprep.subr.bf16.mxu0 0
        %3391 = vmatpush1.bf16.msra.mxu0 0
        %3392 = vmatprep.subr.bf16.mxu0 0
        %3393 = vmatpush1.bf16.msra.mxu0 0
        %3394 = vmatprep.subr.bf16.mxu0 0
        %3395 = vmatpush1.bf16.msra.mxu0 0
        %3396 = vmatprep.subr.bf16.mxu0 0
        %3397 = vmatpush1.bf16.msra.mxu0 0
        %3398 = vmatprep.subr.bf16.mxu0 0
        %3399 = vmatpush1.bf16.msra.mxu0 0
        %3400 = vmatprep.subr.bf16.mxu0 0
        %3401 = vmatpush1.bf16.msra.mxu0 0
        %3402 = vmatprep.subr.bf16.mxu0 0
        %3403 = vmatpush1.bf16.msra.mxu0 0
        %3404 = vmatprep.subr.bf16.mxu0 0
        %3405 = vmatpush1.bf16.msra.mxu0 0
        %3406 = vmatprep.subr.bf16.mxu0 0
        %3407 = vmatpush1.bf16.msra.mxu0 0
        %3408 = vmatprep.subr.bf16.mxu0 0
        %3409 = vmatpush1.bf16.msra.mxu0 0
        %3410 = vmatprep.subr.bf16.mxu0 0
        %3411 = vmatpush1.bf16.msra.mxu0 0
        %3412 = vmatprep.subr.bf16.mxu0 0
        %3413 = vmatpush1.bf16.msra.mxu0 0
        %3414 = vmatprep.mubr.bf16.mxu0 0
        %3415 = vmatmul.mubr.bf16.gmra.mrb[0].mxu0 %v3380
        %v3416 = vpop.f32.mrb[0].mxu0
        %v3417 = vadd.f32 0.0, %v3416
        %v3418 = vpop.f32.mrb[0].mxu0
        %v3419 = vpop.f32.mrb[0].mxu0
        %v3420 = vadd.f32 0.0, %v3419
        %v3421 = vpop.f32.mrb[0].mxu0
        %3422 = vdwg.mxu0
        %v3423 = vadd.f32 %v3315, %v3417
        %v3424 = vadd.f32 %v3316, %v3420
        %s3425 = scalar_lea.vmem %s4, 64
        %v3426 = vld [vmem:[%s3425] sm:$0xf]
        %v3427 = vld [vmem:[%s3425 + $0x4] sm:$0xf]
        %v3430 = vunpack.c.l.b16 %v3426
        %v3431 = vunpack.c.l.b16 %v3427
        %v3432 = vpack.c.b16 %v3431, %v3430
        %v3434 = vsel %vm2572, %v3432, 0
        %3436 = vmatprep.subr.bf16.mxu0 0
        %3437 = vmatpush1.bf16.msra.mxu0 %v2561
        %3438 = vmatprep.subr.bf16.mxu0 0
        %3439 = vmatpush1.bf16.msra.mxu0 %v2562
        %3440 = vmatprep.subr.bf16.mxu0 0
        %3441 = vmatpush1.bf16.msra.mxu0 %v2563
        %3442 = vmatprep.subr.bf16.mxu0 0
        %3443 = vmatpush1.bf16.msra.mxu0 %v2564
        %3444 = vmatprep.subr.bf16.mxu0 0
        %3445 = vmatpush1.bf16.msra.mxu0 0
        %3446 = vmatprep.subr.bf16.mxu0 0
        %3447 = vmatpush1.bf16.msra.mxu0 0
        %3448 = vmatprep.subr.bf16.mxu0 0
        %3449 = vmatpush1.bf16.msra.mxu0 0
        %3450 = vmatprep.subr.bf16.mxu0 0
        %3451 = vmatpush1.bf16.msra.mxu0 0
        %3452 = vmatprep.subr.bf16.mxu0 0
        %3453 = vmatpush1.bf16.msra.mxu0 0
        %3454 = vmatprep.subr.bf16.mxu0 0
        %3455 = vmatpush1.bf16.msra.mxu0 0
        %3456 = vmatprep.subr.bf16.mxu0 0
        %3457 = vmatpush1.bf16.msra.mxu0 0
        %3458 = vmatprep.subr.bf16.mxu0 0
        %3459 = vmatpush1.bf16.msra.mxu0 0
        %3460 = vmatprep.subr.bf16.mxu0 0
        %3461 = vmatpush1.bf16.msra.mxu0 0
        %3462 = vmatprep.subr.bf16.mxu0 0
        %3463 = vmatpush1.bf16.msra.mxu0 0
        %3464 = vmatprep.subr.bf16.mxu0 0
        %3465 = vmatpush1.bf16.msra.mxu0 0
        %3466 = vmatprep.subr.bf16.mxu0 0
        %3467 = vmatpush1.bf16.msra.mxu0 0
        %3468 = vmatprep.mubr.bf16.mxu0 0
        %3469 = vmatmul.mubr.bf16.gmra.mrb[0].mxu0 %v3434
        %v3470 = vpop.f32.mrb[0].mxu0
        %v3471 = vadd.f32 0.0, %v3470
        %v3472 = vpop.f32.mrb[0].mxu0
        %v3473 = vpop.f32.mrb[0].mxu0
        %v3474 = vadd.f32 0.0, %v3473
        %v3475 = vpop.f32.mrb[0].mxu0
        %3476 = vdwg.mxu0
        %v3477 = vpack.c.bf16 %v3474, %v3471
        %s3478 = scalar_lea.vmem %s5, 64
        %v3479 = vld [vmem:[%s3478] sm:$0xf]
        %v3480 = vld [vmem:[%s3478 + $0x4] sm:$0xf]
        %v3483 = vunpack.c.l.b16 %v3479
        %v3484 = vunpack.c.l.b16 %v3480
        %v3485 = vpack.c.b16 %v3484, %v3483
        %v3488 = vsel %vm2682, %v3477, 0
        %3490 = vmatprep.subr.bf16.mxu0 0
        %3491 = vmatpush1.bf16.msra.mxu0 %v3485
        %3492 = vmatprep.subr.bf16.mxu0 0
        %3493 = vmatpush1.bf16.msra.mxu0 0
        %3494 = vmatprep.subr.bf16.mxu0 0
        %3495 = vmatpush1.bf16.msra.mxu0 0
        %3496 = vmatprep.subr.bf16.mxu0 0
        %3497 = vmatpush1.bf16.msra.mxu0 0
        %3498 = vmatprep.subr.bf16.mxu0 0
        %3499 = vmatpush1.bf16.msra.mxu0 0
        %3500 = vmatprep.subr.bf16.mxu0 0
        %3501 = vmatpush1.bf16.msra.mxu0 0
        %3502 = vmatprep.subr.bf16.mxu0 0
        %3503 = vmatpush1.bf16.msra.mxu0 0
        %3504 = vmatprep.subr.bf16.mxu0 0
        %3505 = vmatpush1.bf16.msra.mxu0 0
        %3506 = vmatprep.subr.bf16.mxu0 0
        %3507 = vmatpush1.bf16.msra.mxu0 0
        %3508 = vmatprep.subr.bf16.mxu0 0
        %3509 = vmatpush1.bf16.msra.mxu0 0
        %3510 = vmatprep.subr.bf16.mxu0 0
        %3511 = vmatpush1.bf16.msra.mxu0 0
        %3512 = vmatprep.subr.bf16.mxu0 0
        %3513 = vmatpush1.bf16.msra.mxu0 0
        %3514 = vmatprep.subr.bf16.mxu0 0
        %3515 = vmatpush1.bf16.msra.mxu0 0
        %3516 = vmatprep.subr.bf16.mxu0 0
        %3517 = vmatpush1.bf16.msra.mxu0 0
        %3518 = vmatprep.subr.bf16.mxu0 0
        %3519 = vmatpush1.bf16.msra.mxu0 0
        %3520 = vmatprep.subr.bf16.mxu0 0
        %3521 = vmatpush1.bf16.msra.mxu0 0
        %3522 = vmatprep.mubr.bf16.mxu0 0
        %3523 = vmatmul.mubr.bf16.gmra.mrb[0].mxu0 %v3488
        %v3524 = vpop.f32.mrb[0].mxu0
        %v3525 = vadd.f32 0.0, %v3524
        %v3526 = vpop.f32.mrb[0].mxu0
        %v3527 = vpop.f32.mrb[0].mxu0
        %v3528 = vadd.f32 0.0, %v3527
        %v3529 = vpop.f32.mrb[0].mxu0
        %3530 = vdwg.mxu0
        %v3531 = vadd.f32 %v3423, %v3525
        %v3532 = vadd.f32 %v3424, %v3528
        %v3533 = vld [vmem:[%s6] sm:$0x1]
        %v3535 = vlaneseq
        %v3536 = vshrl.u32 %v3535, 7
        %v3537 = vsub.s32 0, %v3536
        %v3538 = vrot.slane %v3533, %v3537
        %v3540 = vadd.f32 %v3531, %v3538
        %v3541 = vadd.f32 %v3532, %v3538
        %v3542 = vsub.f32 0.0, %v3540
        %v3543 = vsub.f32 0.0, %v3541
        %v3544 = vmul.f32 %v3542, 1.442695
        %v3545 = vpow.pop %v3544
        %v3546 = vmul.f32 %v3543, 1.442695
        %v3547 = vpow.pop %v3546
        %v3548 = vadd.f32 %v3545, 1.0
        %v3549 = vadd.f32 %v3547, 1.0
        %v3550 = vrcp.pop %v3548
        %v3551 = vmul.f32 %v3540, %v3550
        %v3552 = vrcp.pop %v3549
        %v3553 = vmul.f32 %v3541, %v3552
        %v3554 = vpack.c.bf16 %v3553, %v3551
        %v3555 = vld [vmem:[%s7] sm:$0xf]
        %v3556 = vld [vmem:[%s7 + $0x4] sm:$0xf]
        %v3559 = vunpack.c.l.b16 %v3555
        %v3560 = vunpack.c.l.b16 %v3556
        %v3561 = vpack.c.b16 %v3560, %v3559
        %v3563 = vsel %vm2682, %v3561, 0
        %3565 = vmatprep.subr.bf16.mxu0 0
        %3566 = vmatpush1.bf16.msra.mxu0 %v3554
        %3567 = vmatprep.subr.bf16.mxu0 0
        %3568 = vmatpush1.bf16.msra.mxu0 0
        %3569 = vmatprep.subr.bf16.mxu0 0
        %3570 = vmatpush1.bf16.msra.mxu0 0
        %3571 = vmatprep.subr.bf16.mxu0 0
        %3572 = vmatpush1.bf16.msra.mxu0 0
        %3573 = vmatprep.subr.bf16.mxu0 0
        %3574 = vmatpush1.bf16.msra.mxu0 0
        %3575 = vmatprep.subr.bf16.mxu0 0
        %3576 = vmatpush1.bf16.msra.mxu0 0
        %3577 = vmatprep.subr.bf16.mxu0 0
        %3578 = vmatpush1.bf16.msra.mxu0 0
        %3579 = vmatprep.subr.bf16.mxu0 0
        %3580 = vmatpush1.bf16.msra.mxu0 0
        %3581 = vmatprep.subr.bf16.mxu0 0
        %3582 = vmatpush1.bf16.msra.mxu0 0
        %3583 = vmatprep.subr.bf16.mxu0 0
        %3584 = vmatpush1.bf16.msra.mxu0 0
        %3585 = vmatprep.subr.bf16.mxu0 0
        %3586 = vmatpush1.bf16.msra.mxu0 0
        %3587 = vmatprep.subr.bf16.mxu0 0
        %3588 = vmatpush1.bf16.msra.mxu0 0
        %3589 = vmatprep.subr.bf16.mxu0 0
        %3590 = vmatpush1.bf16.msra.mxu0 0
        %3591 = vmatprep.subr.bf16.mxu0 0
        %3592 = vmatpush1.bf16.msra.mxu0 0
        %3593 = vmatprep.subr.bf16.mxu0 0
        %3594 = vmatpush1.bf16.msra.mxu0 0
        %3595 = vmatprep.subr.bf16.mxu0 0
        %3596 = vmatpush1.bf16.msra.mxu0 0
        %3597 = vmatprep.mubr.bf16.mxu0 0
        %3598 = vmatmul.mubr.bf16.gmra.mrb[0].mxu0 %v3563
        %v3599 = vpop.f32.mrb[0].mxu0
        %v3600 = vadd.f32 0.0, %v3599
        %v3601 = vpop.f32.mrb[0].mxu0
        %v3602 = vpop.f32.mrb[0].mxu0
        %v3603 = vadd.f32 0.0, %v3602
        %v3604 = vpop.f32.mrb[0].mxu0
        %3605 = vdwg.mxu0
        %v3606 = vpack.c.bf16 %v3603, %v3600
        %v3607 = vld [vmem:[%s8] sm:$0xf]
        %v3608 = vld [vmem:[%s8 + $0x4] sm:$0xf]
        %v3609 = vld [vmem:[%s8 + $0x8] sm:$0xf]
        %v3610 = vld [vmem:[%s8 + $0xc] sm:$0xf]
        %s3611 = scalar_lea.vmem %s7, 8
        %v3612 = vld [vmem:[%s3611] sm:$0xf]
        %v3613 = vld [vmem:[%s3611 + $0x4] sm:$0xf]
        %v3616 = vunpack.c.l.b16 %v3612
        %v3617 = vunpack.c.l.b16 %v3613
        %v3618 = vpack.c.b16 %v3617, %v3616
        %v3620 = vsel %vm2682, %v3618, 0
        %3622 = vmatprep.subr.bf16.mxu0 0
        %3623 = vmatpush1.bf16.msra.mxu0 %v3554
        %3624 = vmatprep.subr.bf16.mxu0 0
        %3625 = vmatpush1.bf16.msra.mxu0 0
        %3626 = vmatprep.subr.bf16.mxu0 0
        %3627 = vmatpush1.bf16.msra.mxu0 0
        %3628 = vmatprep.subr.bf16.mxu0 0
        %3629 = vmatpush1.bf16.msra.mxu0 0
        %3630 = vmatprep.subr.bf16.mxu0 0
        %3631 = vmatpush1.bf16.msra.mxu0 0
        %3632 = vmatprep.subr.bf16.mxu0 0
        %3633 = vmatpush1.bf16.msra.mxu0 0
        %3634 = vmatprep.subr.bf16.mxu0 0
        %3635 = vmatpush1.bf16.msra.mxu0 0
        %3636 = vmatprep.subr.bf16.mxu0 0
        %3637 = vmatpush1.bf16.msra.mxu0 0
        %3638 = vmatprep.subr.bf16.mxu0 0
        %3639 = vmatpush1.bf16.msra.mxu0 0
        %3640 = vmatprep.subr.bf16.mxu0 0
        %3641 = vmatpush1.bf16.msra.mxu0 0
        %3642 = vmatprep.subr.bf16.mxu0 0
        %3643 = vmatpush1.bf16.msra.mxu0 0
        %3644 = vmatprep.subr.bf16.mxu0 0
        %3645 = vmatpush1.bf16.msra.mxu0 0
        %3646 = vmatprep.subr.bf16.mxu0 0
        %3647 = vmatpush1.bf16.msra.mxu0 0
        %3648 = vmatprep.subr.bf16.mxu0 0
        %3649 = vmatpush1.bf16.msra.mxu0 0
        %3650 = vmatprep.subr.bf16.mxu0 0
        %3651 = vmatpush1.bf16.msra.mxu0 0
        %3652 = vmatprep.subr.bf16.mxu0 0
        %3653 = vmatpush1.bf16.msra.mxu0 0
        %3654 = vmatprep.mubr.bf16.mxu0 0
        %3655 = vmatmul.mubr.bf16.gmra.mrb[0].mxu0 %v3620
        %v3656 = vpop.f32.mrb[0].mxu0
        %v3657 = vadd.f32 0.0, %v3656
        %v3658 = vpop.f32.mrb[0].mxu0
        %v3659 = vpop.f32.mrb[0].mxu0
        %v3660 = vadd.f32 0.0, %v3659
        %v3661 = vpop.f32.mrb[0].mxu0
        %3662 = vdwg.mxu0
        %v3663 = vpack.c.bf16 %v3660, %v3657
        %s3664 = scalar_lea.vmem %s8, 16
        %v3665 = vld [vmem:[%s3664] sm:$0xf]
        %v3666 = vld [vmem:[%s3664 + $0x4] sm:$0xf]
        %v3667 = vld [vmem:[%s3664 + $0x8] sm:$0xf]
        %v3668 = vld [vmem:[%s3664 + $0xc] sm:$0xf]
        %v3673 = vunpack.c.l.b16 %v3665
        %v3674 = vunpack.c.l.b16 %v3666
        %v3675 = vunpack.c.l.b16 %v3667
        %v3676 = vunpack.c.l.b16 %v3668
        %v3677 = vpack.c.b16 %v3674, %v3673
        %v3678 = vpack.c.b16 %v3676, %v3675
        %vm3681 = vcmask 261120
        %v3683 = vsel %vm3681, %v3663, 0
        %3685 = vmatprep.subr.bf16.mxu0 0
        %3686 = vmatpush1.bf16.msra.mxu0 %v3677
        %3687 = vmatprep.subr.bf16.mxu0 0
        %3688 = vmatpush1.bf16.msra.mxu0 %v3678
        %3689 = vmatprep.subr.bf16.mxu0 0
        %3690 = vmatpush1.bf16.msra.mxu0 0
        %3691 = vmatprep.subr.bf16.mxu0 0
        %3692 = vmatpush1.bf16.msra.mxu0 0
        %3693 = vmatprep.subr.bf16.mxu0 0
        %3694 = vmatpush1.bf16.msra.mxu0 0
        %3695 = vmatprep.subr.bf16.mxu0 0
        %3696 = vmatpush1.bf16.msra.mxu0 0
        %3697 = vmatprep.subr.bf16.mxu0 0
        %3698 = vmatpush1.bf16.msra.mxu0 0
        %3699 = vmatprep.subr.bf16.mxu0 0
        %3700 = vmatpush1.bf16.msra.mxu0 0
        %3701 = vmatprep.subr.bf16.mxu0 0
        %3702 = vmatpush1.bf16.msra.mxu0 0
        %3703 = vmatprep.subr.bf16.mxu0 0
        %3704 = vmatpush1.bf16.msra.mxu0 0
        %3705 = vmatprep.subr.bf16.mxu0 0
        %3706 = vmatpush1.bf16.msra.mxu0 0
        %3707 = vmatprep.subr.bf16.mxu0 0
        %3708 = vmatpush1.bf16.msra.mxu0 0
        %3709 = vmatprep.subr.bf16.mxu0 0
        %3710 = vmatpush1.bf16.msra.mxu0 0
        %3711 = vmatprep.subr.bf16.mxu0 0
        %3712 = vmatpush1.bf16.msra.mxu0 0
        %3713 = vmatprep.subr.bf16.mxu0 0
        %3714 = vmatpush1.bf16.msra.mxu0 0
        %3715 = vmatprep.subr.bf16.mxu0 0
        %3716 = vmatpush1.bf16.msra.mxu0 0
        %3717 = vmatprep.mubr.bf16.mxu0 0
        %3718 = vmatmul.mubr.bf16.gmra.mrb[0].mxu0 %v3683
        %v3719 = vpop.f32.mrb[0].mxu0
        %v3720 = vadd.f32 0.0, %v3719
        %v3721 = vpop.f32.mrb[0].mxu0
        %v3722 = vpop.f32.mrb[0].mxu0
        %v3723 = vadd.f32 0.0, %v3722
        %v3724 = vpop.f32.mrb[0].mxu0
        %3725 = vdwg.mxu0
        %v3730 = vunpack.c.l.b16 %v3607
        %v3731 = vunpack.c.l.b16 %v3608
        %v3732 = vunpack.c.l.b16 %v3609
        %v3733 = vunpack.c.l.b16 %v3610
        %v3734 = vpack.c.b16 %v3731, %v3730
        %v3735 = vpack.c.b16 %v3733, %v3732
        %v3739 = vsel %vm3681, %v3606, 0
        %3741 = vmatprep.subr.bf16.mxu0 0
        %3742 = vmatpush1.bf16.msra.mxu0 %v3734
        %3743 = vmatprep.subr.bf16.mxu0 0
        %3744 = vmatpush1.bf16.msra.mxu0 %v3735
        %3745 = vmatprep.subr.bf16.mxu0 0
        %3746 = vmatpush1.bf16.msra.mxu0 0
        %3747 = vmatprep.subr.bf16.mxu0 0
        %3748 = vmatpush1.bf16.msra.mxu0 0
        %3749 = vmatprep.subr.bf16.mxu0 0
        %3750 = vmatpush1.bf16.msra.mxu0 0
        %3751 = vmatprep.subr.bf16.mxu0 0
        %3752 = vmatpush1.bf16.msra.mxu0 0
        %3753 = vmatprep.subr.bf16.mxu0 0
        %3754 = vmatpush1.bf16.msra.mxu0 0
        %3755 = vmatprep.subr.bf16.mxu0 0
        %3756 = vmatpush1.bf16.msra.mxu0 0
        %3757 = vmatprep.subr.bf16.mxu0 0
        %3758 = vmatpush1.bf16.msra.mxu0 0
        %3759 = vmatprep.subr.bf16.mxu0 0
        %3760 = vmatpush1.bf16.msra.mxu0 0
        %3761 = vmatprep.subr.bf16.mxu0 0
        %3762 = vmatpush1.bf16.msra.mxu0 0
        %3763 = vmatprep.subr.bf16.mxu0 0
        %3764 = vmatpush1.bf16.msra.mxu0 0
        %3765 = vmatprep.subr.bf16.mxu0 0
        %3766 = vmatpush1.bf16.msra.mxu0 0
        %3767 = vmatprep.subr.bf16.mxu0 0
        %3768 = vmatpush1.bf16.msra.mxu0 0
        %3769 = vmatprep.subr.bf16.mxu0 0
        %3770 = vmatpush1.bf16.msra.mxu0 0
        %3771 = vmatprep.subr.bf16.mxu0 0
        %3772 = vmatpush1.bf16.msra.mxu0 0
        %3773 = vmatprep.mubr.bf16.mxu0 0
        %3774 = vmatmul.mubr.bf16.gmra.mrb[0].mxu0 %v3739
        %v3775 = vpop.f32.mrb[0].mxu0
        %v3776 = vadd.f32 %v3720, %v3775
        %v3777 = vpop.f32.mrb[0].mxu0
        %v3778 = vpop.f32.mrb[0].mxu0
        %v3779 = vadd.f32 %v3723, %v3778
        %v3780 = vpop.f32.mrb[0].mxu0
        %3781 = vdwg.mxu0
        %s3782 = scalar_lea.vmem %s7, 16
        %v3783 = vld [vmem:[%s3782] sm:$0xf]
        %v3784 = vld [vmem:[%s3782 + $0x4] sm:$0xf]
        %v3787 = vunpack.c.l.b16 %v3783
        %v3788 = vunpack.c.l.b16 %v3784
        %v3789 = vpack.c.b16 %v3788, %v3787
        %v3791 = vsel %vm2682, %v3789, 0
        %3793 = vmatprep.subr.bf16.mxu0 0
        %3794 = vmatpush1.bf16.msra.mxu0 %v3554
        %3795 = vmatprep.subr.bf16.mxu0 0
        %3796 = vmatpush1.bf16.msra.mxu0 0
        %3797 = vmatprep.subr.bf16.mxu0 0
        %3798 = vmatpush1.bf16.msra.mxu0 0
        %3799 = vmatprep.subr.bf16.mxu0 0
        %3800 = vmatpush1.bf16.msra.mxu0 0
        %3801 = vmatprep.subr.bf16.mxu0 0
        %3802 = vmatpush1.bf16.msra.mxu0 0
        %3803 = vmatprep.subr.bf16.mxu0 0
        %3804 = vmatpush1.bf16.msra.mxu0 0
        %3805 = vmatprep.subr.bf16.mxu0 0
        %3806 = vmatpush1.bf16.msra.mxu0 0
        %3807 = vmatprep.subr.bf16.mxu0 0
        %3808 = vmatpush1.bf16.msra.mxu0 0
        %3809 = vmatprep.subr.bf16.mxu0 0
        %3810 = vmatpush1.bf16.msra.mxu0 0
        %3811 = vmatprep.subr.bf16.mxu0 0
        %3812 = vmatpush1.bf16.msra.mxu0 0
        %3813 = vmatprep.subr.bf16.mxu0 0
        %3814 = vmatpush1.bf16.msra.mxu0 0
        %3815 = vmatprep.subr.bf16.mxu0 0
        %3816 = vmatpush1.bf16.msra.mxu0 0
        %3817 = vmatprep.subr.bf16.mxu0 0
        %3818 = vmatpush1.bf16.msra.mxu0 0
        %3819 = vmatprep.subr.bf16.mxu0 0
        %3820 = vmatpush1.bf16.msra.mxu0 0
        %3821 = vmatprep.subr.bf16.mxu0 0
        %3822 = vmatpush1.bf16.msra.mxu0 0
        %3823 = vmatprep.subr.bf16.mxu0 0
        %3824 = vmatpush1.bf16.msra.mxu0 0
        %3825 = vmatprep.mubr.bf16.mxu0 0
        %3826 = vmatmul.mubr.bf16.gmra.mrb[0].mxu0 %v3791
        %v3827 = vpop.f32.mrb[0].mxu0
        %v3828 = vadd.f32 0.0, %v3827
        %v3829 = vpop.f32.mrb[0].mxu0
        %v3830 = vpop.f32.mrb[0].mxu0
        %v3831 = vadd.f32 0.0, %v3830
        %v3832 = vpop.f32.mrb[0].mxu0
        %3833 = vdwg.mxu0
        %v3834 = vpack.c.bf16 %v3831, %v3828
        %s3835 = scalar_lea.vmem %s8, 32
        %v3836 = vld [vmem:[%s3835] sm:$0xf]
        %v3837 = vld [vmem:[%s3835 + $0x4] sm:$0xf]
        %v3838 = vld [vmem:[%s3835 + $0x8] sm:$0xf]
        %v3839 = vld [vmem:[%s3835 + $0xc] sm:$0xf]
        %v3844 = vunpack.c.l.b16 %v3836
        %v3845 = vunpack.c.l.b16 %v3837
        %v3846 = vunpack.c.l.b16 %v3838
        %v3847 = vunpack.c.l.b16 %v3839
        %v3848 = vpack.c.b16 %v3845, %v3844
        %v3849 = vpack.c.b16 %v3847, %v3846
        %v3853 = vsel %vm3681, %v3834, 0
        %3855 = vmatprep.subr.bf16.mxu0 0
        %3856 = vmatpush1.bf16.msra.mxu0 %v3848
        %3857 = vmatprep.subr.bf16.mxu0 0
        %3858 = vmatpush1.bf16.msra.mxu0 %v3849
        %3859 = vmatprep.subr.bf16.mxu0 0
        %3860 = vmatpush1.bf16.msra.mxu0 0
        %3861 = vmatprep.subr.bf16.mxu0 0
        %3862 = vmatpush1.bf16.msra.mxu0 0
        %3863 = vmatprep.subr.bf16.mxu0 0
        %3864 = vmatpush1.bf16.msra.mxu0 0
        %3865 = vmatprep.subr.bf16.mxu0 0
        %3866 = vmatpush1.bf16.msra.mxu0 0
        %3867 = vmatprep.subr.bf16.mxu0 0
        %3868 = vmatpush1.bf16.msra.mxu0 0
        %3869 = vmatprep.subr.bf16.mxu0 0
        %3870 = vmatpush1.bf16.msra.mxu0 0
        %3871 = vmatprep.subr.bf16.mxu0 0
        %3872 = vmatpush1.bf16.msra.mxu0 0
        %3873 = vmatprep.subr.bf16.mxu0 0
        %3874 = vmatpush1.bf16.msra.mxu0 0
        %3875 = vmatprep.subr.bf16.mxu0 0
        %3876 = vmatpush1.bf16.msra.mxu0 0
        %3877 = vmatprep.subr.bf16.mxu0 0
        %3878 = vmatpush1.bf16.msra.mxu0 0
        %3879 = vmatprep.subr.bf16.mxu0 0
        %3880 = vmatpush1.bf16.msra.mxu0 0
        %3881 = vmatprep.subr.bf16.mxu0 0
        %3882 = vmatpush1.bf16.msra.mxu0 0
        %3883 = vmatprep.subr.bf16.mxu0 0
        %3884 = vmatpush1.bf16.msra.mxu0 0
        %3885 = vmatprep.subr.bf16.mxu0 0
        %3886 = vmatpush1.bf16.msra.mxu0 0
        %3887 = vmatprep.mubr.bf16.mxu0 0
        %3888 = vmatmul.mubr.bf16.gmra.mrb[0].mxu0 %v3853
        %v3889 = vpop.f32.mrb[0].mxu0
        %v3890 = vadd.f32 0.0, %v3889
        %v3891 = vpop.f32.mrb[0].mxu0
        %v3892 = vpop.f32.mrb[0].mxu0
        %v3893 = vadd.f32 0.0, %v3892
        %v3894 = vpop.f32.mrb[0].mxu0
        %3895 = vdwg.mxu0
        %v3896 = vadd.f32 %v3776, %v3890
        %v3897 = vadd.f32 %v3779, %v3893
        %s3898 = scalar_lea.vmem %s7, 24
        %v3899 = vld [vmem:[%s3898] sm:$0xf]
        %v3900 = vld [vmem:[%s3898 + $0x4] sm:$0xf]
        %v3903 = vunpack.c.l.b16 %v3899
        %v3904 = vunpack.c.l.b16 %v3900
        %v3905 = vpack.c.b16 %v3904, %v3903
        %v3907 = vsel %vm2682, %v3905, 0
        %3909 = vmatprep.subr.bf16.mxu0 0
        %3910 = vmatpush1.bf16.msra.mxu0 %v3554
        %3911 = vmatprep.subr.bf16.mxu0 0
        %3912 = vmatpush1.bf16.msra.mxu0 0
        %3913 = vmatprep.subr.bf16.mxu0 0
        %3914 = vmatpush1.bf16.msra.mxu0 0
        %3915 = vmatprep.subr.bf16.mxu0 0
        %3916 = vmatpush1.bf16.msra.mxu0 0
        %3917 = vmatprep.subr.bf16.mxu0 0
        %3918 = vmatpush1.bf16.msra.mxu0 0
        %3919 = vmatprep.subr.bf16.mxu0 0
        %3920 = vmatpush1.bf16.msra.mxu0 0
        %3921 = vmatprep.subr.bf16.mxu0 0
        %3922 = vmatpush1.bf16.msra.mxu0 0
        %3923 = vmatprep.subr.bf16.mxu0 0
        %3924 = vmatpush1.bf16.msra.mxu0 0
        %3925 = vmatprep.subr.bf16.mxu0 0
        %3926 = vmatpush1.bf16.msra.mxu0 0
        %3927 = vmatprep.subr.bf16.mxu0 0
        %3928 = vmatpush1.bf16.msra.mxu0 0
        %3929 = vmatprep.subr.bf16.mxu0 0
        %3930 = vmatpush1.bf16.msra.mxu0 0
        %3931 = vmatprep.subr.bf16.mxu0 0
        %3932 = vmatpush1.bf16.msra.mxu0 0
        %3933 = vmatprep.subr.bf16.mxu0 0
        %3934 = vmatpush1.bf16.msra.mxu0 0
        %3935 = vmatprep.subr.bf16.mxu0 0
        %3936 = vmatpush1.bf16.msra.mxu0 0
        %3937 = vmatprep.subr.bf16.mxu0 0
        %3938 = vmatpush1.bf16.msra.mxu0 0
        %3939 = vmatprep.subr.bf16.mxu0 0
        %3940 = vmatpush1.bf16.msra.mxu0 0
        %3941 = vmatprep.mubr.bf16.mxu0 0
        %3942 = vmatmul.mubr.bf16.gmra.mrb[0].mxu0 %v3907
        %v3943 = vpop.f32.mrb[0].mxu0
        %v3944 = vadd.f32 0.0, %v3943
        %v3945 = vpop.f32.mrb[0].mxu0
        %v3946 = vpop.f32.mrb[0].mxu0
        %v3947 = vadd.f32 0.0, %v3946
        %v3948 = vpop.f32.mrb[0].mxu0
        %3949 = vdwg.mxu0
        %v3950 = vpack.c.bf16 %v3947, %v3944
        %s3951 = scalar_lea.vmem %s8, 48
        %v3952 = vld [vmem:[%s3951] sm:$0xf]
        %v3953 = vld [vmem:[%s3951 + $0x4] sm:$0xf]
        %v3954 = vld [vmem:[%s3951 + $0x8] sm:$0xf]
        %v3955 = vld [vmem:[%s3951 + $0xc] sm:$0xf]
        %v3960 = vunpack.c.l.b16 %v3952
        %v3961 = vunpack.c.l.b16 %v3953
        %v3962 = vunpack.c.l.b16 %v3954
        %v3963 = vunpack.c.l.b16 %v3955
        %v3964 = vpack.c.b16 %v3961, %v3960
        %v3965 = vpack.c.b16 %v3963, %v3962
        %v3969 = vsel %vm3681, %v3950, 0
        %3971 = vmatprep.subr.bf16.mxu0 0
        %3972 = vmatpush1.bf16.msra.mxu0 %v3964
        %3973 = vmatprep.subr.bf16.mxu0 0
        %3974 = vmatpush1.bf16.msra.mxu0 %v3965
        %3975 = vmatprep.subr.bf16.mxu0 0
        %3976 = vmatpush1.bf16.msra.mxu0 0
        %3977 = vmatprep.subr.bf16.mxu0 0
        %3978 = vmatpush1.bf16.msra.mxu0 0
        %3979 = vmatprep.subr.bf16.mxu0 0
        %3980 = vmatpush1.bf16.msra.mxu0 0
        %3981 = vmatprep.subr.bf16.mxu0 0
        %3982 = vmatpush1.bf16.msra.mxu0 0
        %3983 = vmatprep.subr.bf16.mxu0 0
        %3984 = vmatpush1.bf16.msra.mxu0 0
        %3985 = vmatprep.subr.bf16.mxu0 0
        %3986 = vmatpush1.bf16.msra.mxu0 0
        %3987 = vmatprep.subr.bf16.mxu0 0
        %3988 = vmatpush1.bf16.msra.mxu0 0
        %3989 = vmatprep.subr.bf16.mxu0 0
        %3990 = vmatpush1.bf16.msra.mxu0 0
        %3991 = vmatprep.subr.bf16.mxu0 0
        %3992 = vmatpush1.bf16.msra.mxu0 0
        %3993 = vmatprep.subr.bf16.mxu0 0
        %3994 = vmatpush1.bf16.msra.mxu0 0
        %3995 = vmatprep.subr.bf16.mxu0 0
        %3996 = vmatpush1.bf16.msra.mxu0 0
        %3997 = vmatprep.subr.bf16.mxu0 0
        %3998 = vmatpush1.bf16.msra.mxu0 0
        %3999 = vmatprep.subr.bf16.mxu0 0
        %4000 = vmatpush1.bf16.msra.mxu0 0
        %4001 = vmatprep.subr.bf16.mxu0 0
        %4002 = vmatpush1.bf16.msra.mxu0 0
        %4003 = vmatprep.mubr.bf16.mxu0 0
        %4004 = vmatmul.mubr.bf16.gmra.mrb[0].mxu0 %v3969
        %v4005 = vpop.f32.mrb[0].mxu0
        %v4006 = vadd.f32 0.0, %v4005
        %v4007 = vpop.f32.mrb[0].mxu0
        %v4008 = vpop.f32.mrb[0].mxu0
        %v4009 = vadd.f32 0.0, %v4008
        %v4010 = vpop.f32.mrb[0].mxu0
        %4011 = vdwg.mxu0
        %v4012 = vadd.f32 %v3896, %v4006
        %v4013 = vadd.f32 %v3897, %v4009
        %s4014 = scalar_lea.vmem %s7, 32
        %v4015 = vld [vmem:[%s4014] sm:$0xf]
        %v4016 = vld [vmem:[%s4014 + $0x4] sm:$0xf]
        %v4019 = vunpack.c.l.b16 %v4015
        %v4020 = vunpack.c.l.b16 %v4016
        %v4021 = vpack.c.b16 %v4020, %v4019
        %v4023 = vsel %vm2682, %v4021, 0
        %4025 = vmatprep.subr.bf16.mxu0 0
        %4026 = vmatpush1.bf16.msra.mxu0 %v3554
        %4027 = vmatprep.subr.bf16.mxu0 0
        %4028 = vmatpush1.bf16.msra.mxu0 0
        %4029 = vmatprep.subr.bf16.mxu0 0
        %4030 = vmatpush1.bf16.msra.mxu0 0
        %4031 = vmatprep.subr.bf16.mxu0 0
        %4032 = vmatpush1.bf16.msra.mxu0 0
        %4033 = vmatprep.subr.bf16.mxu0 0
        %4034 = vmatpush1.bf16.msra.mxu0 0
        %4035 = vmatprep.subr.bf16.mxu0 0
        %4036 = vmatpush1.bf16.msra.mxu0 0
        %4037 = vmatprep.subr.bf16.mxu0 0
        %4038 = vmatpush1.bf16.msra.mxu0 0
        %4039 = vmatprep.subr.bf16.mxu0 0
        %4040 = vmatpush1.bf16.msra.mxu0 0
        %4041 = vmatprep.subr.bf16.mxu0 0
        %4042 = vmatpush1.bf16.msra.mxu0 0
        %4043 = vmatprep.subr.bf16.mxu0 0
        %4044 = vmatpush1.bf16.msra.mxu0 0
        %4045 = vmatprep.subr.bf16.mxu0 0
        %4046 = vmatpush1.bf16.msra.mxu0 0
        %4047 = vmatprep.subr.bf16.mxu0 0
        %4048 = vmatpush1.bf16.msra.mxu0 0
        %4049 = vmatprep.subr.bf16.mxu0 0
        %4050 = vmatpush1.bf16.msra.mxu0 0
        %4051 = vmatprep.subr.bf16.mxu0 0
        %4052 = vmatpush1.bf16.msra.mxu0 0
        %4053 = vmatprep.subr.bf16.mxu0 0
        %4054 = vmatpush1.bf16.msra.mxu0 0
        %4055 = vmatprep.subr.bf16.mxu0 0
        %4056 = vmatpush1.bf16.msra.mxu0 0
        %4057 = vmatprep.mubr.bf16.mxu0 0
        %4058 = vmatmul.mubr.bf16.gmra.mrb[0].mxu0 %v4023
        %v4059 = vpop.f32.mrb[0].mxu0
        %v4060 = vadd.f32 0.0, %v4059
        %v4061 = vpop.f32.mrb[0].mxu0
        %v4062 = vpop.f32.mrb[0].mxu0
        %v4063 = vadd.f32 0.0, %v4062
        %v4064 = vpop.f32.mrb[0].mxu0
        %4065 = vdwg.mxu0
        %v4066 = vpack.c.bf16 %v4063, %v4060
        %s4067 = scalar_lea.vmem %s8, 64
        %v4068 = vld [vmem:[%s4067] sm:$0xf]
        %v4069 = vld [vmem:[%s4067 + $0x4] sm:$0xf]
        %v4070 = vld [vmem:[%s4067 + $0x8] sm:$0xf]
        %v4071 = vld [vmem:[%s4067 + $0xc] sm:$0xf]
        %v4076 = vunpack.c.l.b16 %v4068
        %v4077 = vunpack.c.l.b16 %v4069
        %v4078 = vunpack.c.l.b16 %v4070
        %v4079 = vunpack.c.l.b16 %v4071
        %v4080 = vpack.c.b16 %v4077, %v4076
        %v4081 = vpack.c.b16 %v4079, %v4078
        %v4085 = vsel %vm3681, %v4066, 0
        %4087 = vmatprep.subr.bf16.mxu0 0
        %4088 = vmatpush1.bf16.msra.mxu0 %v4080
        %4089 = vmatprep.subr.bf16.mxu0 0
        %4090 = vmatpush1.bf16.msra.mxu0 %v4081
        %4091 = vmatprep.subr.bf16.mxu0 0
        %4092 = vmatpush1.bf16.msra.mxu0 0
        %4093 = vmatprep.subr.bf16.mxu0 0
        %4094 = vmatpush1.bf16.msra.mxu0 0
        %4095 = vmatprep.subr.bf16.mxu0 0
        %4096 = vmatpush1.bf16.msra.mxu0 0
        %4097 = vmatprep.subr.bf16.mxu0 0
        %4098 = vmatpush1.bf16.msra.mxu0 0
        %4099 = vmatprep.subr.bf16.mxu0 0
        %4100 = vmatpush1.bf16.msra.mxu0 0
        %4101 = vmatprep.subr.bf16.mxu0 0
        %4102 = vmatpush1.bf16.msra.mxu0 0
        %4103 = vmatprep.subr.bf16.mxu0 0
        %4104 = vmatpush1.bf16.msra.mxu0 0
        %4105 = vmatprep.subr.bf16.mxu0 0
        %4106 = vmatpush1.bf16.msra.mxu0 0
        %4107 = vmatprep.subr.bf16.mxu0 0
        %4108 = vmatpush1.bf16.msra.mxu0 0
        %4109 = vmatprep.subr.bf16.mxu0 0
        %4110 = vmatpush1.bf16.msra.mxu0 0
        %4111 = vmatprep.subr.bf16.mxu0 0
        %4112 = vmatpush1.bf16.msra.mxu0 0
        %4113 = vmatprep.subr.bf16.mxu0 0
        %4114 = vmatpush1.bf16.msra.mxu0 0
        %4115 = vmatprep.subr.bf16.mxu0 0
        %4116 = vmatpush1.bf16.msra.mxu0 0
        %4117 = vmatprep.subr.bf16.mxu0 0
        %4118 = vmatpush1.bf16.msra.mxu0 0
        %4119 = vmatprep.mubr.bf16.mxu0 0
        %4120 = vmatmul.mubr.bf16.gmra.mrb[0].mxu0 %v4085
        %v4121 = vpop.f32.mrb[0].mxu0
        %v4122 = vadd.f32 0.0, %v4121
        %v4123 = vpop.f32.mrb[0].mxu0
        %v4124 = vpop.f32.mrb[0].mxu0
        %v4125 = vadd.f32 0.0, %v4124
        %v4126 = vpop.f32.mrb[0].mxu0
        %4127 = vdwg.mxu0
        %v4128 = vadd.f32 %v4012, %v4122
        %v4129 = vadd.f32 %v4013, %v4125
        %s4130 = scalar_lea.vmem %s7, 40
        %v4131 = vld [vmem:[%s4130] sm:$0xf]
        %v4132 = vld [vmem:[%s4130 + $0x4] sm:$0xf]
        %v4135 = vunpack.c.l.b16 %v4131
        %v4136 = vunpack.c.l.b16 %v4132
        %v4137 = vpack.c.b16 %v4136, %v4135
        %v4139 = vsel %vm2682, %v4137, 0
        %4141 = vmatprep.subr.bf16.mxu0 0
        %4142 = vmatpush1.bf16.msra.mxu0 %v3554
        %4143 = vmatprep.subr.bf16.mxu0 0
        %4144 = vmatpush1.bf16.msra.mxu0 0
        %4145 = vmatprep.subr.bf16.mxu0 0
        %4146 = vmatpush1.bf16.msra.mxu0 0
        %4147 = vmatprep.subr.bf16.mxu0 0
        %4148 = vmatpush1.bf16.msra.mxu0 0
        %4149 = vmatprep.subr.bf16.mxu0 0
        %4150 = vmatpush1.bf16.msra.mxu0 0
        %4151 = vmatprep.subr.bf16.mxu0 0
        %4152 = vmatpush1.bf16.msra.mxu0 0
        %4153 = vmatprep.subr.bf16.mxu0 0
        %4154 = vmatpush1.bf16.msra.mxu0 0
        %4155 = vmatprep.subr.bf16.mxu0 0
        %4156 = vmatpush1.bf16.msra.mxu0 0
        %4157 = vmatprep.subr.bf16.mxu0 0
        %4158 = vmatpush1.bf16.msra.mxu0 0
        %4159 = vmatprep.subr.bf16.mxu0 0
        %4160 = vmatpush1.bf16.msra.mxu0 0
        %4161 = vmatprep.subr.bf16.mxu0 0
        %4162 = vmatpush1.bf16.msra.mxu0 0
        %4163 = vmatprep.subr.bf16.mxu0 0
        %4164 = vmatpush1.bf16.msra.mxu0 0
        %4165 = vmatprep.subr.bf16.mxu0 0
        %4166 = vmatpush1.bf16.msra.mxu0 0
        %4167 = vmatprep.subr.bf16.mxu0 0
        %4168 = vmatpush1.bf16.msra.mxu0 0
        %4169 = vmatprep.subr.bf16.mxu0 0
        %4170 = vmatpush1.bf16.msra.mxu0 0
        %4171 = vmatprep.subr.bf16.mxu0 0
        %4172 = vmatpush1.bf16.msra.mxu0 0
        %4173 = vmatprep.mubr.bf16.mxu0 0
        %4174 = vmatmul.mubr.bf16.gmra.mrb[0].mxu0 %v4139
        %v4175 = vpop.f32.mrb[0].mxu0
        %v4176 = vadd.f32 0.0, %v4175
        %v4177 = vpop.f32.mrb[0].mxu0
        %v4178 = vpop.f32.mrb[0].mxu0
        %v4179 = vadd.f32 0.0, %v4178
        %v4180 = vpop.f32.mrb[0].mxu0
        %4181 = vdwg.mxu0
        %v4182 = vpack.c.bf16 %v4179, %v4176
        %s4183 = scalar_lea.vmem %s8, 80
        %v4184 = vld [vmem:[%s4183] sm:$0xf]
        %v4185 = vld [vmem:[%s4183 + $0x4] sm:$0xf]
        %v4186 = vld [vmem:[%s4183 + $0x8] sm:$0xf]
        %v4187 = vld [vmem:[%s4183 + $0xc] sm:$0xf]
        %v4192 = vunpack.c.l.b16 %v4184
        %v4193 = vunpack.c.l.b16 %v4185
        %v4194 = vunpack.c.l.b16 %v4186
        %v4195 = vunpack.c.l.b16 %v4187
        %v4196 = vpack.c.b16 %v4193, %v4192
        %v4197 = vpack.c.b16 %v4195, %v4194
        %v4201 = vsel %vm3681, %v4182, 0
        %4203 = vmatprep.subr.bf16.mxu0 0
        %4204 = vmatpush1.bf16.msra.mxu0 %v4196
        %4205 = vmatprep.subr.bf16.mxu0 0
        %4206 = vmatpush1.bf16.msra.mxu0 %v4197
        %4207 = vmatprep.subr.bf16.mxu0 0
        %4208 = vmatpush1.bf16.msra.mxu0 0
        %4209 = vmatprep.subr.bf16.mxu0 0
        %4210 = vmatpush1.bf16.msra.mxu0 0
        %4211 = vmatprep.subr.bf16.mxu0 0
        %4212 = vmatpush1.bf16.msra.mxu0 0
        %4213 = vmatprep.subr.bf16.mxu0 0
        %4214 = vmatpush1.bf16.msra.mxu0 0
        %4215 = vmatprep.subr.bf16.mxu0 0
        %4216 = vmatpush1.bf16.msra.mxu0 0
        %4217 = vmatprep.subr.bf16.mxu0 0
        %4218 = vmatpush1.bf16.msra.mxu0 0
        %4219 = vmatprep.subr.bf16.mxu0 0
        %4220 = vmatpush1.bf16.msra.mxu0 0
        %4221 = vmatprep.subr.bf16.mxu0 0
        %4222 = vmatpush1.bf16.msra.mxu0 0
        %4223 = vmatprep.subr.bf16.mxu0 0
        %4224 = vmatpush1.bf16.msra.mxu0 0
        %4225 = vmatprep.subr.bf16.mxu0 0
        %4226 = vmatpush1.bf16.msra.mxu0 0
        %4227 = vmatprep.subr.bf16.mxu0 0
        %4228 = vmatpush1.bf16.msra.mxu0 0
        %4229 = vmatprep.subr.bf16.mxu0 0
        %4230 = vmatpush1.bf16.msra.mxu0 0
        %4231 = vmatprep.subr.bf16.mxu0 0
        %4232 = vmatpush1.bf16.msra.mxu0 0
        %4233 = vmatprep.subr.bf16.mxu0 0
        %4234 = vmatpush1.bf16.msra.mxu0 0
        %4235 = vmatprep.mubr.bf16.mxu0 0
        %4236 = vmatmul.mubr.bf16.gmra.mrb[0].mxu0 %v4201
        %v4237 = vpop.f32.mrb[0].mxu0
        %v4238 = vadd.f32 0.0, %v4237
        %v4239 = vpop.f32.mrb[0].mxu0
        %v4240 = vpop.f32.mrb[0].mxu0
        %v4241 = vadd.f32 0.0, %v4240
        %v4242 = vpop.f32.mrb[0].mxu0
        %4243 = vdwg.mxu0
        %v4244 = vadd.f32 %v4128, %v4238
        %v4245 = vadd.f32 %v4129, %v4241
        %s4246 = scalar_lea.vmem %s7, 48
        %v4247 = vld [vmem:[%s4246] sm:$0xf]
        %v4248 = vld [vmem:[%s4246 + $0x4] sm:$0xf]
        %v4251 = vunpack.c.l.b16 %v4247
        %v4252 = vunpack.c.l.b16 %v4248
        %v4253 = vpack.c.b16 %v4252, %v4251
        %v4255 = vsel %vm2682, %v4253, 0
        %4257 = vmatprep.subr.bf16.mxu0 0
        %4258 = vmatpush1.bf16.msra.mxu0 %v3554
        %4259 = vmatprep.subr.bf16.mxu0 0
        %4260 = vmatpush1.bf16.msra.mxu0 0
        %4261 = vmatprep.subr.bf16.mxu0 0
        %4262 = vmatpush1.bf16.msra.mxu0 0
        %4263 = vmatprep.subr.bf16.mxu0 0
        %4264 = vmatpush1.bf16.msra.mxu0 0
        %4265 = vmatprep.subr.bf16.mxu0 0
        %4266 = vmatpush1.bf16.msra.mxu0 0
        %4267 = vmatprep.subr.bf16.mxu0 0
        %4268 = vmatpush1.bf16.msra.mxu0 0
        %4269 = vmatprep.subr.bf16.mxu0 0
        %4270 = vmatpush1.bf16.msra.mxu0 0
        %4271 = vmatprep.subr.bf16.mxu0 0
        %4272 = vmatpush1.bf16.msra.mxu0 0
        %4273 = vmatprep.subr.bf16.mxu0 0
        %4274 = vmatpush1.bf16.msra.mxu0 0
        %4275 = vmatprep.subr.bf16.mxu0 0
        %4276 = vmatpush1.bf16.msra.mxu0 0
        %4277 = vmatprep.subr.bf16.mxu0 0
        %4278 = vmatpush1.bf16.msra.mxu0 0
        %4279 = vmatprep.subr.bf16.mxu0 0
        %4280 = vmatpush1.bf16.msra.mxu0 0
        %4281 = vmatprep.subr.bf16.mxu0 0
        %4282 = vmatpush1.bf16.msra.mxu0 0
        %4283 = vmatprep.subr.bf16.mxu0 0
        %4284 = vmatpush1.bf16.msra.mxu0 0
        %4285 = vmatprep.subr.bf16.mxu0 0
        %4286 = vmatpush1.bf16.msra.mxu0 0
        %4287 = vmatprep.subr.bf16.mxu0 0
        %4288 = vmatpush1.bf16.msra.mxu0 0
        %4289 = vmatprep.mubr.bf16.mxu0 0
        %4290 = vmatmul.mubr.bf16.gmra.mrb[0].mxu0 %v4255
        %v4291 = vpop.f32.mrb[0].mxu0
        %v4292 = vadd.f32 0.0, %v4291
        %v4293 = vpop.f32.mrb[0].mxu0
        %v4294 = vpop.f32.mrb[0].mxu0
        %v4295 = vadd.f32 0.0, %v4294
        %v4296 = vpop.f32.mrb[0].mxu0
        %4297 = vdwg.mxu0
        %v4298 = vpack.c.bf16 %v4295, %v4292
        %s4299 = scalar_lea.vmem %s8, 96
        %v4300 = vld [vmem:[%s4299] sm:$0xf]
        %v4301 = vld [vmem:[%s4299 + $0x4] sm:$0xf]
        %v4302 = vld [vmem:[%s4299 + $0x8] sm:$0xf]
        %v4303 = vld [vmem:[%s4299 + $0xc] sm:$0xf]
        %v4308 = vunpack.c.l.b16 %v4300
        %v4309 = vunpack.c.l.b16 %v4301
        %v4310 = vunpack.c.l.b16 %v4302
        %v4311 = vunpack.c.l.b16 %v4303
        %v4312 = vpack.c.b16 %v4309, %v4308
        %v4313 = vpack.c.b16 %v4311, %v4310
        %v4317 = vsel %vm3681, %v4298, 0
        %4319 = vmatprep.subr.bf16.mxu0 0
        %4320 = vmatpush1.bf16.msra.mxu0 %v4312
        %4321 = vmatprep.subr.bf16.mxu0 0
        %4322 = vmatpush1.bf16.msra.mxu0 %v4313
        %4323 = vmatprep.subr.bf16.mxu0 0
        %4324 = vmatpush1.bf16.msra.mxu0 0
        %4325 = vmatprep.subr.bf16.mxu0 0
        %4326 = vmatpush1.bf16.msra.mxu0 0
        %4327 = vmatprep.subr.bf16.mxu0 0
        %4328 = vmatpush1.bf16.msra.mxu0 0
        %4329 = vmatprep.subr.bf16.mxu0 0
        %4330 = vmatpush1.bf16.msra.mxu0 0
        %4331 = vmatprep.subr.bf16.mxu0 0
        %4332 = vmatpush1.bf16.msra.mxu0 0
        %4333 = vmatprep.subr.bf16.mxu0 0
        %4334 = vmatpush1.bf16.msra.mxu0 0
        %4335 = vmatprep.subr.bf16.mxu0 0
        %4336 = vmatpush1.bf16.msra.mxu0 0
        %4337 = vmatprep.subr.bf16.mxu0 0
        %4338 = vmatpush1.bf16.msra.mxu0 0
        %4339 = vmatprep.subr.bf16.mxu0 0
        %4340 = vmatpush1.bf16.msra.mxu0 0
        %4341 = vmatprep.subr.bf16.mxu0 0
        %4342 = vmatpush1.bf16.msra.mxu0 0
        %4343 = vmatprep.subr.bf16.mxu0 0
        %4344 = vmatpush1.bf16.msra.mxu0 0
        %4345 = vmatprep.subr.bf16.mxu0 0
        %4346 = vmatpush1.bf16.msra.mxu0 0
        %4347 = vmatprep.subr.bf16.mxu0 0
        %4348 = vmatpush1.bf16.msra.mxu0 0
        %4349 = vmatprep.subr.bf16.mxu0 0
        %4350 = vmatpush1.bf16.msra.mxu0 0
        %4351 = vmatprep.mubr.bf16.mxu0 0
        %4352 = vmatmul.mubr.bf16.gmra.mrb[0].mxu0 %v4317
        %v4353 = vpop.f32.mrb[0].mxu0
        %v4354 = vadd.f32 0.0, %v4353
        %v4355 = vpop.f32.mrb[0].mxu0
        %v4356 = vpop.f32.mrb[0].mxu0
        %v4357 = vadd.f32 0.0, %v4356
        %v4358 = vpop.f32.mrb[0].mxu0
        %4359 = vdwg.mxu0
        %v4360 = vadd.f32 %v4244, %v4354
        %v4361 = vadd.f32 %v4245, %v4357
        %s4362 = scalar_lea.vmem %s7, 56
        %v4363 = vld [vmem:[%s4362] sm:$0xf]
        %v4364 = vld [vmem:[%s4362 + $0x4] sm:$0xf]
        %v4367 = vunpack.c.l.b16 %v4363
        %v4368 = vunpack.c.l.b16 %v4364
        %v4369 = vpack.c.b16 %v4368, %v4367
        %v4371 = vsel %vm2682, %v4369, 0
        %4373 = vmatprep.subr.bf16.mxu0 0
        %4374 = vmatpush1.bf16.msra.mxu0 %v3554
        %4375 = vmatprep.subr.bf16.mxu0 0
        %4376 = vmatpush1.bf16.msra.mxu0 0
        %4377 = vmatprep.subr.bf16.mxu0 0
        %4378 = vmatpush1.bf16.msra.mxu0 0
        %4379 = vmatprep.subr.bf16.mxu0 0
        %4380 = vmatpush1.bf16.msra.mxu0 0
        %4381 = vmatprep.subr.bf16.mxu0 0
        %4382 = vmatpush1.bf16.msra.mxu0 0
        %4383 = vmatprep.subr.bf16.mxu0 0
        %4384 = vmatpush1.bf16.msra.mxu0 0
        %4385 = vmatprep.subr.bf16.mxu0 0
        %4386 = vmatpush1.bf16.msra.mxu0 0
        %4387 = vmatprep.subr.bf16.mxu0 0
        %4388 = vmatpush1.bf16.msra.mxu0 0
        %4389 = vmatprep.subr.bf16.mxu0 0
        %4390 = vmatpush1.bf16.msra.mxu0 0
        %4391 = vmatprep.subr.bf16.mxu0 0
        %4392 = vmatpush1.bf16.msra.mxu0 0
        %4393 = vmatprep.subr.bf16.mxu0 0
        %4394 = vmatpush1.bf16.msra.mxu0 0
        %4395 = vmatprep.subr.bf16.mxu0 0
        %4396 = vmatpush1.bf16.msra.mxu0 0
        %4397 = vmatprep.subr.bf16.mxu0 0
        %4398 = vmatpush1.bf16.msra.mxu0 0
        %4399 = vmatprep.subr.bf16.mxu0 0
        %4400 = vmatpush1.bf16.msra.mxu0 0
        %4401 = vmatprep.subr.bf16.mxu0 0
        %4402 = vmatpush1.bf16.msra.mxu0 0
        %4403 = vmatprep.subr.bf16.mxu0 0
        %4404 = vmatpush1.bf16.msra.mxu0 0
        %4405 = vmatprep.mubr.bf16.mxu0 0
        %4406 = vmatmul.mubr.bf16.gmra.mrb[0].mxu0 %v4371
        %v4407 = vpop.f32.mrb[0].mxu0
        %v4408 = vadd.f32 0.0, %v4407
        %v4409 = vpop.f32.mrb[0].mxu0
        %v4410 = vpop.f32.mrb[0].mxu0
        %v4411 = vadd.f32 0.0, %v4410
        %v4412 = vpop.f32.mrb[0].mxu0
        %4413 = vdwg.mxu0
        %v4414 = vpack.c.bf16 %v4411, %v4408
        %s4415 = scalar_lea.vmem %s8, 112
        %v4416 = vld [vmem:[%s4415] sm:$0xf]
        %v4417 = vld [vmem:[%s4415 + $0x4] sm:$0xf]
        %v4418 = vld [vmem:[%s4415 + $0x8] sm:$0xf]
        %v4419 = vld [vmem:[%s4415 + $0xc] sm:$0xf]
        %v4424 = vunpack.c.l.b16 %v4416
        %v4425 = vunpack.c.l.b16 %v4417
        %v4426 = vunpack.c.l.b16 %v4418
        %v4427 = vunpack.c.l.b16 %v4419
        %v4428 = vpack.c.b16 %v4425, %v4424
        %v4429 = vpack.c.b16 %v4427, %v4426
        %v4433 = vsel %vm3681, %v4414, 0
        %4435 = vmatprep.subr.bf16.mxu0 0
        %4436 = vmatpush1.bf16.msra.mxu0 %v4428
        %4437 = vmatprep.subr.bf16.mxu0 0
        %4438 = vmatpush1.bf16.msra.mxu0 %v4429
        %4439 = vmatprep.subr.bf16.mxu0 0
        %4440 = vmatpush1.bf16.msra.mxu0 0
        %4441 = vmatprep.subr.bf16.mxu0 0
        %4442 = vmatpush1.bf16.msra.mxu0 0
        %4443 = vmatprep.subr.bf16.mxu0 0
        %4444 = vmatpush1.bf16.msra.mxu0 0
        %4445 = vmatprep.subr.bf16.mxu0 0
        %4446 = vmatpush1.bf16.msra.mxu0 0
        %4447 = vmatprep.subr.bf16.mxu0 0
        %4448 = vmatpush1.bf16.msra.mxu0 0
        %4449 = vmatprep.subr.bf16.mxu0 0
        %4450 = vmatpush1.bf16.msra.mxu0 0
        %4451 = vmatprep.subr.bf16.mxu0 0
        %4452 = vmatpush1.bf16.msra.mxu0 0
        %4453 = vmatprep.subr.bf16.mxu0 0
        %4454 = vmatpush1.bf16.msra.mxu0 0
        %4455 = vmatprep.subr.bf16.mxu0 0
        %4456 = vmatpush1.bf16.msra.mxu0 0
        %4457 = vmatprep.subr.bf16.mxu0 0
        %4458 = vmatpush1.bf16.msra.mxu0 0
        %4459 = vmatprep.subr.bf16.mxu0 0
        %4460 = vmatpush1.bf16.msra.mxu0 0
        %4461 = vmatprep.subr.bf16.mxu0 0
        %4462 = vmatpush1.bf16.msra.mxu0 0
        %4463 = vmatprep.subr.bf16.mxu0 0
        %4464 = vmatpush1.bf16.msra.mxu0 0
        %4465 = vmatprep.subr.bf16.mxu0 0
        %4466 = vmatpush1.bf16.msra.mxu0 0
        %4467 = vmatprep.mubr.bf16.mxu0 0
        %4468 = vmatmul.mubr.bf16.gmra.mrb[0].mxu0 %v4433
        %v4469 = vpop.f32.mrb[0].mxu0
        %v4470 = vadd.f32 0.0, %v4469
        %v4471 = vpop.f32.mrb[0].mxu0
        %v4472 = vpop.f32.mrb[0].mxu0
        %v4473 = vadd.f32 0.0, %v4472
        %v4474 = vpop.f32.mrb[0].mxu0
        %4475 = vdwg.mxu0
        %v4476 = vadd.f32 %v4360, %v4470
        %v4477 = vadd.f32 %v4361, %v4473
        %s4478 = scalar_lea.vmem %s7, 64
        %v4479 = vld [vmem:[%s4478] sm:$0xf]
        %v4480 = vld [vmem:[%s4478 + $0x4] sm:$0xf]
        %v4483 = vunpack.c.l.b16 %v4479
        %v4484 = vunpack.c.l.b16 %v4480
        %v4485 = vpack.c.b16 %v4484, %v4483
        %v4487 = vsel %vm2682, %v4485, 0
        %4489 = vmatprep.subr.bf16.mxu0 0
        %4490 = vmatpush1.bf16.msra.mxu0 %v3554
        %4491 = vmatprep.subr.bf16.mxu0 0
        %4492 = vmatpush1.bf16.msra.mxu0 0
        %4493 = vmatprep.subr.bf16.mxu0 0
        %4494 = vmatpush1.bf16.msra.mxu0 0
        %4495 = vmatprep.subr.bf16.mxu0 0
        %4496 = vmatpush1.bf16.msra.mxu0 0
        %4497 = vmatprep.subr.bf16.mxu0 0
        %4498 = vmatpush1.bf16.msra.mxu0 0
        %4499 = vmatprep.subr.bf16.mxu0 0
        %4500 = vmatpush1.bf16.msra.mxu0 0
        %4501 = vmatprep.subr.bf16.mxu0 0
        %4502 = vmatpush1.bf16.msra.mxu0 0
        %4503 = vmatprep.subr.bf16.mxu0 0
        %4504 = vmatpush1.bf16.msra.mxu0 0
        %4505 = vmatprep.subr.bf16.mxu0 0
        %4506 = vmatpush1.bf16.msra.mxu0 0
        %4507 = vmatprep.subr.bf16.mxu0 0
        %4508 = vmatpush1.bf16.msra.mxu0 0
        %4509 = vmatprep.subr.bf16.mxu0 0
        %4510 = vmatpush1.bf16.msra.mxu0 0
        %4511 = vmatprep.subr.bf16.mxu0 0
        %4512 = vmatpush1.bf16.msra.mxu0 0
        %4513 = vmatprep.subr.bf16.mxu0 0
        %4514 = vmatpush1.bf16.msra.mxu0 0
        %4515 = vmatprep.subr.bf16.mxu0 0
        %4516 = vmatpush1.bf16.msra.mxu0 0
        %4517 = vmatprep.subr.bf16.mxu0 0
        %4518 = vmatpush1.bf16.msra.mxu0 0
        %4519 = vmatprep.subr.bf16.mxu0 0
        %4520 = vmatpush1.bf16.msra.mxu0 0
        %4521 = vmatprep.mubr.bf16.mxu0 0
        %4522 = vmatmul.mubr.bf16.gmra.mrb[0].mxu0 %v4487
        %v4523 = vpop.f32.mrb[0].mxu0
        %v4524 = vadd.f32 0.0, %v4523
        %v4525 = vpop.f32.mrb[0].mxu0
        %v4526 = vpop.f32.mrb[0].mxu0
        %v4527 = vadd.f32 0.0, %v4526
        %v4528 = vpop.f32.mrb[0].mxu0
        %4529 = vdwg.mxu0
        %v4530 = vpack.c.bf16 %v4527, %v4524
        %s4531 = scalar_lea.vmem %s8, 128
        %v4532 = vld [vmem:[%s4531] sm:$0xf]
        %v4533 = vld [vmem:[%s4531 + $0x4] sm:$0xf]
        %v4534 = vld [vmem:[%s4531 + $0x8] sm:$0xf]
        %v4535 = vld [vmem:[%s4531 + $0xc] sm:$0xf]
        %v4540 = vunpack.c.l.b16 %v4532
        %v4541 = vunpack.c.l.b16 %v4533
        %v4542 = vunpack.c.l.b16 %v4534
        %v4543 = vunpack.c.l.b16 %v4535
        %v4544 = vpack.c.b16 %v4541, %v4540
        %v4545 = vpack.c.b16 %v4543, %v4542
        %v4549 = vsel %vm3681, %v4530, 0
        %4551 = vmatprep.subr.bf16.mxu0 0
        %4552 = vmatpush1.bf16.msra.mxu0 %v4544
        %4553 = vmatprep.subr.bf16.mxu0 0
        %4554 = vmatpush1.bf16.msra.mxu0 %v4545
        %4555 = vmatprep.subr.bf16.mxu0 0
        %4556 = vmatpush1.bf16.msra.mxu0 0
        %4557 = vmatprep.subr.bf16.mxu0 0
        %4558 = vmatpush1.bf16.msra.mxu0 0
        %4559 = vmatprep.subr.bf16.mxu0 0
        %4560 = vmatpush1.bf16.msra.mxu0 0
        %4561 = vmatprep.subr.bf16.mxu0 0
        %4562 = vmatpush1.bf16.msra.mxu0 0
        %4563 = vmatprep.subr.bf16.mxu0 0
        %4564 = vmatpush1.bf16.msra.mxu0 0
        %4565 = vmatprep.subr.bf16.mxu0 0
        %4566 = vmatpush1.bf16.msra.mxu0 0
        %4567 = vmatprep.subr.bf16.mxu0 0
        %4568 = vmatpush1.bf16.msra.mxu0 0
        %4569 = vmatprep.subr.bf16.mxu0 0
        %4570 = vmatpush1.bf16.msra.mxu0 0
        %4571 = vmatprep.subr.bf16.mxu0 0
        %4572 = vmatpush1.bf16.msra.mxu0 0
        %4573 = vmatprep.subr.bf16.mxu0 0
        %4574 = vmatpush1.bf16.msra.mxu0 0
        %4575 = vmatprep.subr.bf16.mxu0 0
        %4576 = vmatpush1.bf16.msra.mxu0 0
        %4577 = vmatprep.subr.bf16.mxu0 0
        %4578 = vmatpush1.bf16.msra.mxu0 0
        %4579 = vmatprep.subr.bf16.mxu0 0
        %4580 = vmatpush1.bf16.msra.mxu0 0
        %4581 = vmatprep.subr.bf16.mxu0 0
        %4582 = vmatpush1.bf16.msra.mxu0 0
        %4583 = vmatprep.mubr.bf16.mxu0 0
        %4584 = vmatmul.mubr.bf16.gmra.mrb[0].mxu0 %v4549
        %v4585 = vpop.f32.mrb[0].mxu0
        %v4586 = vadd.f32 0.0, %v4585
        %v4587 = vpop.f32.mrb[0].mxu0
        %v4588 = vpop.f32.mrb[0].mxu0
        %v4589 = vadd.f32 0.0, %v4588
        %v4590 = vpop.f32.mrb[0].mxu0
        %4591 = vdwg.mxu0
        %v4592 = vadd.f32 %v4476, %v4586
        %v4593 = vadd.f32 %v4477, %v4589
        %v4594 = vld [vmem:[%s9] sm:$0x1]
        %v4596 = vlaneseq
        %v4597 = vshrl.u32 %v4596, 7
        %v4598 = vsub.s32 0, %v4597
        %v4599 = vrot.slane %v4594, %v4598
        %v4601 = vadd.f32 %v4592, %v4599
        %v4602 = vadd.f32 %v4593, %v4599
        %v4603 = vsub.f32 0.0, %v4601
        %v4604 = vsub.f32 0.0, %v4602
        %v4605 = vmul.f32 %v4603, 1.442695
        %v4606 = vpow.pop %v4605
        %v4607 = vmul.f32 %v4604, 1.442695
        %v4608 = vpow.pop %v4607
        %v4609 = vadd.f32 %v4606, 1.0
        %v4610 = vadd.f32 %v4608, 1.0
        %v4611 = vrcp.pop %v4609
        %v4612 = vmul.f32 %v4601, %v4611
        %v4613 = vrcp.pop %v4610
        %v4614 = vmul.f32 %v4602, %v4613
        %v4615 = vunpack.c.l.bf16 %v3554
        %v4616 = vunpack.c.h.bf16 %v3554
        %v4617 = vadd.f32 %v4612, %v4615
        %v4618 = vadd.f32 %v4614, %v4616
        %v4619 = vpack.c.bf16 %v4618, %v4617
        %v4620 = vld [vmem:[%s10] sm:$0xf]
        %v4621 = vld [vmem:[%s10 + $0x4] sm:$0xf]
        %v4622 = vld [vmem:[%s10 + $0x8] sm:$0xf]
        %v4623 = vld [vmem:[%s10 + $0xc] sm:$0xf]
        %v4624 = vld [vmem:[%s11] sm:$0x1]
        %v4626 = vlaneseq
        %v4627 = vshrl.u32 %v4626, 7
        %v4628 = vsub.s32 0, %v4627
        %v4629 = vrot.slane %v4624, %v4628
        %v4635 = vunpack.c.l.b16 %v4620
        %v4636 = vunpack.c.l.b16 %v4621
        %v4637 = vunpack.c.l.b16 %v4622
        %v4638 = vunpack.c.l.b16 %v4623
        %v4639 = vpack.c.b16 %v4636, %v4635
        %v4640 = vpack.c.b16 %v4638, %v4637
        %v4644 = vsel %vm3681, %v4619, 0
        %4646 = vmatprep.subr.bf16.mxu0 0
        %4647 = vmatpush1.bf16.msra.mxu0 %v4639
        %4648 = vmatprep.subr.bf16.mxu0 0
        %4649 = vmatpush1.bf16.msra.mxu0 %v4640
        %4650 = vmatprep.subr.bf16.mxu0 0
        %4651 = vmatpush1.bf16.msra.mxu0 0
        %4652 = vmatprep.subr.bf16.mxu0 0
        %4653 = vmatpush1.bf16.msra.mxu0 0
        %4654 = vmatprep.subr.bf16.mxu0 0
        %4655 = vmatpush1.bf16.msra.mxu0 0
        %4656 = vmatprep.subr.bf16.mxu0 0
        %4657 = vmatpush1.bf16.msra.mxu0 0
        %4658 = vmatprep.subr.bf16.mxu0 0
        %4659 = vmatpush1.bf16.msra.mxu0 0
        %4660 = vmatprep.subr.bf16.mxu0 0
        %4661 = vmatpush1.bf16.msra.mxu0 0
        %4662 = vmatprep.subr.bf16.mxu0 0
        %4663 = vmatpush1.bf16.msra.mxu0 0
        %4664 = vmatprep.subr.bf16.mxu0 0
        %4665 = vmatpush1.bf16.msra.mxu0 0
        %4666 = vmatprep.subr.bf16.mxu0 0
        %4667 = vmatpush1.bf16.msra.mxu0 0
        %4668 = vmatprep.subr.bf16.mxu0 0
        %4669 = vmatpush1.bf16.msra.mxu0 0
        %4670 = vmatprep.subr.bf16.mxu0 0
        %4671 = vmatpush1.bf16.msra.mxu0 0
        %4672 = vmatprep.subr.bf16.mxu0 0
        %4673 = vmatpush1.bf16.msra.mxu0 0
        %4674 = vmatprep.subr.bf16.mxu0 0
        %4675 = vmatpush1.bf16.msra.mxu0 0
        %4676 = vmatprep.subr.bf16.mxu0 0
        %4677 = vmatpush1.bf16.msra.mxu0 0
        %4678 = vmatprep.mubr.bf16.mxu0 0
        %4679 = vmatmul.mubr.bf16.gmra.mrb[0].mxu0 %v4644
        %v4680 = vpop.f32.mrb[0].mxu0
        %v4681 = vadd.f32 %v4629, %v4680
        %v4682 = vpop.f32.mrb[0].mxu0
        %v4683 = vpop.f32.mrb[0].mxu0
        %v4684 = vadd.f32 %v4629, %v4683
        %v4685 = vpop.f32.mrb[0].mxu0
        %4686 = vdwg.mxu0
        %v4687 = vsub.f32 0.0, %v4681
        %v4688 = vsub.f32 0.0, %v4684
        %v4689 = vmul.f32 %v4687, 1.442695
        %v4690 = vpow.pop %v4689
        %v4691 = vmul.f32 %v4688, 1.442695
        %v4692 = vpow.pop %v4691
        %v4693 = vadd.f32 %v4690, 1.0
        %v4694 = vadd.f32 %v4692, 1.0
        %v4695 = vrcp.pop %v4693
        %v4696 = vmul.f32 %v4681, %v4695
        %v4697 = vrcp.pop %v4694
        %v4698 = vmul.f32 %v4684, %v4697
        %v4699 = vpack.c.bf16 %v4698, %v4696
        %v4700 = vld [vmem:[%s12] sm:$0xf]
        %v4701 = vld [vmem:[%s12 + $0x4] sm:$0xf]
        %v4702 = vld [vmem:[%s12 + $0x8] sm:$0xf]
        %v4703 = vld [vmem:[%s12 + $0xc] sm:$0xf]
        %v4704 = vld [vmem:[%s13] sm:$0x1]
        %v4706 = vlaneseq
        %v4707 = vshrl.u32 %v4706, 7
        %v4708 = vsub.s32 0, %v4707
        %v4709 = vrot.slane %v4704, %v4708
        %v4715 = vunpack.c.l.b16 %v4700
        %v4716 = vunpack.c.l.b16 %v4701
        %v4717 = vunpack.c.l.b16 %v4702
        %v4718 = vunpack.c.l.b16 %v4703
        %v4719 = vpack.c.b16 %v4716, %v4715
        %v4720 = vpack.c.b16 %v4718, %v4717
        %v4724 = vsel %vm3681, %v4699, 0
        %4726 = vmatprep.subr.bf16.mxu0 0
        %4727 = vmatpush1.bf16.msra.mxu0 %v4719
        %4728 = vmatprep.subr.bf16.mxu0 0
        %4729 = vmatpush1.bf16.msra.mxu0 %v4720
        %4730 = vmatprep.subr.bf16.mxu0 0
        %4731 = vmatpush1.bf16.msra.mxu0 0
        %4732 = vmatprep.subr.bf16.mxu0 0
        %4733 = vmatpush1.bf16.msra.mxu0 0
        %4734 = vmatprep.subr.bf16.mxu0 0
        %4735 = vmatpush1.bf16.msra.mxu0 0
        %4736 = vmatprep.subr.bf16.mxu0 0
        %4737 = vmatpush1.bf16.msra.mxu0 0
        %4738 = vmatprep.subr.bf16.mxu0 0
        %4739 = vmatpush1.bf16.msra.mxu0 0
        %4740 = vmatprep.subr.bf16.mxu0 0
        %4741 = vmatpush1.bf16.msra.mxu0 0
        %4742 = vmatprep.subr.bf16.mxu0 0
        %4743 = vmatpush1.bf16.msra.mxu0 0
        %4744 = vmatprep.subr.bf16.mxu0 0
        %4745 = vmatpush1.bf16.msra.mxu0 0
        %4746 = vmatprep.subr.bf16.mxu0 0
        %4747 = vmatpush1.bf16.msra.mxu0 0
        %4748 = vmatprep.subr.bf16.mxu0 0
        %4749 = vmatpush1.bf16.msra.mxu0 0
        %4750 = vmatprep.subr.bf16.mxu0 0
        %4751 = vmatpush1.bf16.msra.mxu0 0
        %4752 = vmatprep.subr.bf16.mxu0 0
        %4753 = vmatpush1.bf16.msra.mxu0 0
        %4754 = vmatprep.subr.bf16.mxu0 0
        %4755 = vmatpush1.bf16.msra.mxu0 0
        %4756 = vmatprep.subr.bf16.mxu0 0
        %4757 = vmatpush1.bf16.msra.mxu0 0
        %4758 = vmatprep.mubr.bf16.mxu0 0
        %4759 = vmatmul.mubr.bf16.gmra.mrb[0].mxu0 %v4724
        %v4760 = vpop.f32.mrb[0].mxu0
        %v4761 = vadd.f32 %v4709, %v4760
        %v4762 = vpop.f32.mrb[0].mxu0
        %v4763 = vpop.f32.mrb[0].mxu0
        %v4764 = vadd.f32 %v4709, %v4763
        %v4765 = vpop.f32.mrb[0].mxu0
        %4766 = vdwg.mxu0
        %v4767 = vld [vmem:[%s14] sm:$0x1]
        %v4768 = vsub.f32 0.0, %v4761
        %v4769 = vsub.f32 0.0, %v4764
        %v4770 = vmul.f32 %v4768, 1.442695
        %v4771 = vpow.pop %v4770
        %v4772 = vmul.f32 %v4769, 1.442695
        %v4773 = vpow.pop %v4772
        %v4774 = vadd.f32 %v4771, 1.0
        %v4775 = vadd.f32 %v4773, 1.0
        %v4776 = vrcp.pop %v4774
        %v4777 = vmul.f32 %v4761, %v4776
        %v4778 = vrcp.pop %v4775
        %v4779 = vmul.f32 %v4764, %v4778
        %v4780 = vsub.f32 %v4777, %v4761
        %v4781 = vsub.f32 %v4779, %v4764
        %v4783 = vlaneseq
        %v4784 = vshrl.u32 %v4783, 7
        %v4785 = vsub.s32 0, %v4784
        %v4786 = vrot.slane %v4767, %v4785
        %v4788 = vmul.f32 %v4786, %v4780
        %v4789 = vmul.f32 %v4786, %v4781
        %v4790 = vadd.f32 %v4761, %v4788
        %v4791 = vadd.f32 %v4764, %v4789
        %4792 = vst [vmem:[%s509] sm:$0xff] %v4790
        %4793 = vst [vmem:[%s509 + $0x8] sm:$0xff] %v4791
        %p4794 = scmp.lt.s32.totalorder %s27, 1
        %s4795 = scalar_select %p4794, %s27, 1
        %s4796 = smul.addr %s4795, 2
        %s4797 = smul.addr %s4796, 8
        %s4798 = scalar_lea.vmem %s15, %s4797
        // Predicated region
        $region85: #{cloud_yolo_forward.1} parent=79 // pred_check
          %p4799 = pneg %p365
        $region86: #{cloud_yolo_forward.1} parent=79 // pred_check_branch
          %4801 = sbr.rel (%p4799) target = $region88
        $region87: #{cloud_yolo_forward.1} parent=79 // pred_region
          _
        $region88: #{cloud_yolo_forward.1} parent=79 // pred_fallthru
          _
      $region80: #{cloud_yolo_forward.1} parent=5 // pred_fallthru
        _
      %p4802 = scmp.le.s32.totalorder 2, %s22
      // Predicated region
      $region89: #{cloud_yolo_forward.1} parent=5 // pred_check
        %p4803 = pneg %p4802
      $region90: #{cloud_yolo_forward.1} parent=5 // pred_check_branch
        %4805 = sbr.rel (%p4803) target = $region92
      $region91: #{cloud_yolo_forward.1} parent=5 // pred_region
        %s4806 = ssub.s32 %s22, 2
        // Predicated region
        $region93: #{cloud_yolo_forward.1} parent=91 // pred_check
          %p4807 = pneg %p371
        $region94: #{cloud_yolo_forward.1} parent=91 // pred_check_branch
          %4809 = sbr.rel (%p4807) target = $region96
        $region95: #{cloud_yolo_forward.1} parent=91 // pred_region
          %p4810 = scmp.lt.s32.totalorder %s28, 1
          %s4811 = scalar_select %p4810, %s28, 1
          %s4812 = smul.addr %s4811, 2
          %s4813 = smul.addr %s4812, 8
          %s4814 = scalar_lea.vmem %s15, %s4813
        $region96: #{cloud_yolo_forward.1} parent=91 // pred_fallthru
          _
      $region92: #{cloud_yolo_forward.1} parent=5 // pred_fallthru
        _
    $region6: #{cloud_yolo_forward.1} parent=1 // loop_footer
      %s26 = sadd.s32 1, %s22
    $region7: #{cloud_yolo_forward.1} parent=1 // loop_footer_branch
      %21 = sbr.rel target = $region3
    $region8: #{cloud_yolo_forward.1} parent=1 // loop_exit
      _
    %4815 = vsyncpa [#allocation3], 1
    %s4816 = scalar_lea.sflag [#allocation3], 1
    %4817 = vsyncpa %s4816, 1

</llo_original>
